<compile_context>
chip_gen: v6e
topology: v6e:2x2x1
jax: 0.10.0
libtpu: 0.0.40
codegen_flags: <defaults>
</compile_context>

<pallas_src>
import math

import jax
import jax.numpy as jnp
from jax.experimental import pallas as pl
from jax.experimental.pallas import tpu as pltpu

# ----------------------------- configuration ---------------------------------
VOCAB = 40          # phoneme vocabulary
H = 32              # encoder/decoder hidden
STYLE = 32          # style vector dim
N_MELS = 80         # n_mel_channels (post-flow hardcodes 80)
HALF = N_MELS // 2
N_BINS = 16         # pitch / energy quantization bins
WN_HIDDEN = 64      # post_glow_hidden (coupling conditioner width)
USE_TXT_COND = True
COND_HS = N_MELS + (H if USE_TXT_COND else 0) + STYLE
MAX_TILE_T = 1024   # whole padded T goes in one tile when it fits


# ----------------------------- small helpers ---------------------------------
def _round_up(n, m):
    return ((n + m - 1) // m) * m


def _pick_tile(t):
    """Pad time to a multiple of 8; one tile if it fits, else MAX_TILE_T row tiles."""
    tp = _round_up(max(int(t), 1), 8)
    if tp <= MAX_TILE_T:
        return tp, tp
    tile = MAX_TILE_T
    return _round_up(tp, tile), tile


def _pad_time(x, tp):
    t = x.shape[1]
    if t == tp:
        return x
    return jnp.pad(x, ((0, 0), (0, tp - t), (0, 0)))


def _cost(flops, bytes_accessed, transcendentals=0):
    return pl.CostEstimate(flops=int(flops), transcendentals=int(transcendentals),
                           bytes_accessed=int(bytes_accessed))


def get_mask_from_lengths(lengths, max_len):
    ids = jnp.arange(max_len)[None, :]
    return ids >= lengths[:, None]          # True = padded position


def bucketize(x, bins):
    return jnp.sum(x[..., None] > bins, axis=-1)


def length_regulate(x, durations, pad_len, clip_len):
    """Expand phoneme features by integer durations (searchsorted gather, padded domain)."""
    cum = jnp.cumsum(durations, axis=1)                                   # (B, Ts)
    t = jnp.arange(pad_len, dtype=cum.dtype)                              # (Tp,)
    idx = jax.vmap(lambda c: jnp.searchsorted(c, t, side="right"))(cum)   # (B, Tp)
    idx = jnp.clip(idx, 0, x.shape[1] - 1)
    out = jnp.take_along_axis(x, idx[..., None], axis=1)                  # (B, Tp, C)
    mel_lens = jnp.clip(cum[:, -1], 0, clip_len).astype(jnp.int32)
    return out, mel_lens


# ----------------------------- Pallas kernels --------------------------------
def _valid_mask(len_ref, tile):
    """(tile, 1) float mask of valid rows built from SMEM lengths (no HBM mask array)."""
    b = pl.program_id(0)
    t = pl.program_id(1)
    rows = jax.lax.broadcasted_iota(jnp.int32, (tile, 1), 0) + t * tile
    return (rows < len_ref[b]).astype(jnp.float32)


def _style_kernel(len_ref, mel_ref, win_ref, bin_ref, wout_ref, bout_ref,
                  style_ref, acc, cnt):
    """Fused MelStyleEncoder: relu(mels @ W_in + b) -> masked mean over frames -> @ W_out + b."""
    t = pl.program_id(1)

    @pl.when(t == 0)
    def _():
        acc[...] = jnp.zeros_like(acc)
        cnt[...] = jnp.zeros_like(cnt)

    tile = mel_ref.shape[0]
    v = _valid_mask(len_ref, tile)                    # (tile, 1)
    x = mel_ref[...]                                  # (tile, N_MELS)
    h = jnp.maximum(
        jnp.dot(x, win_ref[...], preferred_element_type=jnp.float32) + bin_ref[...], 0.0)
    acc[...] += jnp.sum(h * v, axis=0, keepdims=True)  # (1, H)
    cnt[...] += jnp.sum(v)

    @pl.when(t == pl.num_programs(1) - 1)
    def _():
        pooled = acc[...] / jnp.maximum(cnt[...], 1.0)
        style_ref[...] = (jnp.dot(pooled, wout_ref[...],
                                  preferred_element_type=jnp.float32) + bout_ref[...])


def _encoder_kernel(len_ref, x_ref, sb_ref,
                    w1x_ref, wpho_ref, w2pho_ref, b2pho_ref, bpho_ref,
                    wv1_ref, bv1_ref, wv2_ref, bv2_ref,
                    enc_ref, pred_ref):
    """SALN FFT block + phoneme_linear (W2@Wpho pre-folded) + stacked dur/pitch/energy heads."""
    tile = x_ref.shape[0]
    v = _valid_mask(len_ref, tile)                    # (tile, 1)
    x = x_ref[...]                                    # (tile, H)
    h = jnp.maximum(
        jnp.dot(x, w1x_ref[...], preferred_element_type=jnp.float32) + sb_ref[...], 0.0)
    # ((x + h@W2 + b2) * v) @ Wpho + bpho  ==  (x@Wpho + h@(W2@Wpho) + b2@Wpho) * v + bpho
    out = (jnp.dot(x, wpho_ref[...], preferred_element_type=jnp.float32)
           + jnp.dot(h, w2pho_ref[...], preferred_element_type=jnp.float32)
           + b2pho_ref[...]) * v + bpho_ref[...]
    hv = jnp.maximum(
        jnp.dot(out, wv1_ref[...], preferred_element_type=jnp.float32) + bv1_ref[...], 0.0)
    preds = (jnp.dot(hv, wv2_ref[...], preferred_element_type=jnp.float32) + bv2_ref[...]) * v
    enc_ref[...] = out
    pred_ref[...] = preds


def _decoder_postglow_kernel(len_ref, x_ref, dsb_ref, gsb_ref, xa_ref, xb_ref,
                             w1x_ref, wmel_ref, w2mel_ref, b2mel_ref, bmel_ref,
                             wxa_ref, wm_ref, wd_ref,
                             wl_ref, bl_ref, wt_ref, bt_ref,
                             mel_ref, za_ref, zb_ref, ldj_ref):
    """Decoder SALN block + mel_linear fused with the post-glow affine coupling.

    mel_out stays in VMEM and feeds the conditioner directly (no HBM round-trip).
    wn2 is split into (logs, t) halves and z is emitted as za/zb to avoid 40-lane slices.
    """
    t = pl.program_id(1)

    @pl.when(t == 0)
    def _():
        ldj_ref[...] = jnp.zeros_like(ldj_ref)

    tile = x_ref.shape[0]
    v = _valid_mask(len_ref, tile)                    # (tile, 1)
    x = x_ref[...] * v                                # masked decoder input (length-regulated)

    # ---- decoder trunk (W2@Wmel pre-folded) ----
    h = jnp.maximum(
        jnp.dot(x, w1x_ref[...], preferred_element_type=jnp.float32) + dsb_ref[...], 0.0)
    mel = (jnp.dot(x, wmel_ref[...], preferred_element_type=jnp.float32)
           + jnp.dot(h, w2mel_ref[...], preferred_element_type=jnp.float32)
           + b2mel_ref[...]) * v + bmel_ref[...]
    mel_ref[...] = mel

    # ---- post-glow affine coupling (conditioner on [xa ; mel_out ; decoder_inp ; style]) ----
    xa = xa_ref[...]                                  # (tile, HALF) ground-truth mel, first half
    xb = xb_ref[...]                                  # (tile, HALF) ground-truth mel, second half
    pre = (jnp.dot(xa, wxa_ref[...], preferred_element_type=jnp.float32)
           + jnp.dot(mel, wm_ref[...], preferred_element_type=jnp.float32)
           + jnp.dot(x, wd_ref[...], preferred_element_type=jnp.float32)
           + gsb_ref[...])
    hc = jnp.tanh(pre)
    logs = jnp.dot(hc, wl_ref[...], preferred_element_type=jnp.float32) + bl_ref[...]
    tt = jnp.dot(hc, wt_ref[...], preferred_element_type=jnp.float32) + bt_ref[...]

    za_ref[...] = xa * v
    zb_ref[...] = (xb * jnp.exp(logs) + tt) * v
    ldj_ref[...] += jnp.sum(logs * v)


# ----------------------------- kernel wrappers --------------------------------
def style_encoder(p, mels_p, mel_lens, tile):
    B, Tp, _ = mels_p.shape
    nt = Tp // tile
    flops = 2 * B * Tp * N_MELS * H + 2 * B * H * STYLE
    nbytes = 4 * (B * Tp * N_MELS + N_MELS * H + H * STYLE + B * STYLE + H + STYLE)
    gs = pltpu.PrefetchScalarGridSpec(
        num_scalar_prefetch=1, grid=(B, nt),
        in_specs=[
            pl.BlockSpec((None, tile, N_MELS), lambda b, t, l: (b, t, 0)),
            pl.BlockSpec((N_MELS, H), lambda b, t, l: (0, 0)),
            pl.BlockSpec((1, H), lambda b, t, l: (0, 0)),
            pl.BlockSpec((H, STYLE), lambda b, t, l: (0, 0)),
            pl.BlockSpec((1, STYLE), lambda b, t, l: (0, 0)),
        ],
        out_specs=pl.BlockSpec((None, 1, STYLE), lambda b, t, l: (b, 0, 0)),
        scratch_shapes=[pltpu.VMEM((1, H), jnp.float32), pltpu.VMEM((1, 1), jnp.float32)],
    )
    return pl.pallas_call(
        _style_kernel,
        out_shape=jax.ShapeDtypeStruct((B, 1, STYLE), jnp.float32),
        grid_spec=gs,
        compiler_params=pltpu.CompilerParams(dimension_semantics=("parallel", "arbitrary")),
        cost_estimate=_cost(flops, nbytes),
    )(mel_lens, mels_p, p["mse_in_w"], p["mse_in_b"], p["mse_out_w"], p["mse_out_b"])


def encoder_trunk(p, x_p, enc_sb, src_lens, tile):
    B, Tp, _ = x_p.shape
    nt = Tp // tile
    # exact pre-fold of the post-mask phoneme_linear
    w2pho = jnp.dot(p["pe_2_w"], p["pho_w"])
    b2pho = jnp.dot(p["pe_2_b"], p["pho_w"])
    per_row = 2 * (3 * H * H + H * 3 * H + 3 * H * 3)
    flops = B * Tp * per_row
    nbytes = 4 * (B * Tp * (2 * H + 3) + 4 * H * H + H * 3 * H + 3 * H * 3 + B * H)
    gs = pltpu.PrefetchScalarGridSpec(
        num_scalar_prefetch=1, grid=(B, nt),
        in_specs=[
            pl.BlockSpec((None, tile, H), lambda b, t, l: (b, t, 0)),     # x (embeddings)
            pl.BlockSpec((None, 1, H), lambda b, t, l: (b, 0, 0)),        # hoisted style bias
            pl.BlockSpec((H, H), lambda b, t, l: (0, 0)),                 # pe_1_wx
            pl.BlockSpec((H, H), lambda b, t, l: (0, 0)),                 # pho_w
            pl.BlockSpec((H, H), lambda b, t, l: (0, 0)),                 # pe_2_w @ pho_w
            pl.BlockSpec((1, H), lambda b, t, l: (0, 0)),                 # pe_2_b @ pho_w
            pl.BlockSpec((1, H), lambda b, t, l: (0, 0)),                 # pho_b
            pl.BlockSpec((H, 3 * H), lambda b, t, l: (0, 0)),             # var1_w (stacked)
            pl.BlockSpec((1, 3 * H), lambda b, t, l: (0, 0)),             # var1_b
            pl.BlockSpec((3 * H, 3), lambda b, t, l: (0, 0)),             # var2_w (block-diag)
            pl.BlockSpec((1, 3), lambda b, t, l: (0, 0)),                 # var2_b
        ],
        out_specs=(pl.BlockSpec((None, tile, H), lambda b, t, l: (b, t, 0)),
                   pl.BlockSpec((None, tile, 3), lambda b, t, l: (b, t, 0))),
    )
    return pl.pallas_call(
        _encoder_kernel,
        out_shape=(jax.ShapeDtypeStruct((B, Tp, H), jnp.float32),
                   jax.ShapeDtypeStruct((B, Tp, 3), jnp.float32)),
        grid_spec=gs,
        compiler_params=pltpu.CompilerParams(dimension_semantics=("parallel", "parallel")),
        cost_estimate=_cost(flops, nbytes),
    )(src_lens, x_p, enc_sb,
      p["pe_1_wx"], p["pho_w"], w2pho, b2pho, p["pho_b"],
      p["var1_w"], p["var1_b"], p["var2_w"], p["var2_b"])


def decoder_postglow(p, x_reg, dec_sb, glow_sb, xa, xb, mel_lens_out, tile):
    B, Tp, _ = x_reg.shape
    nt = Tp // tile
    # exact pre-fold of the post-mask mel_linear
    w2mel = jnp.dot(p["dec_2_w"], p["mel_w"])
    b2mel = jnp.dot(p["dec_2_b"], p["mel_w"])
    per_row = (2 * (H * H + 2 * H * N_MELS)
               + 2 * (HALF * WN_HIDDEN + N_MELS * WN_HIDDEN + H * WN_HIDDEN + 2 * WN_HIDDEN * HALF))
    flops = B * Tp * per_row
    trans = B * Tp * (WN_HIDDEN + HALF)
    nbytes = 4 * (B * Tp * (H + 2 * HALF + N_MELS + 2 * HALF)
                  + H * H + 2 * H * N_MELS
                  + (HALF + N_MELS + H) * WN_HIDDEN + 2 * WN_HIDDEN * HALF
                  + B * (H + WN_HIDDEN))
    gs = pltpu.PrefetchScalarGridSpec(
        num_scalar_prefetch=1, grid=(B, nt),
        in_specs=[
            pl.BlockSpec((None, tile, H), lambda b, t, l: (b, t, 0)),       # length-regulated x
            pl.BlockSpec((None, 1, H), lambda b, t, l: (b, 0, 0)),          # hoisted dec style bias
            pl.BlockSpec((None, 1, WN_HIDDEN), lambda b, t, l: (b, 0, 0)),  # hoisted glow style bias
            pl.BlockSpec((None, tile, HALF), lambda b, t, l: (b, t, 0)),    # mels first half
            pl.BlockSpec((None, tile, HALF), lambda b, t, l: (b, t, 0)),    # mels second half
            pl.BlockSpec((H, H), lambda b, t, l: (0, 0)),                   # dec_1_wx
            pl.BlockSpec((H, N_MELS), lambda b, t, l: (0, 0)),              # mel_w
            pl.BlockSpec((H, N_MELS), lambda b, t, l: (0, 0)),              # dec_2_w @ mel_w
            pl.BlockSpec((1, N_MELS), lambda b, t, l: (0, 0)),              # dec_2_b @ mel_w
            pl.BlockSpec((1, N_MELS), lambda b, t, l: (0, 0)),              # mel_b
            pl.BlockSpec((HALF, WN_HIDDEN), lambda b, t, l: (0, 0)),        # wn1_wxa
            pl.BlockSpec((N_MELS, WN_HIDDEN), lambda b, t, l: (0, 0)),      # wn1_wmel
            pl.BlockSpec((H, WN_HIDDEN), lambda b, t, l: (0, 0)),           # wn1_wdec
            pl.BlockSpec((WN_HIDDEN, HALF), lambda b, t, l: (0, 0)),        # wn2 logs weight
            pl.BlockSpec((1, HALF), lambda b, t, l: (0, 0)),                # wn2 logs bias
            pl.BlockSpec((WN_HIDDEN, HALF), lambda b, t, l: (0, 0)),        # wn2 t weight
            pl.BlockSpec((1, HALF), lambda b, t, l: (0, 0)),                # wn2 t bias
        ],
        out_specs=(pl.BlockSpec((None, tile, N_MELS), lambda b, t, l: (b, t, 0)),  # mel_out
                   pl.BlockSpec((None, tile, HALF), lambda b, t, l: (b, t, 0)),    # za
                   pl.BlockSpec((None, tile, HALF), lambda b, t, l: (b, t, 0)),    # zb
                   pl.BlockSpec((None, 1, 1), lambda b, t, l: (b, 0, 0))),         # ldj sum
    )
    return pl.pallas_call(
        _decoder_postglow_kernel,
        out_shape=(jax.ShapeDtypeStruct((B, Tp, N_MELS), jnp.float32),
                   jax.ShapeDtypeStruct((B, Tp, HALF), jnp.float32),
                   jax.ShapeDtypeStruct((B, Tp, HALF), jnp.float32),
                   jax.ShapeDtypeStruct((B, 1, 1), jnp.float32)),
        grid_spec=gs,
        compiler_params=pltpu.CompilerParams(dimension_semantics=("parallel", "arbitrary")),
        cost_estimate=_cost(flops, nbytes, trans),
    )(mel_lens_out, x_reg, dec_sb, glow_sb, xa, xb,
      p["dec_1_wx"], p["mel_w"], w2mel, b2mel, p["mel_b"],
      p["wn1_wxa"], p["wn1_wmel"], p["wn1_wdec"],
      p["wn2_wl"], p["wn2_bl"], p["wn2_wt"], p["wn2_bt"])


# ----------------------------- full forward -----------------------------------
def stylespeech_forward(p, texts, src_lens, max_src_len, mels, mel_lens, max_mel_len,
                        p_control=1.0, e_control=1.0, d_control=1.0, infer=False):
    src_lens = src_lens.astype(jnp.int32)
    mel_lens = mel_lens.astype(jnp.int32)
    Tsp, ts_tile = _pick_tile(max_src_len)
    Tmp, tm_tile = _pick_tile(max_mel_len)

    # pad once; the whole pipeline runs in the padded domain
    mels_p = _pad_time(mels, Tmp)                                   # (B, Tmp, 80)

    # MelStyleEncoder (fused Pallas kernel, lengths via scalar prefetch)
    style = style_encoder(p, mels_p, mel_lens, tm_tile)             # (B, 1, STYLE)
    style2d = style[:, 0, :]

    # hoisted SALN / conditioner style biases (M=1 matmuls left to XLA)
    enc_sb = (jnp.dot(style2d, p["pe_1_ws"]) + p["pe_1_b"])[:, None, :]   # (B,1,H)
    dec_sb = (jnp.dot(style2d, p["dec_1_ws"]) + p["dec_1_b"])[:, None, :]
    glow_sb = (jnp.dot(jax.lax.stop_gradient(style2d), p["wn1_wsty"])
               + p["wn1_b"])[:, None, :]                                  # (B,1,WN_HIDDEN)

    # PhonemeEncoder embedding gather + single pad
    x_p = _pad_time(p["emb"][texts], Tsp)                           # (B, Tsp, H)

    # Encoder trunk: SALN block + phoneme_linear + dur/pitch/energy predictors (one kernel)
    enc_out, preds = encoder_trunk(p, x_p, enc_sb, src_lens, ts_tile)
    log_d = preds[..., 0]
    p_pred = preds[..., 1]
    e_pred = preds[..., 2]

    valid_src_p = (jnp.arange(Tsp)[None, :] < src_lens[:, None]).astype(jnp.float32)
    d_rounded = jnp.clip(jnp.round((jnp.exp(log_d) - 1.0) * d_control), 0.0, None) * valid_src_p

    p_emb = p["pitch_emb"][bucketize(p_pred * p_control, p["pitch_bins"])]
    e_emb = p["energy_emb"][bucketize(e_pred * e_control, p["energy_bins"])]
    x_va = enc_out + p_emb + e_emb

    # Length regulation directly into the padded mel domain
    x_reg, mel_lens_out = length_regulate(x_va, d_rounded.astype(jnp.int32), Tmp, max_mel_len)

    # post-glow coupling inputs: ground-truth mels pre-split to avoid 40-lane in-kernel slices
    xa = mels_p[..., :HALF]
    xb = mels_p[..., HALF:]

    # Fused decoder trunk + post-glow affine coupling (mel_out never round-trips HBM)
    mel_out_p, za, zb, ldj_sum = decoder_postglow(p, x_reg, dec_sb, glow_sb, xa, xb,
                                                  mel_lens_out, tm_tile)

    # slice only the final outputs back to the caller's domain
    mel_out = mel_out_p[:, :max_mel_len]
    log_d_o = log_d[:, :max_src_len]
    p_pred_o = p_pred[:, :max_src_len]
    e_pred_o = e_pred[:, :max_src_len]
    d_rounded_o = d_rounded[:, :max_src_len]
    src_masks = get_mask_from_lengths(src_lens, max_src_len)
    mel_masks_out = get_mask_from_lengths(mel_lens_out, max_mel_len)

    if not infer:
        z_pf = jnp.concatenate([za, zb], axis=-1)[:, :max_mel_len]  # (B, Tm, 80)
        y_lengths = mel_lens_out.astype(jnp.float32)
        ldj_pf = ldj_sum[:, 0, 0] / jnp.maximum(y_lengths, 1.0) / 80.0
        # prior NLL over the max_mel_len domain (matches reference .mean(); independent of Tp pad)
        log_prob = -0.5 * z_pf * z_pf - 0.5 * math.log(2.0 * math.pi)
        postflow = -jnp.mean(log_prob) - jnp.mean(ldj_pf)
        return (mel_out, p_pred_o, e_pred_o, log_d_o, d_rounded_o,
                src_masks, mel_masks_out[..., None], src_lens, mel_lens_out,
                z_pf, ldj_pf, postflow)
    # TODO(synk): infer=True branch needs the reverse Glow pass (flow sampling); not implemented.
    return (mel_out, p_pred_o, e_pred_o, log_d_o, d_rounded_o,
            src_masks, mel_masks_out, src_lens, mel_lens_out)


# ----------------------------- parameters --------------------------------------
def init_params(key):
    keys = iter(jax.random.split(key, 64))
    p = {}

    def w(shape, fan_in):
        bound = 1.0 / math.sqrt(fan_in)
        return jax.random.uniform(next(keys), shape, jnp.float32, -bound, bound)

    def bias(n, fan_in):
        bound = 1.0 / math.sqrt(fan_in)
        return jax.random.uniform(next(keys), (1, n), jnp.float32, -bound, bound)

    # MelStyleEncoder
    p["mse_in_w"], p["mse_in_b"] = w((N_MELS, H), N_MELS), bias(H, N_MELS)
    p["mse_out_w"], p["mse_out_b"] = w((H, STYLE), H), bias(STYLE, H)
    # PhonemeEncoder (SALN concat-weight split: x part + style part)
    p["emb"] = 0.1 * jax.random.normal(next(keys), (VOCAB, H), jnp.float32)
    p["pe_1_wx"] = w((H, H), H + STYLE)
    p["pe_1_ws"] = w((STYLE, H), H + STYLE)
    p["pe_1_b"] = bias(H, H + STYLE)
    p["pe_2_w"], p["pe_2_b"] = w((H, H), H), bias(H, H)
    # phoneme_linear
    p["pho_w"], p["pho_b"] = w((H, H), H), bias(H, H)
    # Variance predictors: stacked first layers (H, 3H), block-diagonal second layer (3H, 3)
    p["var1_w"] = w((H, 3 * H), H)
    p["var1_b"] = bias(3 * H, H)
    wd, wp_, we = w((H, 1), H), w((H, 1), H), w((H, 1), H)
    zero = jnp.zeros((H, 1), jnp.float32)
    p["var2_w"] = jnp.concatenate([
        jnp.concatenate([wd, zero, zero], axis=1),
        jnp.concatenate([zero, wp_, zero], axis=1),
        jnp.concatenate([zero, zero, we], axis=1)], axis=0)        # (3H, 3): [dur, pitch, energy]
    p["var2_b"] = bias(3, H)
    p["pitch_emb"] = 0.1 * jax.random.normal(next(keys), (N_BINS, H), jnp.float32)
    p["energy_emb"] = 0.1 * jax.random.normal(next(keys), (N_BINS, H), jnp.float32)
    p["pitch_bins"] = jnp.linspace(-1.0, 1.0, N_BINS - 1)
    p["energy_bins"] = jnp.linspace(-1.0, 1.0, N_BINS - 1)
    # MelDecoder (SALN split) + mel_linear
    p["dec_1_wx"] = w((H, H), H + STYLE)
    p["dec_1_ws"] = w((STYLE, H), H + STYLE)
    p["dec_1_b"] = bias(H, H + STYLE)
    p["dec_2_w"], p["dec_2_b"] = w((H, H), H), bias(H, H)
    p["mel_w"], p["mel_b"] = w((H, N_MELS), H), bias(N_MELS, H)
    # post-flow coupling conditioner: wn_1 split over concat pieces [xa ; mel_out ; dec ; style]
    fin = HALF + COND_HS
    p["wn1_wxa"] = w((HALF, WN_HIDDEN), fin)
    p["wn1_wmel"] = w((N_MELS, WN_HIDDEN), fin)
    p["wn1_wdec"] = w((H, WN_HIDDEN), fin)
    p["wn1_wsty"] = w((STYLE, WN_HIDDEN), fin)
    p["wn1_b"] = bias(WN_HIDDEN, fin)
    # wn_2 split into (logs, t) halves so the coupling never slices at lane 40
    p["wn2_wl"] = w((WN_HIDDEN, HALF), WN_HIDDEN)
    p["wn2_bl"] = bias(HALF, WN_HIDDEN)
    p["wn2_wt"] = w((WN_HIDDEN, HALF), WN_HIDDEN)
    p["wn2_bt"] = bias(HALF, WN_HIDDEN)
    return p


# ----------------------------- main ---------------------------------------------
if __name__ == "__main__":
    key = jax.random.PRNGKey(0)
    k_par, k_txt, k_mel = jax.random.split(key, 3)

    B, T_SRC, T_MEL = 2, 8, 16
    params = init_params(k_par)

    texts = jax.random.randint(k_txt, (B, T_SRC), 0, VOCAB, dtype=jnp.int32)
    src_lens = jnp.array([8, 6], dtype=jnp.int32)
    mel_lens = jnp.array([16, 12], dtype=jnp.int32)
    mels = jax.random.normal(k_mel, (B, T_MEL, N_MELS), dtype=jnp.float32)

    forward = jax.jit(stylespeech_forward, static_argnums=(3, 6), static_argnames=("infer",))
    outs = forward(params, texts, src_lens, T_SRC, mels, mel_lens, T_MEL, infer=False)
    jax.block_until_ready(outs)

    # light sanity checks
    mel_out = outs[0]
    z_pf, ldj_pf, postflow = outs[-3], outs[-2], outs[-1]
    assert mel_out.shape == (B, T_MEL, N_MELS)
    assert z_pf.shape == (B, T_MEL, N_MELS)
    assert postflow.shape == ()
    assert bool(jnp.all(jnp.isfinite(mel_out)))
    assert bool(jnp.all(jnp.isfinite(z_pf)))
    assert bool(jnp.isfinite(postflow))
    print("KERNEL_OK")
</pallas_src>

<mosaic_0001>
module attributes {stable_mosaic.version = 11 : i64} {
  func.func @_style_kernel(%arg0: i32, %arg1: i32, %arg2: memref<2xi32, #tpu.memory_space<smem>>, %arg3: memref<1x16x80xf32, #tpu.memory_space<vmem>>, %arg4: memref<80x32xf32, #tpu.memory_space<vmem>>, %arg5: memref<1x32xf32, #tpu.memory_space<vmem>>, %arg6: memref<32x32xf32, #tpu.memory_space<vmem>>, %arg7: memref<1x32xf32, #tpu.memory_space<vmem>>, %arg8: memref<1x1x32xf32, #tpu.memory_space<vmem>>, %arg9: memref<1x32xf32, #tpu.memory_space<vmem>>, %arg10: memref<1x1xf32, #tpu.memory_space<vmem>>) attributes {dimension_semantics = [#tpu.dimension_semantics<parallel>, #tpu.dimension_semantics<arbitrary>], iteration_bounds = array<i64: 2, 1>, scalar_prefetch = 1 : i64, scratch_operands = 2 : i64, tpu.core_type = #tpu.core_type<tc>, window_params = [{transform_indices = @transform_0, window_bounds = array<i64: 1, 16, 80>}, {pipeline_mode = #tpu.pipeline_mode<synchronous>, transform_indices = @transform_1, window_bounds = array<i64: 80, 32>}, {pipeline_mode = #tpu.pipeline_mode<synchronous>, transform_indices = @transform_2, window_bounds = array<i64: 1, 32>}, {pipeline_mode = #tpu.pipeline_mode<synchronous>, transform_indices = @transform_3, window_bounds = array<i64: 32, 32>}, {pipeline_mode = #tpu.pipeline_mode<synchronous>, transform_indices = @transform_4, window_bounds = array<i64: 1, 32>}, {transform_indices = @transform_5, window_bounds = array<i64: 1, 1, 32>}]} {
    %c0_i32 = arith.constant 0 : i32
    %0 = arith.cmpi eq, %arg1, %c0_i32 : i32
    %1 = arith.extui %0 : i1 to i32
    %c0_i32_0 = arith.constant 0 : i32
    %2 = arith.cmpi ne, %1, %c0_i32_0 : i32
    scf.if %2 {
      %cst_20 = arith.constant 0.000000e+00 : f32
      %40 = vector.broadcast %cst_20 : f32 to vector<1x32xf32>
      %c0_21 = arith.constant 0 : index
      %c0_22 = arith.constant 0 : index
      %41 = vector.load %arg9[%c0_21, %c0_22] : memref<1x32xf32, #tpu.memory_space<vmem>>, vector<1x32xf32>
      tpu.vector_store %arg9[%c0_21, %c0_22], %40 {strides = array<i32>} : memref<1x32xf32, #tpu.memory_space<vmem>>, vector<1x32xf32>,
      %cst_23 = arith.constant 0.000000e+00 : f32
      %42 = vector.broadcast %cst_23 : f32 to vector<1x1xf32>
      %c0_24 = arith.constant 0 : index
      %c0_25 = arith.constant 0 : index
      %43 = vector.load %arg10[%c0_24, %c0_25] : memref<1x1xf32, #tpu.memory_space<vmem>>, vector<1x1xf32>
      tpu.vector_store %arg10[%c0_24, %c0_25], %42 {strides = array<i32>} : memref<1x1xf32, #tpu.memory_space<vmem>>, vector<1x1xf32>,
    } else {
    }
    %3 = tpu.iota {dimensions = array<i32: 0>} : vector<16x1xi32>
    %c16_i32 = arith.constant 16 : i32
    %4 = arith.muli %arg1, %c16_i32 : i32
    %5 = vector.broadcast %4 : i32 to vector<16x1xi32>
    %6 = arith.addi %3, %5 : vector<16x1xi32>
    %7 = arith.index_cast %arg0 : i32 to index
    %8 = memref.load %arg2[%7] : memref<2xi32, #tpu.memory_space<smem>>
    %9 = vector.broadcast %8 : i32 to vector<16x1xi32>
    %10 = arith.cmpi slt, %6, %9 : vector<16x1xi32>
    %11 = arith.extui %10 : vector<16x1xi1> to vector<16x1xi32>
    %12 = arith.sitofp %11 : vector<16x1xi32> to vector<16x1xf32>
    %c0 = arith.constant 0 : index
    %c0_1 = arith.constant 0 : index
    %c0_2 = arith.constant 0 : index
    %13 = vector.load %arg3[%c0, %c0_1, %c0_2] : memref<1x16x80xf32, #tpu.memory_space<vmem>>, vector<1x16x80xf32>
    %14 = vector.shape_cast %13 : vector<1x16x80xf32> to vector<16x80xf32>
    %c0_3 = arith.constant 0 : index
    %c0_4 = arith.constant 0 : index
    %15 = vector.load %arg4[%c0_3, %c0_4] : memref<80x32xf32, #tpu.memory_space<vmem>>, vector<80x32xf32>
    %cst = arith.constant dense<0.000000e+00> : vector<16x32xf32>
    %16 = tpu.matmul %14, %15, %cst {dimension_numbers = #tpu.dot_dimension_numbers<[1], [0], [0], [1], [0, 0, 1, 1], [], []>} : vector<16x80xf32>, vector<80x32xf32>, vector<16x32xf32> -> vector<16x32xf32>
    %c0_5 = arith.constant 0 : index
    %c0_6 = arith.constant 0 : index
    %17 = vector.load %arg5[%c0_5, %c0_6] : memref<1x32xf32, #tpu.memory_space<vmem>>, vector<1x32xf32>
    %18 = vector.broadcast %17 : vector<1x32xf32> to vector<16x32xf32>
    %19 = arith.addf %16, %18 : vector<16x32xf32>
    %cst_7 = arith.constant 0.000000e+00 : f32
    %20 = vector.broadcast %cst_7 : f32 to vector<16x32xf32>
    %21 = arith.maximumf %19, %20 : vector<16x32xf32>
    %c0_8 = arith.constant 0 : index
    %c0_9 = arith.constant 0 : index
    %22 = vector.load %arg9[%c0_8, %c0_9] : memref<1x32xf32, #tpu.memory_space<vmem>>, vector<1x32xf32>
    %23 = vector.broadcast %12 : vector<16x1xf32> to vector<16x32xf32>
    %24 = arith.mulf %21, %23 : vector<16x32xf32>
    %cst_10 = arith.constant dense<0.000000e+00> : vector<32xf32>
    %25 = vector.multi_reduction <add>, %24, %cst_10 [0] : vector<16x32xf32> to vector<32xf32>
    %26 = vector.shape_cast %25 : vector<32xf32> to vector<1x32xf32>
    %27 = arith.addf %22, %26 : vector<1x32xf32>
    %c0_11 = arith.constant 0 : index
    %c0_12 = arith.constant 0 : index
    %28 = vector.load %arg9[%c0_11, %c0_12] : memref<1x32xf32, #tpu.memory_space<vmem>>, vector<1x32xf32>
    tpu.vector_store %arg9[%c0_11, %c0_12], %27 {strides = array<i32>} : memref<1x32xf32, #tpu.memory_space<vmem>>, vector<1x32xf32>,
    %c0_13 = arith.constant 0 : index
    %c0_14 = arith.constant 0 : index
    %29 = vector.load %arg10[%c0_13, %c0_14] : memref<1x1xf32, #tpu.memory_space<vmem>>, vector<1x1xf32>
    %30 = vector.shape_cast %12 : vector<16x1xf32> to vector<1x16x1xf32>
    %cst_15 = arith.constant dense<0.000000e+00> : vector<1xf32>
    %31 = vector.multi_reduction <add>, %30, %cst_15 [1, 2] : vector<1x16x1xf32> to vector<1xf32>
    %32 = vector.shape_cast %31 : vector<1xf32> to vector<1x1x1xf32>
    %33 = vector.extract %32[0, 0, 0] : f32 from vector<1x1x1xf32>
    %34 = vector.broadcast %33 : f32 to vector<1x1xf32>
    %35 = arith.addf %29, %34 : vector<1x1xf32>
    %c0_16 = arith.constant 0 : index
    %c0_17 = arith.constant 0 : index
    %36 = vector.load %arg10[%c0_16, %c0_17] : memref<1x1xf32, #tpu.memory_space<vmem>>, vector<1x1xf32>
    tpu.vector_store %arg10[%c0_16, %c0_17], %35 {strides = array<i32>} : memref<1x1xf32, #tpu.memory_space<vmem>>, vector<1x1xf32>,
    %c0_i32_18 = arith.constant 0 : i32
    %37 = arith.cmpi eq, %arg1, %c0_i32_18 : i32
    %38 = arith.extui %37 : i1 to i32
    %c0_i32_19 = arith.constant 0 : i32
    %39 = arith.cmpi ne, %38, %c0_i32_19 : i32
    scf.if %39 {
      %c0_20 = arith.constant 0 : index
      %c0_21 = arith.constant 0 : index
      %40 = vector.load %arg9[%c0_20, %c0_21] : memref<1x32xf32, #tpu.memory_space<vmem>>, vector<1x32xf32>
      %c0_22 = arith.constant 0 : index
      %c0_23 = arith.constant 0 : index
      %41 = vector.load %arg10[%c0_22, %c0_23] : memref<1x1xf32, #tpu.memory_space<vmem>>, vector<1x1xf32>
      %cst_24 = arith.constant 1.000000e+00 : f32
      %42 = vector.broadcast %cst_24 : f32 to vector<1x1xf32>
      %43 = arith.maximumf %41, %42 : vector<1x1xf32>
      %44 = vector.broadcast %43 : vector<1x1xf32> to vector<1x32xf32>
      %45 = arith.divf %40, %44 : vector<1x32xf32>
      %c0_25 = arith.constant 0 : index
      %c0_26 = arith.constant 0 : index
      %46 = vector.load %arg6[%c0_25, %c0_26] : memref<32x32xf32, #tpu.memory_space<vmem>>, vector<32x32xf32>
      %cst_27 = arith.constant dense<0.000000e+00> : vector<1x32xf32>
      %47 = tpu.matmul %45, %46, %cst_27 {dimension_numbers = #tpu.dot_dimension_numbers<[1], [0], [0], [1], [0, 0, 1, 1], [], []>} : vector<1x32xf32>, vector<32x32xf32>, vector<1x32xf32> -> vector<1x32xf32>
      %c0_28 = arith.constant 0 : index
      %c0_29 = arith.constant 0 : index
      %48 = vector.load %arg7[%c0_28, %c0_29] : memref<1x32xf32, #tpu.memory_space<vmem>>, vector<1x32xf32>
      %49 = arith.addf %47, %48 : vector<1x32xf32>
      %c0_30 = arith.constant 0 : index
      %c0_31 = arith.constant 0 : index
      %c0_32 = arith.constant 0 : index
      %50 = vector.load %arg8[%c0_30, %c0_31, %c0_32] : memref<1x1x32xf32, #tpu.memory_space<vmem>>, vector<1x1x32xf32>
      %51 = vector.shape_cast %50 : vector<1x1x32xf32> to vector<1x32xf32>
      %52 = vector.shape_cast %49 : vector<1x32xf32> to vector<1x1x32xf32>
      tpu.vector_store %arg8[%c0_30, %c0_31, %c0_32], %52 {strides = array<i32>} : memref<1x1x32xf32, #tpu.memory_space<vmem>>, vector<1x1x32xf32>,
    } else {
    }
    return
  }
  func.func @transform_0(%arg0: i32, %arg1: i32, %arg2: memref<2xi32, #tpu.memory_space<smem>>) -> (i32, i32, i32) {
    %c0_i32 = arith.constant 0 : i32
    %c0_i32_0 = arith.constant 0 : i32
    return %arg0, %arg1, %c0_i32 : i32, i32, i32
  }
  func.func @transform_1(%arg0: i32, %arg1: i32, %arg2: memref<2xi32, #tpu.memory_space<smem>>) -> (i32, i32) {
    %c0_i32 = arith.constant 0 : i32
    %c0_i32_0 = arith.constant 0 : i32
    %c0_i32_1 = arith.constant 0 : i32
    return %c0_i32, %c0_i32_0 : i32, i32
  }
  func.func @transform_2(%arg0: i32, %arg1: i32, %arg2: memref<2xi32, #tpu.memory_space<smem>>) -> (i32, i32) {
    %c0_i32 = arith.constant 0 : i32
    %c0_i32_0 = arith.constant 0 : i32
    %c0_i32_1 = arith.constant 0 : i32
    return %c0_i32, %c0_i32_0 : i32, i32
  }
  func.func @transform_3(%arg0: i32, %arg1: i32, %arg2: memref<2xi32, #tpu.memory_space<smem>>) -> (i32, i32) {
    %c0_i32 = arith.constant 0 : i32
    %c0_i32_0 = arith.constant 0 : i32
    %c0_i32_1 = arith.constant 0 : i32
    return %c0_i32, %c0_i32_0 : i32, i32
  }
  func.func @transform_4(%arg0: i32, %arg1: i32, %arg2: memref<2xi32, #tpu.memory_space<smem>>) -> (i32, i32) {
    %c0_i32 = arith.constant 0 : i32
    %c0_i32_0 = arith.constant 0 : i32
    %c0_i32_1 = arith.constant 0 : i32
    return %c0_i32, %c0_i32_0 : i32, i32
  }
  func.func @transform_5(%arg0: i32, %arg1: i32, %arg2: memref<2xi32, #tpu.memory_space<smem>>) -> (i32, i32, i32) {
    %c0_i32 = arith.constant 0 : i32
    %c0_i32_0 = arith.constant 0 : i32
    %c0_i32_1 = arith.constant 0 : i32
    return %arg0, %c0_i32, %c0_i32_0 : i32, i32, i32
  }
}

module attributes {stable_mosaic.version = 11 : i64} {
  func.func @_encoder_kernel(%arg0: i32, %arg1: i32, %arg2: memref<2xi32, #tpu.memory_space<smem>>, %arg3: memref<1x8x32xf32, #tpu.memory_space<vmem>>, %arg4: memref<1x1x32xf32, #tpu.memory_space<vmem>>, %arg5: memref<32x32xf32, #tpu.memory_space<vmem>>, %arg6: memref<32x32xf32, #tpu.memory_space<vmem>>, %arg7: memref<32x32xf32, #tpu.memory_space<vmem>>, %arg8: memref<1x32xf32, #tpu.memory_space<vmem>>, %arg9: memref<1x32xf32, #tpu.memory_space<vmem>>, %arg10: memref<32x96xf32, #tpu.memory_space<vmem>>, %arg11: memref<1x96xf32, #tpu.memory_space<vmem>>, %arg12: memref<96x3xf32, #tpu.memory_space<vmem>>, %arg13: memref<1x3xf32, #tpu.memory_space<vmem>>, %arg14: memref<1x8x32xf32, #tpu.memory_space<vmem>>, %arg15: memref<1x8x3xf32, #tpu.memory_space<vmem>>) attributes {dimension_semantics = [#tpu.dimension_semantics<parallel>, #tpu.dimension_semantics<parallel>], iteration_bounds = array<i64: 2, 1>, scalar_prefetch = 1 : i64, scratch_operands = 0 : i64, tpu.core_type = #tpu.core_type<tc>, window_params = [{transform_indices = @transform_0, window_bounds = array<i64: 1, 8, 32>}, {transform_indices = @transform_1, window_bounds = array<i64: 1, 1, 32>}, {pipeline_mode = #tpu.pipeline_mode<synchronous>, transform_indices = @transform_2, window_bounds = array<i64: 32, 32>}, {pipeline_mode = #tpu.pipeline_mode<synchronous>, transform_indices = @transform_3, window_bounds = array<i64: 32, 32>}, {pipeline_mode = #tpu.pipeline_mode<synchronous>, transform_indices = @transform_4, window_bounds = array<i64: 32, 32>}, {pipeline_mode = #tpu.pipeline_mode<synchronous>, transform_indices = @transform_5, window_bounds = array<i64: 1, 32>}, {pipeline_mode = #tpu.pipeline_mode<synchronous>, transform_indices = @transform_6, window_bounds = array<i64: 1, 32>}, {pipeline_mode = #tpu.pipeline_mode<synchronous>, transform_indices = @transform_7, window_bounds = array<i64: 32, 96>}, {pipeline_mode = #tpu.pipeline_mode<synchronous>, transform_indices = @transform_8, window_bounds = array<i64: 1, 96>}, {pipeline_mode = #tpu.pipeline_mode<synchronous>, transform_indices = @transform_9, window_bounds = array<i64: 96, 3>}, {pipeline_mode = #tpu.pipeline_mode<synchronous>, transform_indices = @transform_10, window_bounds = array<i64: 1, 3>}, {transform_indices = @transform_11, window_bounds = array<i64: 1, 8, 32>}, {transform_indices = @transform_12, window_bounds = array<i64: 1, 8, 3>}]} {
    %0 = tpu.iota {dimensions = array<i32: 0>} : vector<8x1xi32>
    %c8_i32 = arith.constant 8 : i32
    %1 = arith.muli %arg1, %c8_i32 : i32
    %2 = vector.broadcast %1 : i32 to vector<8x1xi32>
    %3 = arith.addi %0, %2 : vector<8x1xi32>
    %4 = arith.index_cast %arg0 : i32 to index
    %5 = memref.load %arg2[%4] : memref<2xi32, #tpu.memory_space<smem>>
    %6 = vector.broadcast %5 : i32 to vector<8x1xi32>
    %7 = arith.cmpi slt, %3, %6 : vector<8x1xi32>
    %8 = arith.extui %7 : vector<8x1xi1> to vector<8x1xi32>
    %9 = arith.sitofp %8 : vector<8x1xi32> to vector<8x1xf32>
    %c0 = arith.constant 0 : index
    %c0_0 = arith.constant 0 : index
    %c0_1 = arith.constant 0 : index
    %10 = vector.load %arg3[%c0, %c0_0, %c0_1] : memref<1x8x32xf32, #tpu.memory_space<vmem>>, vector<1x8x32xf32>
    %11 = vector.shape_cast %10 : vector<1x8x32xf32> to vector<8x32xf32>
    %c0_2 = arith.constant 0 : index
    %c0_3 = arith.constant 0 : index
    %12 = vector.load %arg5[%c0_2, %c0_3] : memref<32x32xf32, #tpu.memory_space<vmem>>, vector<32x32xf32>
    %cst = arith.constant dense<0.000000e+00> : vector<8x32xf32>
    %13 = tpu.matmul %11, %12, %cst {dimension_numbers = #tpu.dot_dimension_numbers<[1], [0], [0], [1], [0, 0, 1, 1], [], []>} : vector<8x32xf32>, vector<32x32xf32>, vector<8x32xf32> -> vector<8x32xf32>
    %c0_4 = arith.constant 0 : index
    %c0_5 = arith.constant 0 : index
    %c0_6 = arith.constant 0 : index
    %14 = vector.load %arg4[%c0_4, %c0_5, %c0_6] : memref<1x1x32xf32, #tpu.memory_space<vmem>>, vector<1x1x32xf32>
    %15 = vector.shape_cast %14 : vector<1x1x32xf32> to vector<1x32xf32>
    %16 = vector.broadcast %15 : vector<1x32xf32> to vector<8x32xf32>
    %17 = arith.addf %13, %16 : vector<8x32xf32>
    %cst_7 = arith.constant 0.000000e+00 : f32
    %18 = vector.broadcast %cst_7 : f32 to vector<8x32xf32>
    %19 = arith.maximumf %17, %18 : vector<8x32xf32>
    %c0_8 = arith.constant 0 : index
    %c0_9 = arith.constant 0 : index
    %20 = vector.load %arg6[%c0_8, %c0_9] : memref<32x32xf32, #tpu.memory_space<vmem>>, vector<32x32xf32>
    %cst_10 = arith.constant dense<0.000000e+00> : vector<8x32xf32>
    %21 = tpu.matmul %11, %20, %cst_10 {dimension_numbers = #tpu.dot_dimension_numbers<[1], [0], [0], [1], [0, 0, 1, 1], [], []>} : vector<8x32xf32>, vector<32x32xf32>, vector<8x32xf32> -> vector<8x32xf32>
    %c0_11 = arith.constant 0 : index
    %c0_12 = arith.constant 0 : index
    %22 = vector.load %arg7[%c0_11, %c0_12] : memref<32x32xf32, #tpu.memory_space<vmem>>, vector<32x32xf32>
    %cst_13 = arith.constant dense<0.000000e+00> : vector<8x32xf32>
    %23 = tpu.matmul %19, %22, %cst_13 {dimension_numbers = #tpu.dot_dimension_numbers<[1], [0], [0], [1], [0, 0, 1, 1], [], []>} : vector<8x32xf32>, vector<32x32xf32>, vector<8x32xf32> -> vector<8x32xf32>
    %24 = arith.addf %21, %23 : vector<8x32xf32>
    %c0_14 = arith.constant 0 : index
    %c0_15 = arith.constant 0 : index
    %25 = vector.load %arg8[%c0_14, %c0_15] : memref<1x32xf32, #tpu.memory_space<vmem>>, vector<1x32xf32>
    %26 = vector.broadcast %25 : vector<1x32xf32> to vector<8x32xf32>
    %27 = arith.addf %24, %26 : vector<8x32xf32>
    %28 = vector.broadcast %9 : vector<8x1xf32> to vector<8x32xf32>
    %29 = arith.mulf %27, %28 : vector<8x32xf32>
    %c0_16 = arith.constant 0 : index
    %c0_17 = arith.constant 0 : index
    %30 = vector.load %arg9[%c0_16, %c0_17] : memref<1x32xf32, #tpu.memory_space<vmem>>, vector<1x32xf32>
    %31 = vector.broadcast %30 : vector<1x32xf32> to vector<8x32xf32>
    %32 = arith.addf %29, %31 : vector<8x32xf32>
    %c0_18 = arith.constant 0 : index
    %c0_19 = arith.constant 0 : index
    %33 = vector.load %arg10[%c0_18, %c0_19] : memref<32x96xf32, #tpu.memory_space<vmem>>, vector<32x96xf32>
    %cst_20 = arith.constant dense<0.000000e+00> : vector<8x96xf32>
    %34 = tpu.matmul %32, %33, %cst_20 {dimension_numbers = #tpu.dot_dimension_numbers<[1], [0], [0], [1], [0, 0, 1, 1], [], []>} : vector<8x32xf32>, vector<32x96xf32>, vector<8x96xf32> -> vector<8x96xf32>
    %c0_21 = arith.constant 0 : index
    %c0_22 = arith.constant 0 : index
    %35 = vector.load %arg11[%c0_21, %c0_22] : memref<1x96xf32, #tpu.memory_space<vmem>>, vector<1x96xf32>
    %36 = vector.broadcast %35 : vector<1x96xf32> to vector<8x96xf32>
    %37 = arith.addf %34, %36 : vector<8x96xf32>
    %cst_23 = arith.constant 0.000000e+00 : f32
    %38 = vector.broadcast %cst_23 : f32 to vector<8x96xf32>
    %39 = arith.maximumf %37, %38 : vector<8x96xf32>
    %c0_24 = arith.constant 0 : index
    %c0_25 = arith.constant 0 : index
    %40 = vector.load %arg12[%c0_24, %c0_25] : memref<96x3xf32, #tpu.memory_space<vmem>>, vector<96x3xf32>
    %cst_26 = arith.constant dense<0.000000e+00> : vector<8x3xf32>
    %41 = tpu.matmul %39, %40, %cst_26 {dimension_numbers = #tpu.dot_dimension_numbers<[1], [0], [0], [1], [0, 0, 1, 1], [], []>} : vector<8x96xf32>, vector<96x3xf32>, vector<8x3xf32> -> vector<8x3xf32>
    %c0_27 = arith.constant 0 : index
    %c0_28 = arith.constant 0 : index
    %42 = vector.load %arg13[%c0_27, %c0_28] : memref<1x3xf32, #tpu.memory_space<vmem>>, vector<1x3xf32>
    %43 = vector.broadcast %42 : vector<1x3xf32> to vector<8x3xf32>
    %44 = arith.addf %41, %43 : vector<8x3xf32>
    %45 = vector.broadcast %9 : vector<8x1xf32> to vector<8x3xf32>
    %46 = arith.mulf %44, %45 : vector<8x3xf32>
    %c0_29 = arith.constant 0 : index
    %c0_30 = arith.constant 0 : index
    %c0_31 = arith.constant 0 : index
    %47 = vector.load %arg14[%c0_29, %c0_30, %c0_31] : memref<1x8x32xf32, #tpu.memory_space<vmem>>, vector<1x8x32xf32>
    %48 = vector.shape_cast %47 : vector<1x8x32xf32> to vector<8x32xf32>
    %49 = vector.shape_cast %32 : vector<8x32xf32> to vector<1x8x32xf32>
    tpu.vector_store %arg14[%c0_29, %c0_30, %c0_31], %49 {strides = array<i32>} : memref<1x8x32xf32, #tpu.memory_space<vmem>>, vector<1x8x32xf32>,
    %c0_32 = arith.constant 0 : index
    %c0_33 = arith.constant 0 : index
    %c0_34 = arith.constant 0 : index
    %50 = vector.load %arg15[%c0_32, %c0_33, %c0_34] : memref<1x8x3xf32, #tpu.memory_space<vmem>>, vector<1x8x3xf32>
    %51 = vector.shape_cast %50 : vector<1x8x3xf32> to vector<8x3xf32>
    %52 = vector.shape_cast %46 : vector<8x3xf32> to vector<1x8x3xf32>
    tpu.vector_store %arg15[%c0_32, %c0_33, %c0_34], %52 {strides = array<i32>} : memref<1x8x3xf32, #tpu.memory_space<vmem>>, vector<1x8x3xf32>,
    return
  }
  func.func @transform_0(%arg0: i32, %arg1: i32, %arg2: memref<2xi32, #tpu.memory_space<smem>>) -> (i32, i32, i32) {
    %c0_i32 = arith.constant 0 : i32
    %c0_i32_0 = arith.constant 0 : i32
    return %arg0, %arg1, %c0_i32 : i32, i32, i32
  }
  func.func @transform_1(%arg0: i32, %arg1: i32, %arg2: memref<2xi32, #tpu.memory_space<smem>>) -> (i32, i32, i32) {
    %c0_i32 = arith.constant 0 : i32
    %c0_i32_0 = arith.constant 0 : i32
    %c0_i32_1 = arith.constant 0 : i32
    return %arg0, %c0_i32, %c0_i32_0 : i32, i32, i32
  }
  func.func @transform_2(%arg0: i32, %arg1: i32, %arg2: memref<2xi32, #tpu.memory_space<smem>>) -> (i32, i32) {
    %c0_i32 = arith.constant 0 : i32
    %c0_i32_0 = arith.constant 0 : i32
    %c0_i32_1 = arith.constant 0 : i32
    return %c0_i32, %c0_i32_0 : i32, i32
  }
  func.func @transform_3(%arg0: i32, %arg1: i32, %arg2: memref<2xi32, #tpu.memory_space<smem>>) -> (i32, i32) {
    %c0_i32 = arith.constant 0 : i32
    %c0_i32_0 = arith.constant 0 : i32
    %c0_i32_1 = arith.constant 0 : i32
    return %c0_i32, %c0_i32_0 : i32, i32
  }
  func.func @transform_4(%arg0: i32, %arg1: i32, %arg2: memref<2xi32, #tpu.memory_space<smem>>) -> (i32, i32) {
    %c0_i32 = arith.constant 0 : i32
    %c0_i32_0 = arith.constant 0 : i32
    %c0_i32_1 = arith.constant 0 : i32
    return %c0_i32, %c0_i32_0 : i32, i32
  }
  func.func @transform_5(%arg0: i32, %arg1: i32, %arg2: memref<2xi32, #tpu.memory_space<smem>>) -> (i32, i32) {
    %c0_i32 = arith.constant 0 : i32
    %c0_i32_0 = arith.constant 0 : i32
    %c0_i32_1 = arith.constant 0 : i32
    return %c0_i32, %c0_i32_0 : i32, i32
  }
  func.func @transform_6(%arg0: i32, %arg1: i32, %arg2: memref<2xi32, #tpu.memory_space<smem>>) -> (i32, i32) {
    %c0_i32 = arith.constant 0 : i32
    %c0_i32_0 = arith.constant 0 : i32
    %c0_i32_1 = arith.constant 0 : i32
    return %c0_i32, %c0_i32_0 : i32, i32
  }
  func.func @transform_7(%arg0: i32, %arg1: i32, %arg2: memref<2xi32, #tpu.memory_space<smem>>) -> (i32, i32) {
    %c0_i32 = arith.constant 0 : i32
    %c0_i32_0 = arith.constant 0 : i32
    %c0_i32_1 = arith.constant 0 : i32
    return %c0_i32, %c0_i32_0 : i32, i32
  }
  func.func @transform_8(%arg0: i32, %arg1: i32, %arg2: memref<2xi32, #tpu.memory_space<smem>>) -> (i32, i32) {
    %c0_i32 = arith.constant 0 : i32
    %c0_i32_0 = arith.constant 0 : i32
    %c0_i32_1 = arith.constant 0 : i32
    return %c0_i32, %c0_i32_0 : i32, i32
  }
  func.func @transform_9(%arg0: i32, %arg1: i32, %arg2: memref<2xi32, #tpu.memory_space<smem>>) -> (i32, i32) {
    %c0_i32 = arith.constant 0 : i32
    %c0_i32_0 = arith.constant 0 : i32
    %c0_i32_1 = arith.constant 0 : i32
    return %c0_i32, %c0_i32_0 : i32, i32
  }
  func.func @transform_10(%arg0: i32, %arg1: i32, %arg2: memref<2xi32, #tpu.memory_space<smem>>) -> (i32, i32) {
    %c0_i32 = arith.constant 0 : i32
    %c0_i32_0 = arith.constant 0 : i32
    %c0_i32_1 = arith.constant 0 : i32
    return %c0_i32, %c0_i32_0 : i32, i32
  }
  func.func @transform_11(%arg0: i32, %arg1: i32, %arg2: memref<2xi32, #tpu.memory_space<smem>>) -> (i32, i32, i32) {
    %c0_i32 = arith.constant 0 : i32
    %c0_i32_0 = arith.constant 0 : i32
    return %arg0, %arg1, %c0_i32 : i32, i32, i32
  }
  func.func @transform_12(%arg0: i32, %arg1: i32, %arg2: memref<2xi32, #tpu.memory_space<smem>>) -> (i32, i32, i32) {
    %c0_i32 = arith.constant 0 : i32
    %c0_i32_0 = arith.constant 0 : i32
    return %arg0, %arg1, %c0_i32 : i32, i32, i32
  }
}

module attributes {stable_mosaic.version = 11 : i64} {
  func.func @_decoder_postglow_kernel(%arg0: i32, %arg1: i32, %arg2: memref<2xi32, #tpu.memory_space<smem>>, %arg3: memref<1x16x32xf32, #tpu.memory_space<vmem>>, %arg4: memref<1x1x32xf32, #tpu.memory_space<vmem>>, %arg5: memref<1x1x64xf32, #tpu.memory_space<vmem>>, %arg6: memref<1x16x40xf32, #tpu.memory_space<vmem>>, %arg7: memref<1x16x40xf32, #tpu.memory_space<vmem>>, %arg8: memref<32x32xf32, #tpu.memory_space<vmem>>, %arg9: memref<32x80xf32, #tpu.memory_space<vmem>>, %arg10: memref<32x80xf32, #tpu.memory_space<vmem>>, %arg11: memref<1x80xf32, #tpu.memory_space<vmem>>, %arg12: memref<1x80xf32, #tpu.memory_space<vmem>>, %arg13: memref<40x64xf32, #tpu.memory_space<vmem>>, %arg14: memref<80x64xf32, #tpu.memory_space<vmem>>, %arg15: memref<32x64xf32, #tpu.memory_space<vmem>>, %arg16: memref<64x40xf32, #tpu.memory_space<vmem>>, %arg17: memref<1x40xf32, #tpu.memory_space<vmem>>, %arg18: memref<64x40xf32, #tpu.memory_space<vmem>>, %arg19: memref<1x40xf32, #tpu.memory_space<vmem>>, %arg20: memref<1x16x80xf32, #tpu.memory_space<vmem>>, %arg21: memref<1x16x40xf32, #tpu.memory_space<vmem>>, %arg22: memref<1x16x40xf32, #tpu.memory_space<vmem>>, %arg23: memref<1x1x1xf32, #tpu.memory_space<vmem>>) attributes {dimension_semantics = [#tpu.dimension_semantics<parallel>, #tpu.dimension_semantics<arbitrary>], iteration_bounds = array<i64: 2, 1>, scalar_prefetch = 1 : i64, scratch_operands = 0 : i64, tpu.core_type = #tpu.core_type<tc>, window_params = [{transform_indices = @transform_0, window_bounds = array<i64: 1, 16, 32>}, {transform_indices = @transform_1, window_bounds = array<i64: 1, 1, 32>}, {transform_indices = @transform_2, window_bounds = array<i64: 1, 1, 64>}, {transform_indices = @transform_3, window_bounds = array<i64: 1, 16, 40>}, {transform_indices = @transform_4, window_bounds = array<i64: 1, 16, 40>}, {pipeline_mode = #tpu.pipeline_mode<synchronous>, transform_indices = @transform_5, window_bounds = array<i64: 32, 32>}, {pipeline_mode = #tpu.pipeline_mode<synchronous>, transform_indices = @transform_6, window_bounds = array<i64: 32, 80>}, {pipeline_mode = #tpu.pipeline_mode<synchronous>, transform_indices = @transform_7, window_bounds = array<i64: 32, 80>}, {pipeline_mode = #tpu.pipeline_mode<synchronous>, transform_indices = @transform_8, window_bounds = array<i64: 1, 80>}, {pipeline_mode = #tpu.pipeline_mode<synchronous>, transform_indices = @transform_9, window_bounds = array<i64: 1, 80>}, {pipeline_mode = #tpu.pipeline_mode<synchronous>, transform_indices = @transform_10, window_bounds = array<i64: 40, 64>}, {pipeline_mode = #tpu.pipeline_mode<synchronous>, transform_indices = @transform_11, window_bounds = array<i64: 80, 64>}, {pipeline_mode = #tpu.pipeline_mode<synchronous>, transform_indices = @transform_12, window_bounds = array<i64: 32, 64>}, {pipeline_mode = #tpu.pipeline_mode<synchronous>, transform_indices = @transform_13, window_bounds = array<i64: 64, 40>}, {pipeline_mode = #tpu.pipeline_mode<synchronous>, transform_indices = @transform_14, window_bounds = array<i64: 1, 40>}, {pipeline_mode = #tpu.pipeline_mode<synchronous>, transform_indices = @transform_15, window_bounds = array<i64: 64, 40>}, {pipeline_mode = #tpu.pipeline_mode<synchronous>, transform_indices = @transform_16, window_bounds = array<i64: 1, 40>}, {transform_indices = @transform_17, window_bounds = array<i64: 1, 16, 80>}, {transform_indices = @transform_18, window_bounds = array<i64: 1, 16, 40>}, {transform_indices = @transform_19, window_bounds = array<i64: 1, 16, 40>}, {transform_indices = @transform_20, window_bounds = array<i64: 1, 1, 1>}]} {
    %c0_i32 = arith.constant 0 : i32
    %0 = arith.cmpi eq, %arg1, %c0_i32 : i32
    %1 = arith.extui %0 : i1 to i32
    %c0_i32_0 = arith.constant 0 : i32
    %2 = arith.cmpi ne, %1, %c0_i32_0 : i32
    scf.if %2 {
      %cst_63 = arith.constant 0.000000e+00 : f32
      %94 = vector.broadcast %cst_63 : f32 to vector<1x1xf32>
      %c0_64 = arith.constant 0 : index
      %c0_65 = arith.constant 0 : index
      %c0_66 = arith.constant 0 : index
      %95 = vector.load %arg23[%c0_64, %c0_65, %c0_66] : memref<1x1x1xf32, #tpu.memory_space<vmem>>, vector<1x1x1xf32>
      %96 = vector.shape_cast %95 : vector<1x1x1xf32> to vector<1x1xf32>
      %97 = vector.shape_cast %94 : vector<1x1xf32> to vector<1x1x1xf32>
      tpu.vector_store %arg23[%c0_64, %c0_65, %c0_66], %97 {strides = array<i32>} : memref<1x1x1xf32, #tpu.memory_space<vmem>>, vector<1x1x1xf32>,
    } else {
    }
    %3 = tpu.iota {dimensions = array<i32: 0>} : vector<16x1xi32>
    %c16_i32 = arith.constant 16 : i32
    %4 = arith.muli %arg1, %c16_i32 : i32
    %5 = vector.broadcast %4 : i32 to vector<16x1xi32>
    %6 = arith.addi %3, %5 : vector<16x1xi32>
    %7 = arith.index_cast %arg0 : i32 to index
    %8 = memref.load %arg2[%7] : memref<2xi32, #tpu.memory_space<smem>>
    %9 = vector.broadcast %8 : i32 to vector<16x1xi32>
    %10 = arith.cmpi slt, %6, %9 : vector<16x1xi32>
    %11 = arith.extui %10 : vector<16x1xi1> to vector<16x1xi32>
    %12 = arith.sitofp %11 : vector<16x1xi32> to vector<16x1xf32>
    %c0 = arith.constant 0 : index
    %c0_1 = arith.constant 0 : index
    %c0_2 = arith.constant 0 : index
    %13 = vector.load %arg3[%c0, %c0_1, %c0_2] : memref<1x16x32xf32, #tpu.memory_space<vmem>>, vector<1x16x32xf32>
    %14 = vector.shape_cast %13 : vector<1x16x32xf32> to vector<16x32xf32>
    %15 = vector.broadcast %12 : vector<16x1xf32> to vector<16x32xf32>
    %16 = arith.mulf %14, %15 : vector<16x32xf32>
    %c0_3 = arith.constant 0 : index
    %c0_4 = arith.constant 0 : index
    %17 = vector.load %arg8[%c0_3, %c0_4] : memref<32x32xf32, #tpu.memory_space<vmem>>, vector<32x32xf32>
    %cst = arith.constant dense<0.000000e+00> : vector<16x32xf32>
    %18 = tpu.matmul %16, %17, %cst {dimension_numbers = #tpu.dot_dimension_numbers<[1], [0], [0], [1], [0, 0, 1, 1], [], []>} : vector<16x32xf32>, vector<32x32xf32>, vector<16x32xf32> -> vector<16x32xf32>
    %c0_5 = arith.constant 0 : index
    %c0_6 = arith.constant 0 : index
    %c0_7 = arith.constant 0 : index
    %19 = vector.load %arg4[%c0_5, %c0_6, %c0_7] : memref<1x1x32xf32, #tpu.memory_space<vmem>>, vector<1x1x32xf32>
    %20 = vector.shape_cast %19 : vector<1x1x32xf32> to vector<1x32xf32>
    %21 = vector.broadcast %20 : vector<1x32xf32> to vector<16x32xf32>
    %22 = arith.addf %18, %21 : vector<16x32xf32>
    %cst_8 = arith.constant 0.000000e+00 : f32
    %23 = vector.broadcast %cst_8 : f32 to vector<16x32xf32>
    %24 = arith.maximumf %22, %23 : vector<16x32xf32>
    %c0_9 = arith.constant 0 : index
    %c0_10 = arith.constant 0 : index
    %25 = vector.load %arg9[%c0_9, %c0_10] : memref<32x80xf32, #tpu.memory_space<vmem>>, vector<32x80xf32>
    %cst_11 = arith.constant dense<0.000000e+00> : vector<16x80xf32>
    %26 = tpu.matmul %16, %25, %cst_11 {dimension_numbers = #tpu.dot_dimension_numbers<[1], [0], [0], [1], [0, 0, 1, 1], [], []>} : vector<16x32xf32>, vector<32x80xf32>, vector<16x80xf32> -> vector<16x80xf32>
    %c0_12 = arith.constant 0 : index
    %c0_13 = arith.constant 0 : index
    %27 = vector.load %arg10[%c0_12, %c0_13] : memref<32x80xf32, #tpu.memory_space<vmem>>, vector<32x80xf32>
    %cst_14 = arith.constant dense<0.000000e+00> : vector<16x80xf32>
    %28 = tpu.matmul %24, %27, %cst_14 {dimension_numbers = #tpu.dot_dimension_numbers<[1], [0], [0], [1], [0, 0, 1, 1], [], []>} : vector<16x32xf32>, vector<32x80xf32>, vector<16x80xf32> -> vector<16x80xf32>
    %29 = arith.addf %26, %28 : vector<16x80xf32>
    %c0_15 = arith.constant 0 : index
    %c0_16 = arith.constant 0 : index
    %30 = vector.load %arg11[%c0_15, %c0_16] : memref<1x80xf32, #tpu.memory_space<vmem>>, vector<1x80xf32>
    %31 = vector.broadcast %30 : vector<1x80xf32> to vector<16x80xf32>
    %32 = arith.addf %29, %31 : vector<16x80xf32>
    %33 = vector.broadcast %12 : vector<16x1xf32> to vector<16x80xf32>
    %34 = arith.mulf %32, %33 : vector<16x80xf32>
    %c0_17 = arith.constant 0 : index
    %c0_18 = arith.constant 0 : index
    %35 = vector.load %arg12[%c0_17, %c0_18] : memref<1x80xf32, #tpu.memory_space<vmem>>, vector<1x80xf32>
    %36 = vector.broadcast %35 : vector<1x80xf32> to vector<16x80xf32>
    %37 = arith.addf %34, %36 : vector<16x80xf32>
    %c0_19 = arith.constant 0 : index
    %c0_20 = arith.constant 0 : index
    %c0_21 = arith.constant 0 : index
    %38 = vector.load %arg20[%c0_19, %c0_20, %c0_21] : memref<1x16x80xf32, #tpu.memory_space<vmem>>, vector<1x16x80xf32>
    %39 = vector.shape_cast %38 : vector<1x16x80xf32> to vector<16x80xf32>
    %40 = vector.shape_cast %37 : vector<16x80xf32> to vector<1x16x80xf32>
    tpu.vector_store %arg20[%c0_19, %c0_20, %c0_21], %40 {strides = array<i32>} : memref<1x16x80xf32, #tpu.memory_space<vmem>>, vector<1x16x80xf32>,
    %c0_22 = arith.constant 0 : index
    %c0_23 = arith.constant 0 : index
    %c0_24 = arith.constant 0 : index
    %41 = vector.load %arg6[%c0_22, %c0_23, %c0_24] : memref<1x16x40xf32, #tpu.memory_space<vmem>>, vector<1x16x40xf32>
    %42 = vector.shape_cast %41 : vector<1x16x40xf32> to vector<16x40xf32>
    %c0_25 = arith.constant 0 : index
    %c0_26 = arith.constant 0 : index
    %c0_27 = arith.constant 0 : index
    %43 = vector.load %arg7[%c0_25, %c0_26, %c0_27] : memref<1x16x40xf32, #tpu.memory_space<vmem>>, vector<1x16x40xf32>
    %44 = vector.shape_cast %43 : vector<1x16x40xf32> to vector<16x40xf32>
    %c0_28 = arith.constant 0 : index
    %c0_29 = arith.constant 0 : index
    %45 = vector.load %arg13[%c0_28, %c0_29] : memref<40x64xf32, #tpu.memory_space<vmem>>, vector<40x64xf32>
    %cst_30 = arith.constant dense<0.000000e+00> : vector<16x64xf32>
    %46 = tpu.matmul %42, %45, %cst_30 {dimension_numbers = #tpu.dot_dimension_numbers<[1], [0], [0], [1], [0, 0, 1, 1], [], []>} : vector<16x40xf32>, vector<40x64xf32>, vector<16x64xf32> -> vector<16x64xf32>
    %c0_31 = arith.constant 0 : index
    %c0_32 = arith.constant 0 : index
    %47 = vector.load %arg14[%c0_31, %c0_32] : memref<80x64xf32, #tpu.memory_space<vmem>>, vector<80x64xf32>
    %cst_33 = arith.constant dense<0.000000e+00> : vector<16x64xf32>
    %48 = tpu.matmul %37, %47, %cst_33 {dimension_numbers = #tpu.dot_dimension_numbers<[1], [0], [0], [1], [0, 0, 1, 1], [], []>} : vector<16x80xf32>, vector<80x64xf32>, vector<16x64xf32> -> vector<16x64xf32>
    %49 = arith.addf %46, %48 : vector<16x64xf32>
    %c0_34 = arith.constant 0 : index
    %c0_35 = arith.constant 0 : index
    %50 = vector.load %arg15[%c0_34, %c0_35] : memref<32x64xf32, #tpu.memory_space<vmem>>, vector<32x64xf32>
    %cst_36 = arith.constant dense<0.000000e+00> : vector<16x64xf32>
    %51 = tpu.matmul %16, %50, %cst_36 {dimension_numbers = #tpu.dot_dimension_numbers<[1], [0], [0], [1], [0, 0, 1, 1], [], []>} : vector<16x32xf32>, vector<32x64xf32>, vector<16x64xf32> -> vector<16x64xf32>
    %52 = arith.addf %49, %51 : vector<16x64xf32>
    %c0_37 = arith.constant 0 : index
    %c0_38 = arith.constant 0 : index
    %c0_39 = arith.constant 0 : index
    %53 = vector.load %arg5[%c0_37, %c0_38, %c0_39] : memref<1x1x64xf32, #tpu.memory_space<vmem>>, vector<1x1x64xf32>
    %54 = vector.shape_cast %53 : vector<1x1x64xf32> to vector<1x64xf32>
    %55 = vector.broadcast %54 : vector<1x64xf32> to vector<16x64xf32>
    %56 = arith.addf %52, %55 : vector<16x64xf32>
    %57 = math.tanh %56 : vector<16x64xf32>
    %c0_40 = arith.constant 0 : index
    %c0_41 = arith.constant 0 : index
    %58 = vector.load %arg16[%c0_40, %c0_41] : memref<64x40xf32, #tpu.memory_space<vmem>>, vector<64x40xf32>
    %cst_42 = arith.constant dense<0.000000e+00> : vector<16x40xf32>
    %59 = tpu.matmul %57, %58, %cst_42 {dimension_numbers = #tpu.dot_dimension_numbers<[1], [0], [0], [1], [0, 0, 1, 1], [], []>} : vector<16x64xf32>, vector<64x40xf32>, vector<16x40xf32> -> vector<16x40xf32>
    %c0_43 = arith.constant 0 : index
    %c0_44 = arith.constant 0 : index
    %60 = vector.load %arg17[%c0_43, %c0_44] : memref<1x40xf32, #tpu.memory_space<vmem>>, vector<1x40xf32>
    %61 = vector.broadcast %60 : vector<1x40xf32> to vector<16x40xf32>
    %62 = arith.addf %59, %61 : vector<16x40xf32>
    %c0_45 = arith.constant 0 : index
    %c0_46 = arith.constant 0 : index
    %63 = vector.load %arg18[%c0_45, %c0_46] : memref<64x40xf32, #tpu.memory_space<vmem>>, vector<64x40xf32>
    %cst_47 = arith.constant dense<0.000000e+00> : vector<16x40xf32>
    %64 = tpu.matmul %57, %63, %cst_47 {dimension_numbers = #tpu.dot_dimension_numbers<[1], [0], [0], [1], [0, 0, 1, 1], [], []>} : vector<16x64xf32>, vector<64x40xf32>, vector<16x40xf32> -> vector<16x40xf32>
    %c0_48 = arith.constant 0 : index
    %c0_49 = arith.constant 0 : index
    %65 = vector.load %arg19[%c0_48, %c0_49] : memref<1x40xf32, #tpu.memory_space<vmem>>, vector<1x40xf32>
    %66 = vector.broadcast %65 : vector<1x40xf32> to vector<16x40xf32>
    %67 = arith.addf %64, %66 : vector<16x40xf32>
    %68 = vector.broadcast %12 : vector<16x1xf32> to vector<16x40xf32>
    %69 = arith.mulf %42, %68 : vector<16x40xf32>
    %c0_50 = arith.constant 0 : index
    %c0_51 = arith.constant 0 : index
    %c0_52 = arith.constant 0 : index
    %70 = vector.load %arg21[%c0_50, %c0_51, %c0_52] : memref<1x16x40xf32, #tpu.memory_space<vmem>>, vector<1x16x40xf32>
    %71 = vector.shape_cast %70 : vector<1x16x40xf32> to vector<16x40xf32>
    %72 = vector.shape_cast %69 : vector<16x40xf32> to vector<1x16x40xf32>
    tpu.vector_store %arg21[%c0_50, %c0_51, %c0_52], %72 {strides = array<i32>} : memref<1x16x40xf32, #tpu.memory_space<vmem>>, vector<1x16x40xf32>,
    %73 = math.exp %62 : vector<16x40xf32>
    %74 = arith.mulf %44, %73 : vector<16x40xf32>
    %75 = arith.addf %74, %67 : vector<16x40xf32>
    %76 = vector.broadcast %12 : vector<16x1xf32> to vector<16x40xf32>
    %77 = arith.mulf %75, %76 : vector<16x40xf32>
    %c0_53 = arith.constant 0 : index
    %c0_54 = arith.constant 0 : index
    %c0_55 = arith.constant 0 : index
    %78 = vector.load %arg22[%c0_53, %c0_54, %c0_55] : memref<1x16x40xf32, #tpu.memory_space<vmem>>, vector<1x16x40xf32>
    %79 = vector.shape_cast %78 : vector<1x16x40xf32> to vector<16x40xf32>
    %80 = vector.shape_cast %77 : vector<16x40xf32> to vector<1x16x40xf32>
    tpu.vector_store %arg22[%c0_53, %c0_54, %c0_55], %80 {strides = array<i32>} : memref<1x16x40xf32, #tpu.memory_space<vmem>>, vector<1x16x40xf32>,
    %c0_56 = arith.constant 0 : index
    %c0_57 = arith.constant 0 : index
    %c0_58 = arith.constant 0 : index
    %81 = vector.load %arg23[%c0_56, %c0_57, %c0_58] : memref<1x1x1xf32, #tpu.memory_space<vmem>>, vector<1x1x1xf32>
    %82 = vector.shape_cast %81 : vector<1x1x1xf32> to vector<1x1xf32>
    %83 = vector.broadcast %12 : vector<16x1xf32> to vector<16x40xf32>
    %84 = arith.mulf %62, %83 : vector<16x40xf32>
    %85 = vector.shape_cast %84 : vector<16x40xf32> to vector<1x16x40xf32>
    %cst_59 = arith.constant dense<0.000000e+00> : vector<1xf32>
    %86 = vector.multi_reduction <add>, %85, %cst_59 [1, 2] : vector<1x16x40xf32> to vector<1xf32>
    %87 = vector.shape_cast %86 : vector<1xf32> to vector<1x1x1xf32>
    %88 = vector.extract %87[0, 0, 0] : f32 from vector<1x1x1xf32>
    %89 = vector.broadcast %88 : f32 to vector<1x1xf32>
    %90 = arith.addf %82, %89 : vector<1x1xf32>
    %c0_60 = arith.constant 0 : index
    %c0_61 = arith.constant 0 : index
    %c0_62 = arith.constant 0 : index
    %91 = vector.load %arg23[%c0_60, %c0_61, %c0_62] : memref<1x1x1xf32, #tpu.memory_space<vmem>>, vector<1x1x1xf32>
    %92 = vector.shape_cast %91 : vector<1x1x1xf32> to vector<1x1xf32>
    %93 = vector.shape_cast %90 : vector<1x1xf32> to vector<1x1x1xf32>
    tpu.vector_store %arg23[%c0_60, %c0_61, %c0_62], %93 {strides = array<i32>} : memref<1x1x1xf32, #tpu.memory_space<vmem>>, vector<1x1x1xf32>,
    return
  }
  func.func @transform_0(%arg0: i32, %arg1: i32, %arg2: memref<2xi32, #tpu.memory_space<smem>>) -> (i32, i32, i32) {
    %c0_i32 = arith.constant 0 : i32
    %c0_i32_0 = arith.constant 0 : i32
    return %arg0, %arg1, %c0_i32 : i32, i32, i32
  }
  func.func @transform_1(%arg0: i32, %arg1: i32, %arg2: memref<2xi32, #tpu.memory_space<smem>>) -> (i32, i32, i32) {
    %c0_i32 = arith.constant 0 : i32
    %c0_i32_0 = arith.constant 0 : i32
    %c0_i32_1 = arith.constant 0 : i32
    return %arg0, %c0_i32, %c0_i32_0 : i32, i32, i32
  }
  func.func @transform_2(%arg0: i32, %arg1: i32, %arg2: memref<2xi32, #tpu.memory_space<smem>>) -> (i32, i32, i32) {
    %c0_i32 = arith.constant 0 : i32
    %c0_i32_0 = arith.constant 0 : i32
    %c0_i32_1 = arith.constant 0 : i32
    return %arg0, %c0_i32, %c0_i32_0 : i32, i32, i32
  }
  func.func @transform_3(%arg0: i32, %arg1: i32, %arg2: memref<2xi32, #tpu.memory_space<smem>>) -> (i32, i32, i32) {
    %c0_i32 = arith.constant 0 : i32
    %c0_i32_0 = arith.constant 0 : i32
    return %arg0, %arg1, %c0_i32 : i32, i32, i32
  }
  func.func @transform_4(%arg0: i32, %arg1: i32, %arg2: memref<2xi32, #tpu.memory_space<smem>>) -> (i32, i32, i32) {
    %c0_i32 = arith.constant 0 : i32
    %c0_i32_0 = arith.constant 0 : i32
    return %arg0, %arg1, %c0_i32 : i32, i32, i32
  }
  func.func @transform_5(%arg0: i32, %arg1: i32, %arg2: memref<2xi32, #tpu.memory_space<smem>>) -> (i32, i32) {
    %c0_i32 = arith.constant 0 : i32
    %c0_i32_0 = arith.constant 0 : i32
    %c0_i32_1 = arith.constant 0 : i32
    return %c0_i32, %c0_i32_0 : i32, i32
  }
  func.func @transform_6(%arg0: i32, %arg1: i32, %arg2: memref<2xi32, #tpu.memory_space<smem>>) -> (i32, i32) {
    %c0_i32 = arith.constant 0 : i32
    %c0_i32_0 = arith.constant 0 : i32
    %c0_i32_1 = arith.constant 0 : i32
    return %c0_i32, %c0_i32_0 : i32, i32
  }
  func.func @transform_7(%arg0: i32, %arg1: i32, %arg2: memref<2xi32, #tpu.memory_space<smem>>) -> (i32, i32) {
    %c0_i32 = arith.constant 0 : i32
    %c0_i32_0 = arith.constant 0 : i32
    %c0_i32_1 = arith.constant 0 : i32
    return %c0_i32, %c0_i32_0 : i32, i32
  }
  func.func @transform_8(%arg0: i32, %arg1: i32, %arg2: memref<2xi32, #tpu.memory_space<smem>>) -> (i32, i32) {
    %c0_i32 = arith.constant 0 : i32
    %c0_i32_0 = arith.constant 0 : i32
    %c0_i32_1 = arith.constant 0 : i32
    return %c0_i32, %c0_i32_0 : i32, i32
  }
  func.func @transform_9(%arg0: i32, %arg1: i32, %arg2: memref<2xi32, #tpu.memory_space<smem>>) -> (i32, i32) {
    %c0_i32 = arith.constant 0 : i32
    %c0_i32_0 = arith.constant 0 : i32
    %c0_i32_1 = arith.constant 0 : i32
    return %c0_i32, %c0_i32_0 : i32, i32
  }
  func.func @transform_10(%arg0: i32, %arg1: i32, %arg2: memref<2xi32, #tpu.memory_space<smem>>) -> (i32, i32) {
    %c0_i32 = arith.constant 0 : i32
    %c0_i32_0 = arith.constant 0 : i32
    %c0_i32_1 = arith.constant 0 : i32
    return %c0_i32, %c0_i32_0 : i32, i32
  }
  func.func @transform_11(%arg0: i32, %arg1: i32, %arg2: memref<2xi32, #tpu.memory_space<smem>>) -> (i32, i32) {
    %c0_i32 = arith.constant 0 : i32
    %c0_i32_0 = arith.constant 0 : i32
    %c0_i32_1 = arith.constant 0 : i32
    return %c0_i32, %c0_i32_0 : i32, i32
  }
  func.func @transform_12(%arg0: i32, %arg1: i32, %arg2: memref<2xi32, #tpu.memory_space<smem>>) -> (i32, i32) {
    %c0_i32 = arith.constant 0 : i32
    %c0_i32_0 = arith.constant 0 : i32
    %c0_i32_1 = arith.constant 0 : i32
    return %c0_i32, %c0_i32_0 : i32, i32
  }
  func.func @transform_13(%arg0: i32, %arg1: i32, %arg2: memref<2xi32, #tpu.memory_space<smem>>) -> (i32, i32) {
    %c0_i32 = arith.constant 0 : i32
    %c0_i32_0 = arith.constant 0 : i32
    %c0_i32_1 = arith.constant 0 : i32
    return %c0_i32, %c0_i32_0 : i32, i32
  }
  func.func @transform_14(%arg0: i32, %arg1: i32, %arg2: memref<2xi32, #tpu.memory_space<smem>>) -> (i32, i32) {
    %c0_i32 = arith.constant 0 : i32
    %c0_i32_0 = arith.constant 0 : i32
    %c0_i32_1 = arith.constant 0 : i32
    return %c0_i32, %c0_i32_0 : i32, i32
  }
  func.func @transform_15(%arg0: i32, %arg1: i32, %arg2: memref<2xi32, #tpu.memory_space<smem>>) -> (i32, i32) {
    %c0_i32 = arith.constant 0 : i32
    %c0_i32_0 = arith.constant 0 : i32
    %c0_i32_1 = arith.constant 0 : i32
    return %c0_i32, %c0_i32_0 : i32, i32
  }
  func.func @transform_16(%arg0: i32, %arg1: i32, %arg2: memref<2xi32, #tpu.memory_space<smem>>) -> (i32, i32) {
    %c0_i32 = arith.constant 0 : i32
    %c0_i32_0 = arith.constant 0 : i32
    %c0_i32_1 = arith.constant 0 : i32
    return %c0_i32, %c0_i32_0 : i32, i32
  }
  func.func @transform_17(%arg0: i32, %arg1: i32, %arg2: memref<2xi32, #tpu.memory_space<smem>>) -> (i32, i32, i32) {
    %c0_i32 = arith.constant 0 : i32
    %c0_i32_0 = arith.constant 0 : i32
    return %arg0, %arg1, %c0_i32 : i32, i32, i32
  }
  func.func @transform_18(%arg0: i32, %arg1: i32, %arg2: memref<2xi32, #tpu.memory_space<smem>>) -> (i32, i32, i32) {
    %c0_i32 = arith.constant 0 : i32
    %c0_i32_0 = arith.constant 0 : i32
    return %arg0, %arg1, %c0_i32 : i32, i32, i32
  }
  func.func @transform_19(%arg0: i32, %arg1: i32, %arg2: memref<2xi32, #tpu.memory_space<smem>>) -> (i32, i32, i32) {
    %c0_i32 = arith.constant 0 : i32
    %c0_i32_0 = arith.constant 0 : i32
    return %arg0, %arg1, %c0_i32 : i32, i32, i32
  }
  func.func @transform_20(%arg0: i32, %arg1: i32, %arg2: memref<2xi32, #tpu.memory_space<smem>>) -> (i32, i32, i32) {
    %c0_i32 = arith.constant 0 : i32
    %c0_i32_0 = arith.constant 0 : i32
    %c0_i32_1 = arith.constant 0 : i32
    return %arg0, %c0_i32, %c0_i32_0 : i32, i32, i32
  }
}

</mosaic_0001>

<llo_original>
// kernel: custom-call.4
$region0: #{custom-call.4}
  %s0 = inlined_call_operand.vmem [shape: u32[2,16], index: 0, kind: output, shape index: {}]

// kernel: squeeze.7
$region0: #{squeeze.7}
  %s0 = inlined_call_operand.vmem [shape: s32[32], index: 0, kind: input, shape index: {}]
  %s1 = inlined_call_operand.vmem [shape: s32[2,16], index: 1, kind: output, shape index: {}]
  $region1: #{squeeze.7} parent=0
    #allocation0 [shape = 'u8[4096]{0}', space=vmem, size = 0x1000, scoped, tag = 'scoped mem for output reshape']
    #allocation1 [shape = 'u8[4096]{0}', space=vmem, size = 0x1000, scoped, tag = 'scoped mem for input reshape']
    %s3 = sshll.u32 1, 1
    %s4 = ssub.s32 %s3, 1
    %v5 = vld [vmem:[%s0] sm:%s4]
    %6 = vst [vmem:[#allocation1] sm:%s4] %v5
    %v7 = vld [vmem:[#allocation1] sm:$0x1]
    %vm8 = vcmask 130048
    %9 = vst.msk [vmem:[#allocation0] sm:$0x1] %vm8, %v7
    %v10 = vld [vmem:[#allocation1] sm:$0x1]
    %11 = vrot.lane.b32.xlu0 %v10, 112
    %v12 = vpop.permute.xlu0 %11
    %vm13 = vcmask 130048
    %s14 = scalar_lea.vmem [#allocation0], 1
    %15 = vst.msk [vmem:[%s14] sm:$0x1] %vm13, %v12
    %s17 = sshll.u32 1, 2
    %s18 = ssub.s32 %s17, 1
    %v20 = vld [vmem:[#allocation0] sm:%s18]
    %s21 = sshll.u32 1, 2
    %s22 = ssub.s32 %s21, 1
    %23 = vst [vmem:[%s1] sm:%s22] %v20

// kernel: stylespeech_forward.4
$region0: #{stylespeech_forward.4}
  #allocation0 [shape = 'u32[]', space=smem, size = 0x4, offset = 0x4, fixed_abs, tag = 'smem constant byte address 0x4 - core index']
  #allocation1 [shape = 'u32[144,128]{1,0:T(1,128)}', space=vmem, size = 0x12000, scoped, tag = 'internal scratch']
  #allocation2 [shape = 's32[1]{0}', space=sflag, size = 0x4, scoped, tag = 'scoped memory for stylespeech_forward.4']
  #allocation3 [shape = 'u8[512]{0}', space=smem, size = 0x200, scoped, tag = 'prefetched SMEM operand 0']
  %s0 = inlined_call_operand.vmem [shape: s32[2], index: 0, kind: input, shape index: {}]
  %s1 = inlined_call_operand.vmem [shape: f32[2,8,32], index: 1, kind: input, shape index: {}]
  %s2 = inlined_call_operand.vmem [shape: f32[2,1,32], index: 2, kind: input, shape index: {}]
  %s3 = inlined_call_operand.vmem [shape: f32[32,32], index: 3, kind: input, shape index: {}]
  %s4 = inlined_call_operand.vmem [shape: f32[32,32], index: 4, kind: input, shape index: {}]
  %s5 = inlined_call_operand.vmem [shape: f32[32,32], index: 5, kind: input, shape index: {}]
  %s6 = inlined_call_operand.vmem [shape: f32[1,32], index: 6, kind: input, shape index: {}]
  %s7 = inlined_call_operand.vmem [shape: f32[1,32], index: 7, kind: input, shape index: {}]
  %s8 = inlined_call_operand.vmem [shape: f32[32,96], index: 8, kind: input, shape index: {}]
  %s9 = inlined_call_operand.vmem [shape: f32[1,96], index: 9, kind: input, shape index: {}]
  %s10 = inlined_call_operand.vmem [shape: f32[96,3], index: 10, kind: input, shape index: {}]
  %s11 = inlined_call_operand.vmem [shape: f32[1,3], index: 11, kind: input, shape index: {}]
  %s12 = inlined_call_operand.vmem [shape: f32[2,8,32], index: 12, kind: output, shape index: {0}]
  %s13 = inlined_call_operand.vmem [shape: f32[2,8,3], index: 13, kind: output, shape index: {1}]
  %14 = xla_tuple %s12, %s13
  %s15 = sld [smem:[#allocation0]]
  $region85: #{stylespeech_forward.4} parent=0
    _
  %s17 = ssub.s32 1, %s15
  %s18 = scalar_select 0, %s17, %s15
  %s19 = sshll.u32 %s0, 4
  %s20 = int_to_ptr.vmem [resolvable:$true] %s19
  %22 = dma.vmem_to_smem %s20, 16, [#allocation3], [#allocation2]
  %23 = dma.done [#allocation2], 16
  %24 = sfence
  loop: start=0, step=1, limit=4
  $region2: #{stylespeech_forward.4} parent=0 // loop_pre_header
    _
  $region3: #{stylespeech_forward.4} parent=0 // loop_header
    %s26 = sphi 0, %s30
    %p27 = scmp.ge.s32.totalorder %s26, 4
    %s33 = sphi 0, %s45
    %s34 = sphi 0, %s41
    %s35 = sphi 0, %s33
    %s36 = sphi 0, %s34
    %s37 = sphi 0, %s35
    %s38 = sphi 0, %s36
    %s50 = sphi 0, %s52
    %s53 = sphi 0, %s50
    %s54 = sphi 0, %s53
    %s70 = sphi 0, %s54
    %s76 = sphi 0, %s78
    %s79 = sphi 0, %s76
    %s80 = sphi 0, %s79
    %s96 = sphi 0, %s80
    %s100 = sphi 0, %s100
    %s102 = sphi 0, %s100
    %s103 = sphi 0, %s102
    %s117 = sphi 0, %s103
    %s121 = sphi 0, %s121
    %s123 = sphi 0, %s121
    %s124 = sphi 0, %s123
    %s138 = sphi 0, %s124
    %s142 = sphi 0, %s142
    %s144 = sphi 0, %s142
    %s145 = sphi 0, %s144
    %s159 = sphi 0, %s145
    %s163 = sphi 0, %s163
    %s165 = sphi 0, %s163
    %s166 = sphi 0, %s165
    %s180 = sphi 0, %s166
    %s184 = sphi 0, %s184
    %s186 = sphi 0, %s184
    %s187 = sphi 0, %s186
    %s201 = sphi 0, %s187
    %s205 = sphi 0, %s205
    %s207 = sphi 0, %s205
    %s208 = sphi 0, %s207
    %s222 = sphi 0, %s208
    %s226 = sphi 0, %s226
    %s228 = sphi 0, %s226
    %s229 = sphi 0, %s228
    %s243 = sphi 0, %s229
    %s247 = sphi 0, %s247
    %s249 = sphi 0, %s247
    %s250 = sphi 0, %s249
    %s264 = sphi 0, %s250
    %s268 = sphi 0, %s268
    %s270 = sphi 0, %s268
    %s271 = sphi 0, %s270
    %s285 = sphi 0, %s271
    %s293 = sphi 0, %s295
    %s296 = sphi 0, %s293
    %s297 = sphi 0, %s296
    %s313 = sphi 0, %s297
    %s321 = sphi 0, %s323
    %s324 = sphi 0, %s321
    %s325 = sphi 0, %s324
    %s341 = sphi 0, %s325
  $region4: #{stylespeech_forward.4} parent=0 // loop_header_branch
    %29 = sbr.rel (%p27) target = $region8
  $region5: #{stylespeech_forward.4} parent=0 // loop_body
    %s31 = ssub.s32 %s26, 1
    %s32 = ssub.s32 %s26, 2
    %s39 = sadd.s32 1, %s34
    %p40 = scmp.ge.s32.totalorder %s39, 1
    %s41 = scalar_select %p40, 0, %s39
    %s42 = sadd.s32 1, %s33
    %s43 = scalar_select %p40, %s42, %s33
    %p44 = scmp.ge.s32.totalorder %s43, 2
    %s45 = scalar_select %p44, 0, %s43
    %s46 = ssub.s32 %s33, %s45
    %s47 = ssub.s32 %s34, %s41
    %s48 = sor.u32 %s46, %s47
    %p49 = scmp.eq.s32.totalorder %s48, 0
    %s51 = sadd.s32 %s50, 1
    %s52 = scalar_select %p49, %s50, %s51
    %p55 = pneg %p49
    %p56 = scmp.eq.s32.totalorder %s26, 1
    %p57 = por %p55, %p56
    %p58 = scmp.ne.s32.totalorder %s50, %s53
    %p59 = scmp.eq.s32.totalorder %s26, 0
    %p60 = por %p58, %p59
    %p61 = scmp.ne.s32.totalorder %s50, %s53
    %p62 = scmp.eq.s32.totalorder %s31, 1
    %p63 = por %p61, %p62
    %p64 = scmp.ne.s32.totalorder %s53, %s54
    %p65 = scmp.eq.s32.totalorder %s31, 0
    %p66 = por %p64, %p65
    %p67 = scmp.ne.s32.totalorder %s53, %s54
    %p68 = scmp.eq.s32.totalorder %s32, 1
    %p69 = por %p67, %p68
    %p71 = scmp.ne.s32.totalorder %s54, %s70
    %p72 = scmp.eq.s32.totalorder %s32, 0
    %p73 = por %p71, %p72
    %s74 = ssub.s32 %s33, %s45
    %p75 = scmp.eq.s32.totalorder %s74, 0
    %s77 = sadd.s32 %s76, 1
    %s78 = scalar_select %p75, %s76, %s77
    %p81 = pneg %p75
    %p82 = scmp.eq.s32.totalorder %s26, 1
    %p83 = por %p81, %p82
    %p84 = scmp.ne.s32.totalorder %s76, %s79
    %p85 = scmp.eq.s32.totalorder %s26, 0
    %p86 = por %p84, %p85
    %p87 = scmp.ne.s32.totalorder %s76, %s79
    %p88 = scmp.eq.s32.totalorder %s31, 1
    %p89 = por %p87, %p88
    %p90 = scmp.ne.s32.totalorder %s79, %s80
    %p91 = scmp.eq.s32.totalorder %s31, 0
    %p92 = por %p90, %p91
    %p93 = scmp.ne.s32.totalorder %s79, %s80
    %p94 = scmp.eq.s32.totalorder %s32, 1
    %p95 = por %p93, %p94
    %p97 = scmp.ne.s32.totalorder %s80, %s96
    %p98 = scmp.eq.s32.totalorder %s32, 0
    %p99 = por %p97, %p98
    %s101 = sadd.s32 %s100, 1
    %p104 = scmp.eq.s32.totalorder %s26, 1
    %p105 = scmp.ne.s32.totalorder %s100, %s102
    %p106 = scmp.eq.s32.totalorder %s26, 0
    %p107 = por %p105, %p106
    %p108 = scmp.ne.s32.totalorder %s100, %s102
    %p109 = scmp.eq.s32.totalorder %s31, 1
    %p110 = por %p108, %p109
    %p111 = scmp.ne.s32.totalorder %s102, %s103
    %p112 = scmp.eq.s32.totalorder %s31, 0
    %p113 = por %p111, %p112
    %p114 = scmp.ne.s32.totalorder %s102, %s103
    %p115 = scmp.eq.s32.totalorder %s32, 1
    %p116 = por %p114, %p115
    %p118 = scmp.ne.s32.totalorder %s103, %s117
    %p119 = scmp.eq.s32.totalorder %s32, 0
    %p120 = por %p118, %p119
    %s122 = sadd.s32 %s121, 1
    %p125 = scmp.eq.s32.totalorder %s26, 1
    %p126 = scmp.ne.s32.totalorder %s121, %s123
    %p127 = scmp.eq.s32.totalorder %s26, 0
    %p128 = por %p126, %p127
    %p129 = scmp.ne.s32.totalorder %s121, %s123
    %p130 = scmp.eq.s32.totalorder %s31, 1
    %p131 = por %p129, %p130
    %p132 = scmp.ne.s32.totalorder %s123, %s124
    %p133 = scmp.eq.s32.totalorder %s31, 0
    %p134 = por %p132, %p133
    %p135 = scmp.ne.s32.totalorder %s123, %s124
    %p136 = scmp.eq.s32.totalorder %s32, 1
    %p137 = por %p135, %p136
    %p139 = scmp.ne.s32.totalorder %s124, %s138
    %p140 = scmp.eq.s32.totalorder %s32, 0
    %p141 = por %p139, %p140
    %s143 = sadd.s32 %s142, 1
    %p146 = scmp.eq.s32.totalorder %s26, 1
    %p147 = scmp.ne.s32.totalorder %s142, %s144
    %p148 = scmp.eq.s32.totalorder %s26, 0
    %p149 = por %p147, %p148
    %p150 = scmp.ne.s32.totalorder %s142, %s144
    %p151 = scmp.eq.s32.totalorder %s31, 1
    %p152 = por %p150, %p151
    %p153 = scmp.ne.s32.totalorder %s144, %s145
    %p154 = scmp.eq.s32.totalorder %s31, 0
    %p155 = por %p153, %p154
    %p156 = scmp.ne.s32.totalorder %s144, %s145
    %p157 = scmp.eq.s32.totalorder %s32, 1
    %p158 = por %p156, %p157
    %p160 = scmp.ne.s32.totalorder %s145, %s159
    %p161 = scmp.eq.s32.totalorder %s32, 0
    %p162 = por %p160, %p161
    %s164 = sadd.s32 %s163, 1
    %p167 = scmp.eq.s32.totalorder %s26, 1
    %p168 = scmp.ne.s32.totalorder %s163, %s165
    %p169 = scmp.eq.s32.totalorder %s26, 0
    %p170 = por %p168, %p169
    %p171 = scmp.ne.s32.totalorder %s163, %s165
    %p172 = scmp.eq.s32.totalorder %s31, 1
    %p173 = por %p171, %p172
    %p174 = scmp.ne.s32.totalorder %s165, %s166
    %p175 = scmp.eq.s32.totalorder %s31, 0
    %p176 = por %p174, %p175
    %p177 = scmp.ne.s32.totalorder %s165, %s166
    %p178 = scmp.eq.s32.totalorder %s32, 1
    %p179 = por %p177, %p178
    %p181 = scmp.ne.s32.totalorder %s166, %s180
    %p182 = scmp.eq.s32.totalorder %s32, 0
    %p183 = por %p181, %p182
    %s185 = sadd.s32 %s184, 1
    %p188 = scmp.eq.s32.totalorder %s26, 1
    %p189 = scmp.ne.s32.totalorder %s184, %s186
    %p190 = scmp.eq.s32.totalorder %s26, 0
    %p191 = por %p189, %p190
    %p192 = scmp.ne.s32.totalorder %s184, %s186
    %p193 = scmp.eq.s32.totalorder %s31, 1
    %p194 = por %p192, %p193
    %p195 = scmp.ne.s32.totalorder %s186, %s187
    %p196 = scmp.eq.s32.totalorder %s31, 0
    %p197 = por %p195, %p196
    %p198 = scmp.ne.s32.totalorder %s186, %s187
    %p199 = scmp.eq.s32.totalorder %s32, 1
    %p200 = por %p198, %p199
    %p202 = scmp.ne.s32.totalorder %s187, %s201
    %p203 = scmp.eq.s32.totalorder %s32, 0
    %p204 = por %p202, %p203
    %s206 = sadd.s32 %s205, 1
    %p209 = scmp.eq.s32.totalorder %s26, 1
    %p210 = scmp.ne.s32.totalorder %s205, %s207
    %p211 = scmp.eq.s32.totalorder %s26, 0
    %p212 = por %p210, %p211
    %p213 = scmp.ne.s32.totalorder %s205, %s207
    %p214 = scmp.eq.s32.totalorder %s31, 1
    %p215 = por %p213, %p214
    %p216 = scmp.ne.s32.totalorder %s207, %s208
    %p217 = scmp.eq.s32.totalorder %s31, 0
    %p218 = por %p216, %p217
    %p219 = scmp.ne.s32.totalorder %s207, %s208
    %p220 = scmp.eq.s32.totalorder %s32, 1
    %p221 = por %p219, %p220
    %p223 = scmp.ne.s32.totalorder %s208, %s222
    %p224 = scmp.eq.s32.totalorder %s32, 0
    %p225 = por %p223, %p224
    %s227 = sadd.s32 %s226, 1
    %p230 = scmp.eq.s32.totalorder %s26, 1
    %p231 = scmp.ne.s32.totalorder %s226, %s228
    %p232 = scmp.eq.s32.totalorder %s26, 0
    %p233 = por %p231, %p232
    %p234 = scmp.ne.s32.totalorder %s226, %s228
    %p235 = scmp.eq.s32.totalorder %s31, 1
    %p236 = por %p234, %p235
    %p237 = scmp.ne.s32.totalorder %s228, %s229
    %p238 = scmp.eq.s32.totalorder %s31, 0
    %p239 = por %p237, %p238
    %p240 = scmp.ne.s32.totalorder %s228, %s229
    %p241 = scmp.eq.s32.totalorder %s32, 1
    %p242 = por %p240, %p241
    %p244 = scmp.ne.s32.totalorder %s229, %s243
    %p245 = scmp.eq.s32.totalorder %s32, 0
    %p246 = por %p244, %p245
    %s248 = sadd.s32 %s247, 1
    %p251 = scmp.eq.s32.totalorder %s26, 1
    %p252 = scmp.ne.s32.totalorder %s247, %s249
    %p253 = scmp.eq.s32.totalorder %s26, 0
    %p254 = por %p252, %p253
    %p255 = scmp.ne.s32.totalorder %s247, %s249
    %p256 = scmp.eq.s32.totalorder %s31, 1
    %p257 = por %p255, %p256
    %p258 = scmp.ne.s32.totalorder %s249, %s250
    %p259 = scmp.eq.s32.totalorder %s31, 0
    %p260 = por %p258, %p259
    %p261 = scmp.ne.s32.totalorder %s249, %s250
    %p262 = scmp.eq.s32.totalorder %s32, 1
    %p263 = por %p261, %p262
    %p265 = scmp.ne.s32.totalorder %s250, %s264
    %p266 = scmp.eq.s32.totalorder %s32, 0
    %p267 = por %p265, %p266
    %s269 = sadd.s32 %s268, 1
    %p272 = scmp.eq.s32.totalorder %s26, 1
    %p273 = scmp.ne.s32.totalorder %s268, %s270
    %p274 = scmp.eq.s32.totalorder %s26, 0
    %p275 = por %p273, %p274
    %p276 = scmp.ne.s32.totalorder %s268, %s270
    %p277 = scmp.eq.s32.totalorder %s31, 1
    %p278 = por %p276, %p277
    %p279 = scmp.ne.s32.totalorder %s270, %s271
    %p280 = scmp.eq.s32.totalorder %s31, 0
    %p281 = por %p279, %p280
    %p282 = scmp.ne.s32.totalorder %s270, %s271
    %p283 = scmp.eq.s32.totalorder %s32, 1
    %p284 = por %p282, %p283
    %p286 = scmp.ne.s32.totalorder %s271, %s285
    %p287 = scmp.eq.s32.totalorder %s32, 0
    %p288 = por %p286, %p287
    %s289 = ssub.s32 %s33, %s45
    %s290 = ssub.s32 %s34, %s41
    %s291 = sor.u32 %s289, %s290
    %p292 = scmp.eq.s32.totalorder %s291, 0
    %s294 = sadd.s32 %s293, 1
    %s295 = scalar_select %p292, %s293, %s294
    %p298 = pneg %p292
    %p299 = scmp.eq.s32.totalorder %s26, 1
    %p300 = por %p298, %p299
    %p301 = scmp.ne.s32.totalorder %s293, %s296
    %p302 = scmp.eq.s32.totalorder %s26, 0
    %p303 = por %p301, %p302
    %p304 = scmp.ne.s32.totalorder %s293, %s296
    %p305 = scmp.eq.s32.totalorder %s31, 1
    %p306 = por %p304, %p305
    %p307 = scmp.ne.s32.totalorder %s296, %s297
    %p308 = scmp.eq.s32.totalorder %s31, 0
    %p309 = por %p307, %p308
    %p310 = scmp.ne.s32.totalorder %s296, %s297
    %p311 = scmp.eq.s32.totalorder %s32, 1
    %p312 = por %p310, %p311
    %p314 = scmp.ne.s32.totalorder %s297, %s313
    %p315 = scmp.eq.s32.totalorder %s32, 0
    %p316 = por %p314, %p315
    %s317 = ssub.s32 %s33, %s45
    %s318 = ssub.s32 %s34, %s41
    %s319 = sor.u32 %s317, %s318
    %p320 = scmp.eq.s32.totalorder %s319, 0
    %s322 = sadd.s32 %s321, 1
    %s323 = scalar_select %p320, %s321, %s322
    %p326 = pneg %p320
    %p327 = scmp.eq.s32.totalorder %s26, 1
    %p328 = por %p326, %p327
    %p329 = scmp.ne.s32.totalorder %s321, %s324
    %p330 = scmp.eq.s32.totalorder %s26, 0
    %p331 = por %p329, %p330
    %p332 = scmp.ne.s32.totalorder %s321, %s324
    %p333 = scmp.eq.s32.totalorder %s31, 1
    %p334 = por %p332, %p333
    %p335 = scmp.ne.s32.totalorder %s324, %s325
    %p336 = scmp.eq.s32.totalorder %s31, 0
    %p337 = por %p335, %p336
    %p338 = scmp.ne.s32.totalorder %s324, %s325
    %p339 = scmp.eq.s32.totalorder %s32, 1
    %p340 = por %p338, %p339
    %p342 = scmp.ne.s32.totalorder %s325, %s341
    %p343 = scmp.eq.s32.totalorder %s32, 0
    %p344 = por %p342, %p343
    %p345 = scmp.le.s32.totalorder 1, %s26
    %p346 = scmp.lt.s32.totalorder %s26, 3
    %p347 = pnand %p345, %p346
    %p348 = pneg %p347
    // Predicated region
    $region9: #{stylespeech_forward.4} parent=5 // pred_check
      _
    $region10: #{stylespeech_forward.4} parent=5 // pred_check_branch
      %350 = sbr.rel (%p347) target = $region12
    $region11: #{stylespeech_forward.4} parent=5 // pred_region
      %s351 = ssub.s32 %s26, 1
      // Predicated region
      $region13: #{stylespeech_forward.4} parent=11 // pred_check
        %p352 = pneg %p113
      $region14: #{stylespeech_forward.4} parent=11 // pred_check_branch
        %354 = sbr.rel (%p352) target = $region16
      $region15: #{stylespeech_forward.4} parent=11 // pred_region
        _
      $region16: #{stylespeech_forward.4} parent=11 // pred_fallthru
        _
      // Predicated region
      $region17: #{stylespeech_forward.4} parent=11 // pred_check
        %p355 = pneg %p134
      $region18: #{stylespeech_forward.4} parent=11 // pred_check_branch
        %357 = sbr.rel (%p355) target = $region20
      $region19: #{stylespeech_forward.4} parent=11 // pred_region
        _
      $region20: #{stylespeech_forward.4} parent=11 // pred_fallthru
        _
      // Predicated region
      $region21: #{stylespeech_forward.4} parent=11 // pred_check
        %p358 = pneg %p155
      $region22: #{stylespeech_forward.4} parent=11 // pred_check_branch
        %360 = sbr.rel (%p358) target = $region24
      $region23: #{stylespeech_forward.4} parent=11 // pred_region
        _
      $region24: #{stylespeech_forward.4} parent=11 // pred_fallthru
        _
      // Predicated region
      $region25: #{stylespeech_forward.4} parent=11 // pred_check
        %p361 = pneg %p176
      $region26: #{stylespeech_forward.4} parent=11 // pred_check_branch
        %363 = sbr.rel (%p361) target = $region28
      $region27: #{stylespeech_forward.4} parent=11 // pred_region
        _
      $region28: #{stylespeech_forward.4} parent=11 // pred_fallthru
        _
      // Predicated region
      $region29: #{stylespeech_forward.4} parent=11 // pred_check
        %p364 = pneg %p197
      $region30: #{stylespeech_forward.4} parent=11 // pred_check_branch
        %366 = sbr.rel (%p364) target = $region32
      $region31: #{stylespeech_forward.4} parent=11 // pred_region
        _
      $region32: #{stylespeech_forward.4} parent=11 // pred_fallthru
        _
      // Predicated region
      $region33: #{stylespeech_forward.4} parent=11 // pred_check
        %p367 = pneg %p218
      $region34: #{stylespeech_forward.4} parent=11 // pred_check_branch
        %369 = sbr.rel (%p367) target = $region36
      $region35: #{stylespeech_forward.4} parent=11 // pred_region
        _
      $region36: #{stylespeech_forward.4} parent=11 // pred_fallthru
        _
      // Predicated region
      $region37: #{stylespeech_forward.4} parent=11 // pred_check
        %p370 = pneg %p239
      $region38: #{stylespeech_forward.4} parent=11 // pred_check_branch
        %372 = sbr.rel (%p370) target = $region40
      $region39: #{stylespeech_forward.4} parent=11 // pred_region
        _
      $region40: #{stylespeech_forward.4} parent=11 // pred_fallthru
        _
      // Predicated region
      $region41: #{stylespeech_forward.4} parent=11 // pred_check
        %p373 = pneg %p260
      $region42: #{stylespeech_forward.4} parent=11 // pred_check_branch
        %375 = sbr.rel (%p373) target = $region44
      $region43: #{stylespeech_forward.4} parent=11 // pred_region
        _
      $region44: #{stylespeech_forward.4} parent=11 // pred_fallthru
        _
      // Predicated region
      $region45: #{stylespeech_forward.4} parent=11 // pred_check
        %p376 = pneg %p281
      $region46: #{stylespeech_forward.4} parent=11 // pred_check_branch
        %378 = sbr.rel (%p376) target = $region48
      $region47: #{stylespeech_forward.4} parent=11 // pred_region
        _
      $region48: #{stylespeech_forward.4} parent=11 // pred_fallthru
        _
    $region12: #{stylespeech_forward.4} parent=5 // pred_fallthru
      _
    %p379 = scmp.lt.s32.totalorder %s26, 2
    // Predicated region
    $region49: #{stylespeech_forward.4} parent=5 // pred_check
      %p380 = pneg %p379
    $region50: #{stylespeech_forward.4} parent=5 // pred_check_branch
      %382 = sbr.rel (%p380) target = $region52
    $region51: #{stylespeech_forward.4} parent=5 // pred_region
      // Predicated region
      $region53: #{stylespeech_forward.4} parent=51 // pred_check
        %p383 = pneg %p60
      $region54: #{stylespeech_forward.4} parent=51 // pred_check_branch
        %385 = sbr.rel (%p383) target = $region56
      $region55: #{stylespeech_forward.4} parent=51 // pred_region
        %p386 = scmp.lt.s32.totalorder %s33, 1
        %s387 = scalar_select %p386, %s33, 1
        %p388 = scmp.lt.s32.totalorder %s34, 0
        %s389 = scalar_select %p388, %s34, 0
        %s390 = sadd.s32 %s389, %s387
        %s391 = smul.addr %s390, 8
        %s392 = scalar_lea.vmem %s1, %s391
      $region56: #{stylespeech_forward.4} parent=51 // pred_fallthru
        _
      // Predicated region
      $region57: #{stylespeech_forward.4} parent=51 // pred_check
        %p393 = pneg %p86
      $region58: #{stylespeech_forward.4} parent=51 // pred_check_branch
        %395 = sbr.rel (%p393) target = $region60
      $region59: #{stylespeech_forward.4} parent=51 // pred_region
        %p396 = scmp.lt.s32.totalorder %s33, 1
        %s397 = scalar_select %p396, %s33, 1
        %s398 = scalar_lea.vmem %s2, %s397
      $region60: #{stylespeech_forward.4} parent=51 // pred_fallthru
        _
    $region52: #{stylespeech_forward.4} parent=5 // pred_fallthru
      _
    %p399 = scmp.le.s32.totalorder 1, %s26
    %p400 = scmp.lt.s32.totalorder %s26, 3
    %p401 = pnand %p399, %p400
    %p402 = pneg %p401
    // Predicated region
    $region61: #{stylespeech_forward.4} parent=5 // pred_check
      _
    $region62: #{stylespeech_forward.4} parent=5 // pred_check_branch
      %404 = sbr.rel (%p401) target = $region64
    $region63: #{stylespeech_forward.4} parent=5 // pred_region
      %s405 = ssub.s32 %s26, 1
      %p406 = scmp.lt.s32.totalorder %s35, 1
      %s407 = scalar_select %p406, %s35, 1
      %p408 = scmp.lt.s32.totalorder %s36, 0
      %s409 = scalar_select %p408, %s36, 0
      %s410 = sadd.s32 %s409, %s407
      %s411 = smul.addr %s410, 8
      %s412 = scalar_lea.vmem %s1, %s411
      %p413 = pneg %p66
      %p414 = pneg %p63
      %p415 = scmp.lt.s32.totalorder %s35, 1
      %s416 = scalar_select %p415, %s35, 1
      %s417 = scalar_lea.vmem %s2, %s416
      %p418 = pneg %p92
      %p419 = pneg %p89
      %p420 = pneg %p113
      %p421 = pneg %p110
      %p422 = pneg %p134
      %p423 = pneg %p131
      %p424 = pneg %p155
      %p425 = pneg %p152
      %p426 = pneg %p176
      %p427 = pneg %p173
      %p428 = pneg %p197
      %p429 = pneg %p194
      %p430 = pneg %p218
      %p431 = pneg %p215
      %p432 = pneg %p239
      %p433 = pneg %p236
      %p434 = pneg %p260
      %p435 = pneg %p257
      %p436 = pneg %p281
      %p437 = pneg %p278
      %p438 = pneg %p309
      %p439 = pneg %p306
      %p440 = scmp.lt.s32.totalorder %s35, 1
      %s441 = scalar_select %p440, %s35, 1
      %p442 = scmp.lt.s32.totalorder %s36, 0
      %s443 = scalar_select %p442, %s36, 0
      %s444 = sadd.s32 %s443, %s441
      %s445 = smul.addr %s444, 8
      %s446 = scalar_lea.vmem %s12, %s445
      %p447 = pneg %p337
      %p448 = pneg %p334
      %p449 = scmp.lt.s32.totalorder %s35, 1
      %s450 = scalar_select %p449, %s35, 1
      %p451 = scmp.lt.s32.totalorder %s36, 0
      %s452 = scalar_select %p451, %s36, 0
      %s453 = sadd.s32 %s452, %s450
      %s454 = smul.addr %s453, 8
      %s455 = scalar_lea.vmem %s13, %s454
      %p456 = scmp.lt.s32.totalorder %s35, 1
      %s457 = scalar_select %p456, %s35, 1
      %p458 = scmp.lt.s32.totalorder %s36, 0
      %s459 = scalar_select %p458, %s36, 0
      %s460 = sadd.s32 %s459, %s457
      %s461 = smul.addr %s460, 8
      %s462 = scalar_lea.vmem %s1, %s461
      %p463 = scmp.lt.s32.totalorder %s35, 1
      %s464 = scalar_select %p463, %s35, 1
      %s465 = scalar_lea.vmem %s2, %s464
      %p466 = scmp.lt.s32.totalorder %s35, 1
      %s467 = scalar_select %p466, %s35, 1
      %p468 = scmp.lt.s32.totalorder %s36, 0
      %s469 = scalar_select %p468, %s36, 0
      %s470 = sadd.s32 %s469, %s467
      %s471 = smul.addr %s470, 8
      %s472 = scalar_lea.vmem %s12, %s471
      %p473 = scmp.lt.s32.totalorder %s35, 1
      %s474 = scalar_select %p473, %s35, 1
      %p475 = scmp.lt.s32.totalorder %s36, 0
      %s476 = scalar_select %p475, %s36, 0
      %s477 = sadd.s32 %s476, %s474
      %s478 = smul.addr %s477, 8
      %s479 = scalar_lea.vmem %s13, %s478
      %v480 = vlaneseq
      %v481 = vshrl.u32 %v480, 7
      %s482 = smul.u32 %s36, 8
      %v483 = vstv %s482
      %v484 = vadd.s32 %v481, %v483
      %s485 = sld [smem:[#allocation3 + %s35]]
      %v486 = vstv %s485
      %vm487 = vcmp.lt.s32.totalorder %v484, %v486
      %v488 = vsel %vm487, 1, 0
      %v489 = vcvt.s32.f32 %v488
      %v490 = vld [vmem:[%s462] sm:$0xff]
      %v491 = vld [vmem:[%s3] sm:$0xff]
      %v492 = vld [vmem:[%s3 + $0x8] sm:$0xff]
      %v493 = vld [vmem:[%s3 + $0x10] sm:$0xff]
      %v494 = vld [vmem:[%s3 + $0x18] sm:$0xff]
      %v495 = vld [vmem:[%s465] sm:$0x1]
      %v497 = vlaneseq
      %v498 = vshrl.u32 %v497, 7
      %v499 = vsub.s32 0, %v498
      %v500 = vrot.slane %v495, %v499
      %vm502 = vcmask 261120
      %v504 = vsel %vm502, %v490, 0
      %506 = vmatprep.subr.mxu0 0.0
      %507 = vmatpush1.msra.mxu0 0.0
      %508 = vmatprep.subr.mxu0 0.0
      %509 = vmatpush1.msra.mxu0 0.0
      %510 = vmatprep.subr.mxu0 0.0
      %511 = vmatpush1.msra.mxu0 0.0
      %512 = vmatprep.subr.mxu0 0.0
      %513 = vmatpush1.msra.mxu0 0.0
      %514 = vmatprep.subr.mxu0 0.0
      %515 = vmatpush1.msra.mxu0 0.0
      %516 = vmatprep.subr.mxu0 0.0
      %517 = vmatpush1.msra.mxu0 0.0
      %518 = vmatprep.subr.mxu0 0.0
      %519 = vmatpush1.msra.mxu0 0.0
      %520 = vmatprep.subr.mxu0 0.0
      %521 = vmatpush1.msra.mxu0 0.0
      %522 = vmatprep.subr.mxu0 0.0
      %523 = vmatpush1.msra.mxu0 0.0
      %524 = vmatprep.subr.mxu0 0.0
      %525 = vmatpush1.msra.mxu0 0.0
      %526 = vmatprep.subr.mxu0 0.0
      %527 = vmatpush1.msra.mxu0 0.0
      %528 = vmatprep.subr.mxu0 0.0
      %529 = vmatpush1.msra.mxu0 0.0
      %530 = vmatprep.subr.mxu0 0.0
      %531 = vmatpush1.msra.mxu0 %v494
      %532 = vmatprep.subr.mxu0 0.0
      %533 = vmatpush1.msra.mxu0 %v493
      %534 = vmatprep.subr.mxu0 0.0
      %535 = vmatpush1.msra.mxu0 %v492
      %536 = vmatprep.subr.mxu0 0.0
      %537 = vmatpush1.msra.mxu0 %v491
      %538 = vmatprep.subr.mxu0 0.0
      %539 = vmatpush2.msra.mxu0 0.0
      %540 = vmatprep.subr.mxu0 0.0
      %541 = vmatpush2.msra.mxu0 0.0
      %542 = vmatprep.subr.mxu0 0.0
      %543 = vmatpush2.msra.mxu0 0.0
      %544 = vmatprep.subr.mxu0 0.0
      %545 = vmatpush2.msra.mxu0 0.0
      %546 = vmatprep.subr.mxu0 0.0
      %547 = vmatpush2.msra.mxu0 0.0
      %548 = vmatprep.subr.mxu0 0.0
      %549 = vmatpush2.msra.mxu0 0.0
      %550 = vmatprep.subr.mxu0 0.0
      %551 = vmatpush2.msra.mxu0 0.0
      %552 = vmatprep.subr.mxu0 0.0
      %553 = vmatpush2.msra.mxu0 0.0
      %554 = vmatprep.subr.mxu0 0.0
      %555 = vmatpush2.msra.mxu0 0.0
      %556 = vmatprep.subr.mxu0 0.0
      %557 = vmatpush2.msra.mxu0 0.0
      %558 = vmatprep.subr.mxu0 0.0
      %559 = vmatpush2.msra.mxu0 0.0
      %560 = vmatprep.subr.mxu0 0.0
      %561 = vmatpush2.msra.mxu0 0.0
      %562 = vmatprep.subr.mxu0 0.0
      %563 = vmatpush2.msra.mxu0 0.0
      %564 = vmatprep.subr.mxu0 0.0
      %565 = vmatpush2.msra.mxu0 0.0
      %566 = vmatprep.subr.mxu0 0.0
      %567 = vmatpush2.msra.mxu0 0.0
      %568 = vmatprep.subr.mxu0 0.0
      %569 = vmatpush2.msra.mxu0 0.0
      %570 = vmatprep.mubr.f32.mxu0 0.0
      %571 = vmatmul.mubr.f32.gmra.mxu0 %v504
      %v572 = vpop.f32.mrf.mxu0
      %v573 = vadd.f32 %v500, %v572
      %v574 = vpop.f32.mrf.mxu0
      %575 = vdwg.mxu0
      %v576 = vmax.f32 %v573, 0.0
      %v577 = vld [vmem:[%s4] sm:$0xff]
      %v578 = vld [vmem:[%s4 + $0x8] sm:$0xff]
      %v579 = vld [vmem:[%s4 + $0x10] sm:$0xff]
      %v580 = vld [vmem:[%s4 + $0x18] sm:$0xff]
      %v581 = vld [vmem:[%s5] sm:$0xff]
      %v582 = vld [vmem:[%s5 + $0x8] sm:$0xff]
      %v583 = vld [vmem:[%s5 + $0x10] sm:$0xff]
      %v584 = vld [vmem:[%s5 + $0x18] sm:$0xff]
      %v586 = vsel %vm502, %v576, 0
      %588 = vmatprep.subr.mxu0 0.0
      %589 = vmatpush1.msra.mxu0 0.0
      %590 = vmatprep.subr.mxu0 0.0
      %591 = vmatpush1.msra.mxu0 0.0
      %592 = vmatprep.subr.mxu0 0.0
      %593 = vmatpush1.msra.mxu0 0.0
      %594 = vmatprep.subr.mxu0 0.0
      %595 = vmatpush1.msra.mxu0 0.0
      %596 = vmatprep.subr.mxu0 0.0
      %597 = vmatpush1.msra.mxu0 0.0
      %598 = vmatprep.subr.mxu0 0.0
      %599 = vmatpush1.msra.mxu0 0.0
      %600 = vmatprep.subr.mxu0 0.0
      %601 = vmatpush1.msra.mxu0 0.0
      %602 = vmatprep.subr.mxu0 0.0
      %603 = vmatpush1.msra.mxu0 0.0
      %604 = vmatprep.subr.mxu0 0.0
      %605 = vmatpush1.msra.mxu0 0.0
      %606 = vmatprep.subr.mxu0 0.0
      %607 = vmatpush1.msra.mxu0 0.0
      %608 = vmatprep.subr.mxu0 0.0
      %609 = vmatpush1.msra.mxu0 0.0
      %610 = vmatprep.subr.mxu0 0.0
      %611 = vmatpush1.msra.mxu0 0.0
      %612 = vmatprep.subr.mxu0 0.0
      %613 = vmatpush1.msra.mxu0 %v584
      %614 = vmatprep.subr.mxu0 0.0
      %615 = vmatpush1.msra.mxu0 %v583
      %616 = vmatprep.subr.mxu0 0.0
      %617 = vmatpush1.msra.mxu0 %v582
      %618 = vmatprep.subr.mxu0 0.0
      %619 = vmatpush1.msra.mxu0 %v581
      %620 = vmatprep.subr.mxu0 0.0
      %621 = vmatpush2.msra.mxu0 0.0
      %622 = vmatprep.subr.mxu0 0.0
      %623 = vmatpush2.msra.mxu0 0.0
      %624 = vmatprep.subr.mxu0 0.0
      %625 = vmatpush2.msra.mxu0 0.0
      %626 = vmatprep.subr.mxu0 0.0
      %627 = vmatpush2.msra.mxu0 0.0
      %628 = vmatprep.subr.mxu0 0.0
      %629 = vmatpush2.msra.mxu0 0.0
      %630 = vmatprep.subr.mxu0 0.0
      %631 = vmatpush2.msra.mxu0 0.0
      %632 = vmatprep.subr.mxu0 0.0
      %633 = vmatpush2.msra.mxu0 0.0
      %634 = vmatprep.subr.mxu0 0.0
      %635 = vmatpush2.msra.mxu0 0.0
      %636 = vmatprep.subr.mxu0 0.0
      %637 = vmatpush2.msra.mxu0 0.0
      %638 = vmatprep.subr.mxu0 0.0
      %639 = vmatpush2.msra.mxu0 0.0
      %640 = vmatprep.subr.mxu0 0.0
      %641 = vmatpush2.msra.mxu0 0.0
      %642 = vmatprep.subr.mxu0 0.0
      %643 = vmatpush2.msra.mxu0 0.0
      %644 = vmatprep.subr.mxu0 0.0
      %645 = vmatpush2.msra.mxu0 0.0
      %646 = vmatprep.subr.mxu0 0.0
      %647 = vmatpush2.msra.mxu0 0.0
      %648 = vmatprep.subr.mxu0 0.0
      %649 = vmatpush2.msra.mxu0 0.0
      %650 = vmatprep.subr.mxu0 0.0
      %651 = vmatpush2.msra.mxu0 0.0
      %652 = vmatprep.mubr.f32.mxu0 0.0
      %653 = vmatmul.mubr.f32.gmra.mxu0 %v586
      %v654 = vpop.f32.mrf.mxu0
      %v655 = vadd.f32 0.0, %v654
      %v656 = vpop.f32.mrf.mxu0
      %657 = vdwg.mxu0
      %658 = vmatprep.subr.mxu0 0.0
      %659 = vmatpush1.msra.mxu0 0.0
      %660 = vmatprep.subr.mxu0 0.0
      %661 = vmatpush1.msra.mxu0 0.0
      %662 = vmatprep.subr.mxu0 0.0
      %663 = vmatpush1.msra.mxu0 0.0
      %664 = vmatprep.subr.mxu0 0.0
      %665 = vmatpush1.msra.mxu0 0.0
      %666 = vmatprep.subr.mxu0 0.0
      %667 = vmatpush1.msra.mxu0 0.0
      %668 = vmatprep.subr.mxu0 0.0
      %669 = vmatpush1.msra.mxu0 0.0
      %670 = vmatprep.subr.mxu0 0.0
      %671 = vmatpush1.msra.mxu0 0.0
      %672 = vmatprep.subr.mxu0 0.0
      %673 = vmatpush1.msra.mxu0 0.0
      %674 = vmatprep.subr.mxu0 0.0
      %675 = vmatpush1.msra.mxu0 0.0
      %676 = vmatprep.subr.mxu0 0.0
      %677 = vmatpush1.msra.mxu0 0.0
      %678 = vmatprep.subr.mxu0 0.0
      %679 = vmatpush1.msra.mxu0 0.0
      %680 = vmatprep.subr.mxu0 0.0
      %681 = vmatpush1.msra.mxu0 0.0
      %682 = vmatprep.subr.mxu0 0.0
      %683 = vmatpush1.msra.mxu0 %v580
      %684 = vmatprep.subr.mxu0 0.0
      %685 = vmatpush1.msra.mxu0 %v579
      %686 = vmatprep.subr.mxu0 0.0
      %687 = vmatpush1.msra.mxu0 %v578
      %688 = vmatprep.subr.mxu0 0.0
      %689 = vmatpush1.msra.mxu0 %v577
      %690 = vmatprep.subr.mxu0 0.0
      %691 = vmatpush2.msra.mxu0 0.0
      %692 = vmatprep.subr.mxu0 0.0
      %693 = vmatpush2.msra.mxu0 0.0
      %694 = vmatprep.subr.mxu0 0.0
      %695 = vmatpush2.msra.mxu0 0.0
      %696 = vmatprep.subr.mxu0 0.0
      %697 = vmatpush2.msra.mxu0 0.0
      %698 = vmatprep.subr.mxu0 0.0
      %699 = vmatpush2.msra.mxu0 0.0
      %700 = vmatprep.subr.mxu0 0.0
      %701 = vmatpush2.msra.mxu0 0.0
      %702 = vmatprep.subr.mxu0 0.0
      %703 = vmatpush2.msra.mxu0 0.0
      %704 = vmatprep.subr.mxu0 0.0
      %705 = vmatpush2.msra.mxu0 0.0
      %706 = vmatprep.subr.mxu0 0.0
      %707 = vmatpush2.msra.mxu0 0.0
      %708 = vmatprep.subr.mxu0 0.0
      %709 = vmatpush2.msra.mxu0 0.0
      %710 = vmatprep.subr.mxu0 0.0
      %711 = vmatpush2.msra.mxu0 0.0
      %712 = vmatprep.subr.mxu0 0.0
      %713 = vmatpush2.msra.mxu0 0.0
      %714 = vmatprep.subr.mxu0 0.0
      %715 = vmatpush2.msra.mxu0 0.0
      %716 = vmatprep.subr.mxu0 0.0
      %717 = vmatpush2.msra.mxu0 0.0
      %718 = vmatprep.subr.mxu0 0.0
      %719 = vmatpush2.msra.mxu0 0.0
      %720 = vmatprep.subr.mxu0 0.0
      %721 = vmatpush2.msra.mxu0 0.0
      %722 = vmatprep.mubr.f32.mxu0 0.0
      %723 = vmatmul.mubr.f32.gmra.mxu0 %v504
      %v724 = vpop.f32.mrf.mxu0
      %v725 = vadd.f32 %v655, %v724
      %v726 = vpop.f32.mrf.mxu0
      %727 = vdwg.mxu0
      %v728 = vld [vmem:[%s6] sm:$0x1]
      %v730 = vlaneseq
      %v731 = vshrl.u32 %v730, 7
      %v732 = vsub.s32 0, %v731
      %v733 = vrot.slane %v728, %v732
      %v735 = vadd.f32 %v725, %v733
      %v736 = vmul.f32 %v735, %v489
      %v737 = vld [vmem:[%s7] sm:$0x1]
      %v739 = vlaneseq
      %v740 = vshrl.u32 %v739, 7
      %v741 = vsub.s32 0, %v740
      %v742 = vrot.slane %v737, %v741
      %v744 = vadd.f32 %v736, %v742
      %v745 = vld [vmem:[%s8] sm:$0xff]
      %v746 = vld [vmem:[%s8 + $0x8] sm:$0xff]
      %v747 = vld [vmem:[%s8 + $0x10] sm:$0xff]
      %v748 = vld [vmem:[%s8 + $0x18] sm:$0xff]
      %v749 = vld [vmem:[%s9] sm:$0x1]
      %v751 = vlaneseq
      %v752 = vshrl.u32 %v751, 7
      %v753 = vsub.s32 0, %v752
      %v754 = vrot.slane %v749, %v753
      %v757 = vsel %vm502, %v744, 0
      %759 = vmatprep.subr.mxu0 0.0
      %760 = vmatpush1.msra.mxu0 0.0
      %761 = vmatprep.subr.mxu0 0.0
      %762 = vmatpush1.msra.mxu0 0.0
      %763 = vmatprep.subr.mxu0 0.0
      %764 = vmatpush1.msra.mxu0 0.0
      %765 = vmatprep.subr.mxu0 0.0
      %766 = vmatpush1.msra.mxu0 0.0
      %767 = vmatprep.subr.mxu0 0.0
      %768 = vmatpush1.msra.mxu0 0.0
      %769 = vmatprep.subr.mxu0 0.0
      %770 = vmatpush1.msra.mxu0 0.0
      %771 = vmatprep.subr.mxu0 0.0
      %772 = vmatpush1.msra.mxu0 0.0
      %773 = vmatprep.subr.mxu0 0.0
      %774 = vmatpush1.msra.mxu0 0.0
      %775 = vmatprep.subr.mxu0 0.0
      %776 = vmatpush1.msra.mxu0 0.0
      %777 = vmatprep.subr.mxu0 0.0
      %778 = vmatpush1.msra.mxu0 0.0
      %779 = vmatprep.subr.mxu0 0.0
      %780 = vmatpush1.msra.mxu0 0.0
      %781 = vmatprep.subr.mxu0 0.0
      %782 = vmatpush1.msra.mxu0 0.0
      %783 = vmatprep.subr.mxu0 0.0
      %784 = vmatpush1.msra.mxu0 %v748
      %785 = vmatprep.subr.mxu0 0.0
      %786 = vmatpush1.msra.mxu0 %v747
      %787 = vmatprep.subr.mxu0 0.0
      %788 = vmatpush1.msra.mxu0 %v746
      %789 = vmatprep.subr.mxu0 0.0
      %790 = vmatpush1.msra.mxu0 %v745
      %791 = vmatprep.subr.mxu0 0.0
      %792 = vmatpush2.msra.mxu0 0.0
      %793 = vmatprep.subr.mxu0 0.0
      %794 = vmatpush2.msra.mxu0 0.0
      %795 = vmatprep.subr.mxu0 0.0
      %796 = vmatpush2.msra.mxu0 0.0
      %797 = vmatprep.subr.mxu0 0.0
      %798 = vmatpush2.msra.mxu0 0.0
      %799 = vmatprep.subr.mxu0 0.0
      %800 = vmatpush2.msra.mxu0 0.0
      %801 = vmatprep.subr.mxu0 0.0
      %802 = vmatpush2.msra.mxu0 0.0
      %803 = vmatprep.subr.mxu0 0.0
      %804 = vmatpush2.msra.mxu0 0.0
      %805 = vmatprep.subr.mxu0 0.0
      %806 = vmatpush2.msra.mxu0 0.0
      %807 = vmatprep.subr.mxu0 0.0
      %808 = vmatpush2.msra.mxu0 0.0
      %809 = vmatprep.subr.mxu0 0.0
      %810 = vmatpush2.msra.mxu0 0.0
      %811 = vmatprep.subr.mxu0 0.0
      %812 = vmatpush2.msra.mxu0 0.0
      %813 = vmatprep.subr.mxu0 0.0
      %814 = vmatpush2.msra.mxu0 0.0
      %815 = vmatprep.subr.mxu0 0.0
      %816 = vmatpush2.msra.mxu0 0.0
      %817 = vmatprep.subr.mxu0 0.0
      %818 = vmatpush2.msra.mxu0 0.0
      %819 = vmatprep.subr.mxu0 0.0
      %820 = vmatpush2.msra.mxu0 0.0
      %821 = vmatprep.subr.mxu0 0.0
      %822 = vmatpush2.msra.mxu0 0.0
      %823 = vmatprep.mubr.f32.mxu0 0.0
      %824 = vmatmul.mubr.f32.gmra.mxu0 %v757
      %v825 = vpop.f32.mrf.mxu0
      %v826 = vadd.f32 %v754, %v825
      %v827 = vpop.f32.mrf.mxu0
      %828 = vdwg.mxu0
      %v829 = vmax.f32 %v826, 0.0
      %v830 = vld [vmem:[%s10] sm:$0xff]
      %v831 = vld [vmem:[%s10 + $0x8] sm:$0xff]
      %v832 = vld [vmem:[%s10 + $0x10] sm:$0xff]
      %v833 = vld [vmem:[%s10 + $0x18] sm:$0xff]
      %v834 = vld [vmem:[%s10 + $0x20] sm:$0xff]
      %v835 = vld [vmem:[%s10 + $0x28] sm:$0xff]
      %v836 = vld [vmem:[%s10 + $0x30] sm:$0xff]
      %v837 = vld [vmem:[%s10 + $0x38] sm:$0xff]
      %v838 = vld [vmem:[%s10 + $0x40] sm:$0xff]
      %v839 = vld [vmem:[%s10 + $0x48] sm:$0xff]
      %v840 = vld [vmem:[%s10 + $0x50] sm:$0xff]
      %v841 = vld [vmem:[%s10 + $0x58] sm:$0xff]
      %v842 = vld [vmem:[%s11] sm:$0x1]
      %v844 = vlaneseq
      %v845 = vshrl.u32 %v844, 7
      %v846 = vsub.s32 0, %v845
      %v847 = vrot.slane %v842, %v846
      %vm849 = vcmask 785408
      %v851 = vsel %vm849, %v829, 0
      %853 = vmatprep.subr.mxu0 0.0
      %854 = vmatpush1.msra.mxu0 0.0
      %855 = vmatprep.subr.mxu0 0.0
      %856 = vmatpush1.msra.mxu0 0.0
      %857 = vmatprep.subr.mxu0 0.0
      %858 = vmatpush1.msra.mxu0 0.0
      %859 = vmatprep.subr.mxu0 0.0
      %860 = vmatpush1.msra.mxu0 0.0
      %861 = vmatprep.subr.mxu0 0.0
      %862 = vmatpush1.msra.mxu0 %v841
      %863 = vmatprep.subr.mxu0 0.0
      %864 = vmatpush1.msra.mxu0 %v840
      %865 = vmatprep.subr.mxu0 0.0
      %866 = vmatpush1.msra.mxu0 %v839
      %867 = vmatprep.subr.mxu0 0.0
      %868 = vmatpush1.msra.mxu0 %v838
      %869 = vmatprep.subr.mxu0 0.0
      %870 = vmatpush1.msra.mxu0 %v837
      %871 = vmatprep.subr.mxu0 0.0
      %872 = vmatpush1.msra.mxu0 %v836
      %873 = vmatprep.subr.mxu0 0.0
      %874 = vmatpush1.msra.mxu0 %v835
      %875 = vmatprep.subr.mxu0 0.0
      %876 = vmatpush1.msra.mxu0 %v834
      %877 = vmatprep.subr.mxu0 0.0
      %878 = vmatpush1.msra.mxu0 %v833
      %879 = vmatprep.subr.mxu0 0.0
      %880 = vmatpush1.msra.mxu0 %v832
      %881 = vmatprep.subr.mxu0 0.0
      %882 = vmatpush1.msra.mxu0 %v831
      %883 = vmatprep.subr.mxu0 0.0
      %884 = vmatpush1.msra.mxu0 %v830
      %885 = vmatprep.subr.mxu0 0.0
      %886 = vmatpush2.msra.mxu0 0.0
      %887 = vmatprep.subr.mxu0 0.0
      %888 = vmatpush2.msra.mxu0 0.0
      %889 = vmatprep.subr.mxu0 0.0
      %890 = vmatpush2.msra.mxu0 0.0
      %891 = vmatprep.subr.mxu0 0.0
      %892 = vmatpush2.msra.mxu0 0.0
      %893 = vmatprep.subr.mxu0 0.0
      %894 = vmatpush2.msra.mxu0 0.0
      %895 = vmatprep.subr.mxu0 0.0
      %896 = vmatpush2.msra.mxu0 0.0
      %897 = vmatprep.subr.mxu0 0.0
      %898 = vmatpush2.msra.mxu0 0.0
      %899 = vmatprep.subr.mxu0 0.0
      %900 = vmatpush2.msra.mxu0 0.0
      %901 = vmatprep.subr.mxu0 0.0
      %902 = vmatpush2.msra.mxu0 0.0
      %903 = vmatprep.subr.mxu0 0.0
      %904 = vmatpush2.msra.mxu0 0.0
      %905 = vmatprep.subr.mxu0 0.0
      %906 = vmatpush2.msra.mxu0 0.0
      %907 = vmatprep.subr.mxu0 0.0
      %908 = vmatpush2.msra.mxu0 0.0
      %909 = vmatprep.subr.mxu0 0.0
      %910 = vmatpush2.msra.mxu0 0.0
      %911 = vmatprep.subr.mxu0 0.0
      %912 = vmatpush2.msra.mxu0 0.0
      %913 = vmatprep.subr.mxu0 0.0
      %914 = vmatpush2.msra.mxu0 0.0
      %915 = vmatprep.subr.mxu0 0.0
      %916 = vmatpush2.msra.mxu0 0.0
      %917 = vmatprep.mubr.f32.mxu0 0.0
      %918 = vmatmul.mubr.f32.gmra.mxu0 %v851
      %v919 = vpop.f32.mrf.mxu0
      %v920 = vadd.f32 %v847, %v919
      %v921 = vpop.f32.mrf.mxu0
      %922 = vdwg.mxu0
      %v923 = vmul.f32 %v920, %v489
      %924 = vst.msk [vmem:[%s472] sm:$0xff] %vm502, %v744
      %vm925 = vcmask 23552
      %926 = vst.msk [vmem:[%s479] sm:$0xff] %vm925, %v923
      %p927 = scmp.lt.s32.totalorder %s35, 1
      %s928 = scalar_select %p927, %s35, 1
      %p929 = scmp.lt.s32.totalorder %s36, 0
      %s930 = scalar_select %p929, %s36, 0
      %s931 = sadd.s32 %s930, %s928
      %s932 = smul.addr %s931, 8
      %s933 = scalar_lea.vmem %s12, %s932
      %p934 = scmp.lt.s32.totalorder %s35, 1
      %s935 = scalar_select %p934, %s35, 1
      %p936 = scmp.lt.s32.totalorder %s36, 0
      %s937 = scalar_select %p936, %s36, 0
      %s938 = sadd.s32 %s937, %s935
      %s939 = smul.addr %s938, 8
      %s940 = scalar_lea.vmem %s13, %s939
      // Predicated region
      $region65: #{stylespeech_forward.4} parent=63 // pred_check
        %p941 = pneg %p306
      $region66: #{stylespeech_forward.4} parent=63 // pred_check_branch
        %943 = sbr.rel (%p941) target = $region68
      $region67: #{stylespeech_forward.4} parent=63 // pred_region
        _
      $region68: #{stylespeech_forward.4} parent=63 // pred_fallthru
        _
      // Predicated region
      $region69: #{stylespeech_forward.4} parent=63 // pred_check
        %p944 = pneg %p334
      $region70: #{stylespeech_forward.4} parent=63 // pred_check_branch
        %946 = sbr.rel (%p944) target = $region72
      $region71: #{stylespeech_forward.4} parent=63 // pred_region
        _
      $region72: #{stylespeech_forward.4} parent=63 // pred_fallthru
        _
    $region64: #{stylespeech_forward.4} parent=5 // pred_fallthru
      _
    %p947 = scmp.le.s32.totalorder 2, %s26
    // Predicated region
    $region73: #{stylespeech_forward.4} parent=5 // pred_check
      %p948 = pneg %p947
    $region74: #{stylespeech_forward.4} parent=5 // pred_check_branch
      %950 = sbr.rel (%p948) target = $region76
    $region75: #{stylespeech_forward.4} parent=5 // pred_region
      %s951 = ssub.s32 %s26, 2
      // Predicated region
      $region77: #{stylespeech_forward.4} parent=75 // pred_check
        %p952 = pneg %p312
      $region78: #{stylespeech_forward.4} parent=75 // pred_check_branch
        %954 = sbr.rel (%p952) target = $region80
      $region79: #{stylespeech_forward.4} parent=75 // pred_region
        %p955 = scmp.lt.s32.totalorder %s37, 1
        %s956 = scalar_select %p955, %s37, 1
        %p957 = scmp.lt.s32.totalorder %s38, 0
        %s958 = scalar_select %p957, %s38, 0
        %s959 = sadd.s32 %s958, %s956
        %s960 = smul.addr %s959, 8
        %s961 = scalar_lea.vmem %s12, %s960
      $region80: #{stylespeech_forward.4} parent=75 // pred_fallthru
        _
      // Predicated region
      $region81: #{stylespeech_forward.4} parent=75 // pred_check
        %p962 = pneg %p340
      $region82: #{stylespeech_forward.4} parent=75 // pred_check_branch
        %964 = sbr.rel (%p962) target = $region84
      $region83: #{stylespeech_forward.4} parent=75 // pred_region
        %p965 = scmp.lt.s32.totalorder %s37, 1
        %s966 = scalar_select %p965, %s37, 1
        %p967 = scmp.lt.s32.totalorder %s38, 0
        %s968 = scalar_select %p967, %s38, 0
        %s969 = sadd.s32 %s968, %s966
        %s970 = smul.addr %s969, 8
        %s971 = scalar_lea.vmem %s13, %s970
      $region84: #{stylespeech_forward.4} parent=75 // pred_fallthru
        _
    $region76: #{stylespeech_forward.4} parent=5 // pred_fallthru
      _
  $region6: #{stylespeech_forward.4} parent=0 // loop_footer
    %s30 = sadd.s32 1, %s26
  $region7: #{stylespeech_forward.4} parent=0 // loop_footer_branch
    %25 = sbr.rel target = $region3
  $region8: #{stylespeech_forward.4} parent=0 // loop_exit
    _

// kernel: stylespeech_forward.3
$region0: #{stylespeech_forward.3}
  #allocation0 [shape = 'u32[]', space=smem, size = 0x4, offset = 0x4, fixed_abs, tag = 'smem constant byte address 0x4 - core index']
  #allocation1 [shape = 'u32[144,128]{1,0:T(1,128)}', space=vmem, size = 0x12000, scoped, tag = 'internal scratch']
  #allocation2 [shape = 'f32[1,32]{1,0:T(1,128)}', space=vmem, size = 0x200, scoped, tag = 'scratch operand']
  #allocation3 [shape = 'f32[1,1]{1,0:T(1,128)}', space=vmem, size = 0x200, scoped, tag = 'scratch operand']
  #allocation4 [shape = 's32[1]{0}', space=sflag, size = 0x4, scoped, tag = 'scoped memory for stylespeech_forward.3']
  #allocation5 [shape = 'u8[512]{0}', space=smem, size = 0x200, scoped, tag = 'prefetched SMEM operand 0']
  %s0 = inlined_call_operand.vmem [shape: s32[2], index: 0, kind: input, shape index: {}]
  %s1 = inlined_call_operand.vmem [shape: f32[2,16,80], index: 1, kind: input, shape index: {}]
  %s2 = inlined_call_operand.vmem [shape: f32[80,32], index: 2, kind: input, shape index: {}]
  %s3 = inlined_call_operand.vmem [shape: f32[1,32], index: 3, kind: input, shape index: {}]
  %s4 = inlined_call_operand.vmem [shape: f32[32,32], index: 4, kind: input, shape index: {}]
  %s5 = inlined_call_operand.vmem [shape: f32[1,32], index: 5, kind: input, shape index: {}]
  %s6 = inlined_call_operand.vmem [shape: f32[2,1,32], index: 6, kind: output, shape index: {}]
  %s7 = sld [smem:[#allocation0]]
  $region61: #{stylespeech_forward.3} parent=0
    _
  %s9 = ssub.s32 1, %s7
  %s10 = scalar_select 0, %s9, %s7
  %s11 = sshll.u32 %s0, 4
  %s12 = int_to_ptr.vmem [resolvable:$true] %s11
  %14 = dma.vmem_to_smem %s12, 16, [#allocation5], [#allocation4]
  %15 = dma.done [#allocation4], 16
  %16 = sfence
  loop: start=0, step=1, limit=4
  $region2: #{stylespeech_forward.3} parent=0 // loop_pre_header
    _
  $region3: #{stylespeech_forward.3} parent=0 // loop_header
    %s18 = sphi 0, %s22
    %p19 = scmp.ge.s32.totalorder %s18, 4
    %s25 = sphi 0, %s37
    %s26 = sphi 0, %s33
    %s27 = sphi 0, %s25
    %s28 = sphi 0, %s26
    %s29 = sphi 0, %s27
    %s30 = sphi 0, %s28
    %s42 = sphi 0, %s44
    %s45 = sphi 0, %s42
    %s46 = sphi 0, %s45
    %s62 = sphi 0, %s46
    %s66 = sphi 0, %s66
    %s68 = sphi 0, %s66
    %s69 = sphi 0, %s68
    %s83 = sphi 0, %s69
    %s87 = sphi 0, %s87
    %s89 = sphi 0, %s87
    %s90 = sphi 0, %s89
    %s104 = sphi 0, %s90
    %s108 = sphi 0, %s108
    %s110 = sphi 0, %s108
    %s111 = sphi 0, %s110
    %s125 = sphi 0, %s111
    %s129 = sphi 0, %s129
    %s131 = sphi 0, %s129
    %s132 = sphi 0, %s131
    %s146 = sphi 0, %s132
    %s152 = sphi 0, %s154
    %s155 = sphi 0, %s152
    %s156 = sphi 0, %s155
    %s172 = sphi 0, %s156
  $region4: #{stylespeech_forward.3} parent=0 // loop_header_branch
    %21 = sbr.rel (%p19) target = $region8
  $region5: #{stylespeech_forward.3} parent=0 // loop_body
    %s23 = ssub.s32 %s18, 1
    %s24 = ssub.s32 %s18, 2
    %s31 = sadd.s32 1, %s26
    %p32 = scmp.ge.s32.totalorder %s31, 1
    %s33 = scalar_select %p32, 0, %s31
    %s34 = sadd.s32 1, %s25
    %s35 = scalar_select %p32, %s34, %s25
    %p36 = scmp.ge.s32.totalorder %s35, 2
    %s37 = scalar_select %p36, 0, %s35
    %s38 = ssub.s32 %s25, %s37
    %s39 = ssub.s32 %s26, %s33
    %s40 = sor.u32 %s38, %s39
    %p41 = scmp.eq.s32.totalorder %s40, 0
    %s43 = sadd.s32 %s42, 1
    %s44 = scalar_select %p41, %s42, %s43
    %p47 = pneg %p41
    %p48 = scmp.eq.s32.totalorder %s18, 1
    %p49 = por %p47, %p48
    %p50 = scmp.ne.s32.totalorder %s42, %s45
    %p51 = scmp.eq.s32.totalorder %s18, 0
    %p52 = por %p50, %p51
    %p53 = scmp.ne.s32.totalorder %s42, %s45
    %p54 = scmp.eq.s32.totalorder %s23, 1
    %p55 = por %p53, %p54
    %p56 = scmp.ne.s32.totalorder %s45, %s46
    %p57 = scmp.eq.s32.totalorder %s23, 0
    %p58 = por %p56, %p57
    %p59 = scmp.ne.s32.totalorder %s45, %s46
    %p60 = scmp.eq.s32.totalorder %s24, 1
    %p61 = por %p59, %p60
    %p63 = scmp.ne.s32.totalorder %s46, %s62
    %p64 = scmp.eq.s32.totalorder %s24, 0
    %p65 = por %p63, %p64
    %s67 = sadd.s32 %s66, 1
    %p70 = scmp.eq.s32.totalorder %s18, 1
    %p71 = scmp.ne.s32.totalorder %s66, %s68
    %p72 = scmp.eq.s32.totalorder %s18, 0
    %p73 = por %p71, %p72
    %p74 = scmp.ne.s32.totalorder %s66, %s68
    %p75 = scmp.eq.s32.totalorder %s23, 1
    %p76 = por %p74, %p75
    %p77 = scmp.ne.s32.totalorder %s68, %s69
    %p78 = scmp.eq.s32.totalorder %s23, 0
    %p79 = por %p77, %p78
    %p80 = scmp.ne.s32.totalorder %s68, %s69
    %p81 = scmp.eq.s32.totalorder %s24, 1
    %p82 = por %p80, %p81
    %p84 = scmp.ne.s32.totalorder %s69, %s83
    %p85 = scmp.eq.s32.totalorder %s24, 0
    %p86 = por %p84, %p85
    %s88 = sadd.s32 %s87, 1
    %p91 = scmp.eq.s32.totalorder %s18, 1
    %p92 = scmp.ne.s32.totalorder %s87, %s89
    %p93 = scmp.eq.s32.totalorder %s18, 0
    %p94 = por %p92, %p93
    %p95 = scmp.ne.s32.totalorder %s87, %s89
    %p96 = scmp.eq.s32.totalorder %s23, 1
    %p97 = por %p95, %p96
    %p98 = scmp.ne.s32.totalorder %s89, %s90
    %p99 = scmp.eq.s32.totalorder %s23, 0
    %p100 = por %p98, %p99
    %p101 = scmp.ne.s32.totalorder %s89, %s90
    %p102 = scmp.eq.s32.totalorder %s24, 1
    %p103 = por %p101, %p102
    %p105 = scmp.ne.s32.totalorder %s90, %s104
    %p106 = scmp.eq.s32.totalorder %s24, 0
    %p107 = por %p105, %p106
    %s109 = sadd.s32 %s108, 1
    %p112 = scmp.eq.s32.totalorder %s18, 1
    %p113 = scmp.ne.s32.totalorder %s108, %s110
    %p114 = scmp.eq.s32.totalorder %s18, 0
    %p115 = por %p113, %p114
    %p116 = scmp.ne.s32.totalorder %s108, %s110
    %p117 = scmp.eq.s32.totalorder %s23, 1
    %p118 = por %p116, %p117
    %p119 = scmp.ne.s32.totalorder %s110, %s111
    %p120 = scmp.eq.s32.totalorder %s23, 0
    %p121 = por %p119, %p120
    %p122 = scmp.ne.s32.totalorder %s110, %s111
    %p123 = scmp.eq.s32.totalorder %s24, 1
    %p124 = por %p122, %p123
    %p126 = scmp.ne.s32.totalorder %s111, %s125
    %p127 = scmp.eq.s32.totalorder %s24, 0
    %p128 = por %p126, %p127
    %s130 = sadd.s32 %s129, 1
    %p133 = scmp.eq.s32.totalorder %s18, 1
    %p134 = scmp.ne.s32.totalorder %s129, %s131
    %p135 = scmp.eq.s32.totalorder %s18, 0
    %p136 = por %p134, %p135
    %p137 = scmp.ne.s32.totalorder %s129, %s131
    %p138 = scmp.eq.s32.totalorder %s23, 1
    %p139 = por %p137, %p138
    %p140 = scmp.ne.s32.totalorder %s131, %s132
    %p141 = scmp.eq.s32.totalorder %s23, 0
    %p142 = por %p140, %p141
    %p143 = scmp.ne.s32.totalorder %s131, %s132
    %p144 = scmp.eq.s32.totalorder %s24, 1
    %p145 = por %p143, %p144
    %p147 = scmp.ne.s32.totalorder %s132, %s146
    %p148 = scmp.eq.s32.totalorder %s24, 0
    %p149 = por %p147, %p148
    %s150 = ssub.s32 %s25, %s37
    %p151 = scmp.eq.s32.totalorder %s150, 0
    %s153 = sadd.s32 %s152, 1
    %s154 = scalar_select %p151, %s152, %s153
    %p157 = pneg %p151
    %p158 = scmp.eq.s32.totalorder %s18, 1
    %p159 = por %p157, %p158
    %p160 = scmp.ne.s32.totalorder %s152, %s155
    %p161 = scmp.eq.s32.totalorder %s18, 0
    %p162 = por %p160, %p161
    %p163 = scmp.ne.s32.totalorder %s152, %s155
    %p164 = scmp.eq.s32.totalorder %s23, 1
    %p165 = por %p163, %p164
    %p166 = scmp.ne.s32.totalorder %s155, %s156
    %p167 = scmp.eq.s32.totalorder %s23, 0
    %p168 = por %p166, %p167
    %p169 = scmp.ne.s32.totalorder %s155, %s156
    %p170 = scmp.eq.s32.totalorder %s24, 1
    %p171 = por %p169, %p170
    %p173 = scmp.ne.s32.totalorder %s156, %s172
    %p174 = scmp.eq.s32.totalorder %s24, 0
    %p175 = por %p173, %p174
    %p176 = scmp.le.s32.totalorder 1, %s18
    %p177 = scmp.lt.s32.totalorder %s18, 3
    %p178 = pnand %p176, %p177
    %p179 = pneg %p178
    // Predicated region
    $region9: #{stylespeech_forward.3} parent=5 // pred_check
      _
    $region10: #{stylespeech_forward.3} parent=5 // pred_check_branch
      %181 = sbr.rel (%p178) target = $region12
    $region11: #{stylespeech_forward.3} parent=5 // pred_region
      %s182 = ssub.s32 %s18, 1
      // Predicated region
      $region13: #{stylespeech_forward.3} parent=11 // pred_check
        %p183 = pneg %p79
      $region14: #{stylespeech_forward.3} parent=11 // pred_check_branch
        %185 = sbr.rel (%p183) target = $region16
      $region15: #{stylespeech_forward.3} parent=11 // pred_region
        _
      $region16: #{stylespeech_forward.3} parent=11 // pred_fallthru
        _
      // Predicated region
      $region17: #{stylespeech_forward.3} parent=11 // pred_check
        %p186 = pneg %p100
      $region18: #{stylespeech_forward.3} parent=11 // pred_check_branch
        %188 = sbr.rel (%p186) target = $region20
      $region19: #{stylespeech_forward.3} parent=11 // pred_region
        _
      $region20: #{stylespeech_forward.3} parent=11 // pred_fallthru
        _
      // Predicated region
      $region21: #{stylespeech_forward.3} parent=11 // pred_check
        %p189 = pneg %p121
      $region22: #{stylespeech_forward.3} parent=11 // pred_check_branch
        %191 = sbr.rel (%p189) target = $region24
      $region23: #{stylespeech_forward.3} parent=11 // pred_region
        _
      $region24: #{stylespeech_forward.3} parent=11 // pred_fallthru
        _
      // Predicated region
      $region25: #{stylespeech_forward.3} parent=11 // pred_check
        %p192 = pneg %p142
      $region26: #{stylespeech_forward.3} parent=11 // pred_check_branch
        %194 = sbr.rel (%p192) target = $region28
      $region27: #{stylespeech_forward.3} parent=11 // pred_region
        _
      $region28: #{stylespeech_forward.3} parent=11 // pred_fallthru
        _
    $region12: #{stylespeech_forward.3} parent=5 // pred_fallthru
      _
    %p195 = scmp.lt.s32.totalorder %s18, 2
    // Predicated region
    $region29: #{stylespeech_forward.3} parent=5 // pred_check
      %p196 = pneg %p195
    $region30: #{stylespeech_forward.3} parent=5 // pred_check_branch
      %198 = sbr.rel (%p196) target = $region32
    $region31: #{stylespeech_forward.3} parent=5 // pred_region
      // Predicated region
      $region33: #{stylespeech_forward.3} parent=31 // pred_check
        %p199 = pneg %p52
      $region34: #{stylespeech_forward.3} parent=31 // pred_check_branch
        %201 = sbr.rel (%p199) target = $region36
      $region35: #{stylespeech_forward.3} parent=31 // pred_region
        %s202 = smul.u32 2, %s26
        %p203 = scmp.lt.s32.totalorder %s25, 1
        %s204 = scalar_select %p203, %s25, 1
        %p205 = scmp.lt.s32.totalorder %s202, 1
        %s206 = scalar_select %p205, %s202, 1
        %s207 = smul.addr %s204, 2
        %s208 = sadd.s32 %s206, %s207
        %s209 = smul.addr %s208, 8
        %s210 = scalar_lea.vmem %s1, %s209
        %s211 = smul.u32 2, %s26
      $region36: #{stylespeech_forward.3} parent=31 // pred_fallthru
        _
    $region32: #{stylespeech_forward.3} parent=5 // pred_fallthru
      _
    %p212 = scmp.le.s32.totalorder 1, %s18
    %p213 = scmp.lt.s32.totalorder %s18, 3
    %p214 = pnand %p212, %p213
    %p215 = pneg %p214
    // Predicated region
    $region37: #{stylespeech_forward.3} parent=5 // pred_check
      _
    $region38: #{stylespeech_forward.3} parent=5 // pred_check_branch
      %217 = sbr.rel (%p214) target = $region40
    $region39: #{stylespeech_forward.3} parent=5 // pred_region
      %s218 = ssub.s32 %s18, 1
      %s219 = smul.u32 2, %s28
      %p220 = scmp.lt.s32.totalorder %s27, 1
      %s221 = scalar_select %p220, %s27, 1
      %p222 = scmp.lt.s32.totalorder %s219, 1
      %s223 = scalar_select %p222, %s219, 1
      %s224 = smul.addr %s221, 2
      %s225 = sadd.s32 %s223, %s224
      %s226 = smul.addr %s225, 8
      %s227 = scalar_lea.vmem %s1, %s226
      %p228 = pneg %p58
      %p229 = pneg %p55
      %p230 = pneg %p79
      %p231 = pneg %p76
      %p232 = pneg %p100
      %p233 = pneg %p97
      %p234 = pneg %p121
      %p235 = pneg %p118
      %p236 = pneg %p142
      %p237 = pneg %p139
      %p238 = pneg %p168
      %p239 = pneg %p165
      %p240 = scmp.lt.s32.totalorder %s27, 1
      %s241 = scalar_select %p240, %s27, 1
      %s242 = scalar_lea.vmem %s6, %s241
      %s243 = smul.u32 2, %s28
      %p244 = scmp.lt.s32.totalorder %s27, 1
      %s245 = scalar_select %p244, %s27, 1
      %p246 = scmp.lt.s32.totalorder %s243, 1
      %s247 = scalar_select %p246, %s243, 1
      %s248 = smul.addr %s245, 2
      %s249 = sadd.s32 %s247, %s248
      %s250 = smul.addr %s249, 8
      %s251 = scalar_lea.vmem %s1, %s250
      %s252 = smul.u32 2, %s28
      %p253 = scmp.lt.s32.totalorder %s27, 1
      %s254 = scalar_select %p253, %s27, 1
      %s255 = scalar_lea.vmem %s6, %s254
      %p256 = scmp.eq.s32.totalorder %s28, 0
      // Predicated region
      $region41: #{stylespeech_forward.3} parent=39 // pred_check
        %p257 = pneg %p256
      $region42: #{stylespeech_forward.3} parent=39 // pred_check_branch
        %259 = sbr.rel (%p257) target = $region44
      $region43: #{stylespeech_forward.3} parent=39 // pred_region
        %vm260 = vcmask 253952
        %261 = vst.msk [vmem:[#allocation2] sm:$0x1] %vm260, 0.0
        %vm262 = vcmask 0
        %263 = vst.msk [vmem:[#allocation3] sm:$0x1] %vm262, 0.0
      $region44: #{stylespeech_forward.3} parent=39 // pred_fallthru
        _
      %v264 = vlaneseq
      %v265 = vshrl.u32 %v264, 7
      %v266 = vadd.s32 %v265, 8
      %s267 = smul.u32 %s28, 16
      %v268 = vstv %s267
      %v269 = vadd.s32 %v265, %v268
      %v270 = vadd.s32 %v266, %v268
      %s271 = sld [smem:[#allocation5 + %s27]]
      %v272 = vstv %s271
      %vm273 = vcmp.lt.s32.totalorder %v269, %v272
      %vm274 = vcmp.lt.s32.totalorder %v270, %v272
      %v275 = vsel %vm273, 1, 0
      %v276 = vsel %vm274, 1, 0
      %v277 = vcvt.s32.f32 %v275
      %v278 = vcvt.s32.f32 %v276
      %v279 = vld [vmem:[%s251] sm:$0xff]
      %v280 = vld [vmem:[%s251 + $0x8] sm:$0xff]
      %v281 = vld [vmem:[%s2] sm:$0xff]
      %v282 = vld [vmem:[%s2 + $0x8] sm:$0xff]
      %v283 = vld [vmem:[%s2 + $0x10] sm:$0xff]
      %v284 = vld [vmem:[%s2 + $0x18] sm:$0xff]
      %v285 = vld [vmem:[%s2 + $0x20] sm:$0xff]
      %v286 = vld [vmem:[%s2 + $0x28] sm:$0xff]
      %v287 = vld [vmem:[%s2 + $0x30] sm:$0xff]
      %v288 = vld [vmem:[%s2 + $0x38] sm:$0xff]
      %v289 = vld [vmem:[%s2 + $0x40] sm:$0xff]
      %v290 = vld [vmem:[%s2 + $0x48] sm:$0xff]
      %v291 = vld [vmem:[%s3] sm:$0x1]
      %v293 = vlaneseq
      %v294 = vshrl.u32 %v293, 7
      %v295 = vsub.s32 0, %v294
      %v296 = vrot.slane %v291, %v295
      %vm298 = vcmask 654336
      %v300 = vsel %vm298, %v279, 0
      %v303 = vsel %vm298, %v280, 0
      %305 = vmatprep.subr.mxu0 0.0
      %306 = vmatpush1.msra.mxu0 0.0
      %307 = vmatprep.subr.mxu0 0.0
      %308 = vmatpush1.msra.mxu0 0.0
      %309 = vmatprep.subr.mxu0 0.0
      %310 = vmatpush1.msra.mxu0 0.0
      %311 = vmatprep.subr.mxu0 0.0
      %312 = vmatpush1.msra.mxu0 0.0
      %313 = vmatprep.subr.mxu0 0.0
      %314 = vmatpush1.msra.mxu0 0.0
      %315 = vmatprep.subr.mxu0 0.0
      %316 = vmatpush1.msra.mxu0 0.0
      %317 = vmatprep.subr.mxu0 0.0
      %318 = vmatpush1.msra.mxu0 %v290
      %319 = vmatprep.subr.mxu0 0.0
      %320 = vmatpush1.msra.mxu0 %v289
      %321 = vmatprep.subr.mxu0 0.0
      %322 = vmatpush1.msra.mxu0 %v288
      %323 = vmatprep.subr.mxu0 0.0
      %324 = vmatpush1.msra.mxu0 %v287
      %325 = vmatprep.subr.mxu0 0.0
      %326 = vmatpush1.msra.mxu0 %v286
      %327 = vmatprep.subr.mxu0 0.0
      %328 = vmatpush1.msra.mxu0 %v285
      %329 = vmatprep.subr.mxu0 0.0
      %330 = vmatpush1.msra.mxu0 %v284
      %331 = vmatprep.subr.mxu0 0.0
      %332 = vmatpush1.msra.mxu0 %v283
      %333 = vmatprep.subr.mxu0 0.0
      %334 = vmatpush1.msra.mxu0 %v282
      %335 = vmatprep.subr.mxu0 0.0
      %336 = vmatpush1.msra.mxu0 %v281
      %337 = vmatprep.subr.mxu0 0.0
      %338 = vmatpush2.msra.mxu0 0.0
      %339 = vmatprep.subr.mxu0 0.0
      %340 = vmatpush2.msra.mxu0 0.0
      %341 = vmatprep.subr.mxu0 0.0
      %342 = vmatpush2.msra.mxu0 0.0
      %343 = vmatprep.subr.mxu0 0.0
      %344 = vmatpush2.msra.mxu0 0.0
      %345 = vmatprep.subr.mxu0 0.0
      %346 = vmatpush2.msra.mxu0 0.0
      %347 = vmatprep.subr.mxu0 0.0
      %348 = vmatpush2.msra.mxu0 0.0
      %349 = vmatprep.subr.mxu0 0.0
      %350 = vmatpush2.msra.mxu0 0.0
      %351 = vmatprep.subr.mxu0 0.0
      %352 = vmatpush2.msra.mxu0 0.0
      %353 = vmatprep.subr.mxu0 0.0
      %354 = vmatpush2.msra.mxu0 0.0
      %355 = vmatprep.subr.mxu0 0.0
      %356 = vmatpush2.msra.mxu0 0.0
      %357 = vmatprep.subr.mxu0 0.0
      %358 = vmatpush2.msra.mxu0 0.0
      %359 = vmatprep.subr.mxu0 0.0
      %360 = vmatpush2.msra.mxu0 0.0
      %361 = vmatprep.subr.mxu0 0.0
      %362 = vmatpush2.msra.mxu0 0.0
      %363 = vmatprep.subr.mxu0 0.0
      %364 = vmatpush2.msra.mxu0 0.0
      %365 = vmatprep.subr.mxu0 0.0
      %366 = vmatpush2.msra.mxu0 0.0
      %367 = vmatprep.subr.mxu0 0.0
      %368 = vmatpush2.msra.mxu0 0.0
      %369 = vmatprep.mubr.f32.mxu0 0.0
      %370 = vmatmul.mubr.f32.gmra.mxu0 %v300
      %v371 = vpop.f32.mrf.mxu0
      %v372 = vadd.f32 %v296, %v371
      %v373 = vpop.f32.mrf.mxu0
      %374 = vmatprep.mubr.f32.mxu0 0.0
      %375 = vmatmul.mubr.f32.gmra.mxu0 %v303
      %v376 = vpop.f32.mrf.mxu0
      %v377 = vadd.f32 %v296, %v376
      %v378 = vpop.f32.mrf.mxu0
      %379 = vdwg.mxu0
      %v380 = vmax.f32 %v372, 0.0
      %v381 = vmax.f32 %v377, 0.0
      %v382 = vld [vmem:[#allocation2] sm:$0x1]
      %v383 = vmul.f32 %v380, %v277
      %v384 = vmul.f32 %v381, %v278
      %vm385 = vcmask 261120
      %v386 = vsel %vm385, %v383, 0.0
      %v387 = vsel %vm385, %v384, 0.0
      %v388 = vadd.f32 %v386, %v387
      %v389 = vrot.slane %v388, 4
      %v390 = vadd.f32 %v388, %v389
      %v391 = vrot.slane %v390, 2
      %v392 = vadd.f32 %v390, %v391
      %v393 = vrot.slane %v392, 1
      %v394 = vadd.f32 %v392, %v393
      %v395 = vadd.f32 %v382, %v394
      %vm396 = vcmask 253952
      %397 = vst.msk [vmem:[#allocation2] sm:$0x1] %vm396, %v395
      %v398 = vld [vmem:[#allocation3] sm:$0x1]
      %vm399 = vcmask 7168
      %v400 = vsel %vm399, %v277, 0.0
      %v401 = vsel %vm399, %v278, 0.0
      %v402 = vadd.f32 %v400, %v401
      %403 = vadd.xlane.f32.xlu0 %v402
      %v404 = vpop.xlane.xlu0 %403
      %v405 = vrot.slane %v404, 4
      %v406 = vadd.f32 %v404, %v405
      %v407 = vrot.slane %v406, 2
      %v408 = vadd.f32 %v406, %v407
      %v409 = vrot.slane %v408, 1
      %v410 = vadd.f32 %v408, %v409
      %s411 = vtos %v410
      %v412 = vstv %s411
      %v413 = vadd.f32 %v398, %v412
      %vm414 = vcmask 0
      %415 = vst.msk [vmem:[#allocation3] sm:$0x1] %vm414, %v413
      // Predicated region
      $region45: #{stylespeech_forward.3} parent=39 // pred_check
        %p416 = pneg %p256
      $region46: #{stylespeech_forward.3} parent=39 // pred_check_branch
        %418 = sbr.rel (%p416) target = $region48
      $region47: #{stylespeech_forward.3} parent=39 // pred_region
        %v419 = vld [vmem:[#allocation2] sm:$0x1]
        %v420 = vld [vmem:[#allocation3] sm:$0x1]
        %v421 = vmax.f32 %v420, 1.0
        %423 = vset.pattern.permute.xlu0 0
        %424 = vperm.xlu0 %423, %v421
        %v425 = vpop.permute.xlu0 %424
        %v427 = vlaneseq
        %v428 = vshrl.u32 %v427, 7
        %v429 = vsub.s32 0, %v428
        %v430 = vrot.slane %v425, %v429
        %v431 = vrcp.pop %v430
        %v432 = vmul.f32 %v419, %v431
        %v433 = vld [vmem:[%s4] sm:$0xff]
        %v434 = vld [vmem:[%s4 + $0x8] sm:$0xff]
        %v435 = vld [vmem:[%s4 + $0x10] sm:$0xff]
        %v436 = vld [vmem:[%s4 + $0x18] sm:$0xff]
        %v437 = vld [vmem:[%s5] sm:$0x1]
        %v439 = vsel %vm385, %v432, 0
        %441 = vmatprep.subr.mxu0 0.0
        %442 = vmatpush1.msra.mxu0 0.0
        %443 = vmatprep.subr.mxu0 0.0
        %444 = vmatpush1.msra.mxu0 0.0
        %445 = vmatprep.subr.mxu0 0.0
        %446 = vmatpush1.msra.mxu0 0.0
        %447 = vmatprep.subr.mxu0 0.0
        %448 = vmatpush1.msra.mxu0 0.0
        %449 = vmatprep.subr.mxu0 0.0
        %450 = vmatpush1.msra.mxu0 0.0
        %451 = vmatprep.subr.mxu0 0.0
        %452 = vmatpush1.msra.mxu0 0.0
        %453 = vmatprep.subr.mxu0 0.0
        %454 = vmatpush1.msra.mxu0 0.0
        %455 = vmatprep.subr.mxu0 0.0
        %456 = vmatpush1.msra.mxu0 0.0
        %457 = vmatprep.subr.mxu0 0.0
        %458 = vmatpush1.msra.mxu0 0.0
        %459 = vmatprep.subr.mxu0 0.0
        %460 = vmatpush1.msra.mxu0 0.0
        %461 = vmatprep.subr.mxu0 0.0
        %462 = vmatpush1.msra.mxu0 0.0
        %463 = vmatprep.subr.mxu0 0.0
        %464 = vmatpush1.msra.mxu0 0.0
        %465 = vmatprep.subr.mxu0 0.0
        %466 = vmatpush1.msra.mxu0 %v436
        %467 = vmatprep.subr.mxu0 0.0
        %468 = vmatpush1.msra.mxu0 %v435
        %469 = vmatprep.subr.mxu0 0.0
        %470 = vmatpush1.msra.mxu0 %v434
        %471 = vmatprep.subr.mxu0 0.0
        %472 = vmatpush1.msra.mxu0 %v433
        %473 = vmatprep.subr.mxu0 0.0
        %474 = vmatpush2.msra.mxu0 0.0
        %475 = vmatprep.subr.mxu0 0.0
        %476 = vmatpush2.msra.mxu0 0.0
        %477 = vmatprep.subr.mxu0 0.0
        %478 = vmatpush2.msra.mxu0 0.0
        %479 = vmatprep.subr.mxu0 0.0
        %480 = vmatpush2.msra.mxu0 0.0
        %481 = vmatprep.subr.mxu0 0.0
        %482 = vmatpush2.msra.mxu0 0.0
        %483 = vmatprep.subr.mxu0 0.0
        %484 = vmatpush2.msra.mxu0 0.0
        %485 = vmatprep.subr.mxu0 0.0
        %486 = vmatpush2.msra.mxu0 0.0
        %487 = vmatprep.subr.mxu0 0.0
        %488 = vmatpush2.msra.mxu0 0.0
        %489 = vmatprep.subr.mxu0 0.0
        %490 = vmatpush2.msra.mxu0 0.0
        %491 = vmatprep.subr.mxu0 0.0
        %492 = vmatpush2.msra.mxu0 0.0
        %493 = vmatprep.subr.mxu0 0.0
        %494 = vmatpush2.msra.mxu0 0.0
        %495 = vmatprep.subr.mxu0 0.0
        %496 = vmatpush2.msra.mxu0 0.0
        %497 = vmatprep.subr.mxu0 0.0
        %498 = vmatpush2.msra.mxu0 0.0
        %499 = vmatprep.subr.mxu0 0.0
        %500 = vmatpush2.msra.mxu0 0.0
        %501 = vmatprep.subr.mxu0 0.0
        %502 = vmatpush2.msra.mxu0 0.0
        %503 = vmatprep.subr.mxu0 0.0
        %504 = vmatpush2.msra.mxu0 0.0
        %505 = vmatprep.mubr.f32.mxu0 0.0
        %506 = vmatmul.mubr.f32.gmra.mxu0 %v439
        %v507 = vpop.f32.mrf.mxu0
        %v508 = vadd.f32 %v437, %v507
        %v509 = vpop.f32.mrf.mxu0
        %510 = vdwg.mxu0
        %511 = vst.msk [vmem:[%s255] sm:$0x1] %vm396, %v508
      $region48: #{stylespeech_forward.3} parent=39 // pred_fallthru
        _
      %p512 = scmp.lt.s32.totalorder %s27, 1
      %s513 = scalar_select %p512, %s27, 1
      %s514 = scalar_lea.vmem %s6, %s513
      // Predicated region
      $region49: #{stylespeech_forward.3} parent=39 // pred_check
        %p515 = pneg %p165
      $region50: #{stylespeech_forward.3} parent=39 // pred_check_branch
        %517 = sbr.rel (%p515) target = $region52
      $region51: #{stylespeech_forward.3} parent=39 // pred_region
        _
      $region52: #{stylespeech_forward.3} parent=39 // pred_fallthru
        _
    $region40: #{stylespeech_forward.3} parent=5 // pred_fallthru
      _
    %p518 = scmp.le.s32.totalorder 2, %s18
    // Predicated region
    $region53: #{stylespeech_forward.3} parent=5 // pred_check
      %p519 = pneg %p518
    $region54: #{stylespeech_forward.3} parent=5 // pred_check_branch
      %521 = sbr.rel (%p519) target = $region56
    $region55: #{stylespeech_forward.3} parent=5 // pred_region
      %s522 = ssub.s32 %s18, 2
      // Predicated region
      $region57: #{stylespeech_forward.3} parent=55 // pred_check
        %p523 = pneg %p171
      $region58: #{stylespeech_forward.3} parent=55 // pred_check_branch
        %525 = sbr.rel (%p523) target = $region60
      $region59: #{stylespeech_forward.3} parent=55 // pred_region
        %p526 = scmp.lt.s32.totalorder %s29, 1
        %s527 = scalar_select %p526, %s29, 1
        %s528 = scalar_lea.vmem %s6, %s527
      $region60: #{stylespeech_forward.3} parent=55 // pred_fallthru
        _
    $region56: #{stylespeech_forward.3} parent=5 // pred_fallthru
      _
  $region6: #{stylespeech_forward.3} parent=0 // loop_footer
    %s22 = sadd.s32 1, %s18
  $region7: #{stylespeech_forward.3} parent=0 // loop_footer_branch
    %17 = sbr.rel target = $region3
  $region8: #{stylespeech_forward.3} parent=0 // loop_exit
    _

// kernel: stylespeech_forward.5
$region0: #{stylespeech_forward.5}
  #allocation0 [shape = 'u32[]', space=smem, size = 0x4, offset = 0x4, fixed_abs, tag = 'smem constant byte address 0x4 - core index']
  #allocation1 [shape = 'u32[144,128]{1,0:T(1,128)}', space=vmem, size = 0x12000, scoped, tag = 'internal scratch']
  #allocation2 [shape = 's32[1]{0}', space=sflag, size = 0x4, scoped, tag = 'scoped memory for stylespeech_forward.5']
  #allocation3 [shape = 'u8[512]{0}', space=smem, size = 0x200, scoped, tag = 'prefetched SMEM operand 0']
  %s0 = inlined_call_operand.vmem [shape: s32[2], index: 0, kind: input, shape index: {}]
  %s1 = inlined_call_operand.vmem [shape: f32[2,16,32], index: 1, kind: input, shape index: {}]
  %s2 = inlined_call_operand.vmem [shape: f32[2,1,32], index: 2, kind: input, shape index: {}]
  %s3 = inlined_call_operand.vmem [shape: f32[2,1,64], index: 3, kind: input, shape index: {}]
  %s4 = inlined_call_operand.vmem [shape: f32[2,16,40], index: 4, kind: input, shape index: {}]
  %s5 = inlined_call_operand.vmem [shape: f32[2,16,40], index: 5, kind: input, shape index: {}]
  %s6 = inlined_call_operand.vmem [shape: f32[32,32], index: 6, kind: input, shape index: {}]
  %s7 = inlined_call_operand.vmem [shape: f32[32,80], index: 7, kind: input, shape index: {}]
  %s8 = inlined_call_operand.vmem [shape: f32[32,80], index: 8, kind: input, shape index: {}]
  %s9 = inlined_call_operand.vmem [shape: f32[1,80], index: 9, kind: input, shape index: {}]
  %s10 = inlined_call_operand.vmem [shape: f32[1,80], index: 10, kind: input, shape index: {}]
  %s11 = inlined_call_operand.vmem [shape: f32[40,64], index: 11, kind: input, shape index: {}]
  %s12 = inlined_call_operand.vmem [shape: f32[80,64], index: 12, kind: input, shape index: {}]
  %s13 = inlined_call_operand.vmem [shape: f32[32,64], index: 13, kind: input, shape index: {}]
  %s14 = inlined_call_operand.vmem [shape: f32[64,40], index: 14, kind: input, shape index: {}]
  %s15 = inlined_call_operand.vmem [shape: f32[1,40], index: 15, kind: input, shape index: {}]
  %s16 = inlined_call_operand.vmem [shape: f32[64,40], index: 16, kind: input, shape index: {}]
  %s17 = inlined_call_operand.vmem [shape: f32[1,40], index: 17, kind: input, shape index: {}]
  %s18 = inlined_call_operand.hbm [shape: f32[2,16,80], index: 18, kind: output, shape index: {0}]
  %s19 = inlined_call_operand.vmem [shape: f32[2,16,40], index: 19, kind: output, shape index: {1}]
  %s20 = inlined_call_operand.vmem [shape: f32[2,16,40], index: 20, kind: output, shape index: {2}]
  %s21 = inlined_call_operand.vmem [shape: f32[2,1,1], index: 21, kind: output, shape index: {3}]
  %22 = xla_tuple %s18, %s19, %s20, %s21
  %s23 = sld [smem:[#allocation0]]
  $region129: #{stylespeech_forward.5} parent=0
    _
  %s25 = ssub.s32 1, %s23
  %s26 = scalar_select 0, %s25, %s23
  %s27 = sshll.u32 %s0, 4
  %s28 = int_to_ptr.vmem [resolvable:$true] %s27
  %30 = dma.vmem_to_smem %s28, 16, [#allocation3], [#allocation2]
  %31 = dma.done [#allocation2], 16
  %32 = sfence
  $region1: #{stylespeech_forward.5} parent=0
    #allocation4 [shape = 'u8[16384]{0}', space=vmem, size = 0x4000, scoped, tag = 'output window, operand 0']
    #allocation5 [shape = 's32[2]{0}', space=sflag, size = 0x8, scoped, tag = 'scoped memory for stylespeech_forward.5']
    %33 = vsyncpa [#allocation5], 0
    %s34 = scalar_lea.sflag [#allocation5], 1
    %35 = vsyncpa %s34, 0
    loop: start=0, step=1, limit=4
    $region2: #{stylespeech_forward.5} parent=1 // loop_pre_header
      _
    $region3: #{stylespeech_forward.5} parent=1 // loop_header
      %s37 = sphi 0, %s41
      %p38 = scmp.ge.s32.totalorder %s37, 4
      %s44 = sphi 0, %s56
      %s45 = sphi 0, %s52
      %s46 = sphi 0, %s44
      %s47 = sphi 0, %s45
      %s48 = sphi 0, %s46
      %s49 = sphi 0, %s47
      %s61 = sphi 0, %s63
      %s64 = sphi 0, %s61
      %s65 = sphi 0, %s64
      %s81 = sphi 0, %s65
      %s87 = sphi 0, %s89
      %s90 = sphi 0, %s87
      %s91 = sphi 0, %s90
      %s107 = sphi 0, %s91
      %s113 = sphi 0, %s115
      %s116 = sphi 0, %s113
      %s117 = sphi 0, %s116
      %s133 = sphi 0, %s117
      %s141 = sphi 0, %s143
      %s144 = sphi 0, %s141
      %s145 = sphi 0, %s144
      %s161 = sphi 0, %s145
      %s169 = sphi 0, %s171
      %s172 = sphi 0, %s169
      %s173 = sphi 0, %s172
      %s189 = sphi 0, %s173
      %s193 = sphi 0, %s193
      %s195 = sphi 0, %s193
      %s196 = sphi 0, %s195
      %s210 = sphi 0, %s196
      %s214 = sphi 0, %s214
      %s216 = sphi 0, %s214
      %s217 = sphi 0, %s216
      %s231 = sphi 0, %s217
      %s235 = sphi 0, %s235
      %s237 = sphi 0, %s235
      %s238 = sphi 0, %s237
      %s252 = sphi 0, %s238
      %s256 = sphi 0, %s256
      %s258 = sphi 0, %s256
      %s259 = sphi 0, %s258
      %s273 = sphi 0, %s259
      %s277 = sphi 0, %s277
      %s279 = sphi 0, %s277
      %s280 = sphi 0, %s279
      %s294 = sphi 0, %s280
      %s298 = sphi 0, %s298
      %s300 = sphi 0, %s298
      %s301 = sphi 0, %s300
      %s315 = sphi 0, %s301
      %s319 = sphi 0, %s319
      %s321 = sphi 0, %s319
      %s322 = sphi 0, %s321
      %s336 = sphi 0, %s322
      %s340 = sphi 0, %s340
      %s342 = sphi 0, %s340
      %s343 = sphi 0, %s342
      %s357 = sphi 0, %s343
      %s361 = sphi 0, %s361
      %s363 = sphi 0, %s361
      %s364 = sphi 0, %s363
      %s378 = sphi 0, %s364
      %s382 = sphi 0, %s382
      %s384 = sphi 0, %s382
      %s385 = sphi 0, %s384
      %s399 = sphi 0, %s385
      %s403 = sphi 0, %s403
      %s405 = sphi 0, %s403
      %s406 = sphi 0, %s405
      %s420 = sphi 0, %s406
      %s424 = sphi 0, %s424
      %s426 = sphi 0, %s424
      %s427 = sphi 0, %s426
      %s441 = sphi 0, %s427
      %s449 = sphi 0, %s451
      %s452 = sphi 0, %s449
      %s453 = sphi 0, %s452
      %s469 = sphi 0, %s453
      %s477 = sphi 0, %s479
      %s480 = sphi 0, %s477
      %s481 = sphi 0, %s480
      %s497 = sphi 0, %s481
      %s505 = sphi 0, %s507
      %s508 = sphi 0, %s505
      %s509 = sphi 0, %s508
      %s525 = sphi 0, %s509
      %s531 = sphi 0, %s533
      %s534 = sphi 0, %s531
      %s535 = sphi 0, %s534
      %s551 = sphi 0, %s535
    $region4: #{stylespeech_forward.5} parent=1 // loop_header_branch
      %40 = sbr.rel (%p38) target = $region8
    $region5: #{stylespeech_forward.5} parent=1 // loop_body
      %s42 = ssub.s32 %s37, 1
      %s43 = ssub.s32 %s37, 2
      %s50 = sadd.s32 1, %s45
      %p51 = scmp.ge.s32.totalorder %s50, 1
      %s52 = scalar_select %p51, 0, %s50
      %s53 = sadd.s32 1, %s44
      %s54 = scalar_select %p51, %s53, %s44
      %p55 = scmp.ge.s32.totalorder %s54, 2
      %s56 = scalar_select %p55, 0, %s54
      %s57 = ssub.s32 %s44, %s56
      %s58 = ssub.s32 %s45, %s52
      %s59 = sor.u32 %s57, %s58
      %p60 = scmp.eq.s32.totalorder %s59, 0
      %s62 = sadd.s32 %s61, 1
      %s63 = scalar_select %p60, %s61, %s62
      %p66 = pneg %p60
      %p67 = scmp.eq.s32.totalorder %s37, 1
      %p68 = por %p66, %p67
      %p69 = scmp.ne.s32.totalorder %s61, %s64
      %p70 = scmp.eq.s32.totalorder %s37, 0
      %p71 = por %p69, %p70
      %p72 = scmp.ne.s32.totalorder %s61, %s64
      %p73 = scmp.eq.s32.totalorder %s42, 1
      %p74 = por %p72, %p73
      %p75 = scmp.ne.s32.totalorder %s64, %s65
      %p76 = scmp.eq.s32.totalorder %s42, 0
      %p77 = por %p75, %p76
      %p78 = scmp.ne.s32.totalorder %s64, %s65
      %p79 = scmp.eq.s32.totalorder %s43, 1
      %p80 = por %p78, %p79
      %p82 = scmp.ne.s32.totalorder %s65, %s81
      %p83 = scmp.eq.s32.totalorder %s43, 0
      %p84 = por %p82, %p83
      %s85 = ssub.s32 %s44, %s56
      %p86 = scmp.eq.s32.totalorder %s85, 0
      %s88 = sadd.s32 %s87, 1
      %s89 = scalar_select %p86, %s87, %s88
      %p92 = pneg %p86
      %p93 = scmp.eq.s32.totalorder %s37, 1
      %p94 = por %p92, %p93
      %p95 = scmp.ne.s32.totalorder %s87, %s90
      %p96 = scmp.eq.s32.totalorder %s37, 0
      %p97 = por %p95, %p96
      %p98 = scmp.ne.s32.totalorder %s87, %s90
      %p99 = scmp.eq.s32.totalorder %s42, 1
      %p100 = por %p98, %p99
      %p101 = scmp.ne.s32.totalorder %s90, %s91
      %p102 = scmp.eq.s32.totalorder %s42, 0
      %p103 = por %p101, %p102
      %p104 = scmp.ne.s32.totalorder %s90, %s91
      %p105 = scmp.eq.s32.totalorder %s43, 1
      %p106 = por %p104, %p105
      %p108 = scmp.ne.s32.totalorder %s91, %s107
      %p109 = scmp.eq.s32.totalorder %s43, 0
      %p110 = por %p108, %p109
      %s111 = ssub.s32 %s44, %s56
      %p112 = scmp.eq.s32.totalorder %s111, 0
      %s114 = sadd.s32 %s113, 1
      %s115 = scalar_select %p112, %s113, %s114
      %p118 = pneg %p112
      %p119 = scmp.eq.s32.totalorder %s37, 1
      %p120 = por %p118, %p119
      %p121 = scmp.ne.s32.totalorder %s113, %s116
      %p122 = scmp.eq.s32.totalorder %s37, 0
      %p123 = por %p121, %p122
      %p124 = scmp.ne.s32.totalorder %s113, %s116
      %p125 = scmp.eq.s32.totalorder %s42, 1
      %p126 = por %p124, %p125
      %p127 = scmp.ne.s32.totalorder %s116, %s117
      %p128 = scmp.eq.s32.totalorder %s42, 0
      %p129 = por %p127, %p128
      %p130 = scmp.ne.s32.totalorder %s116, %s117
      %p131 = scmp.eq.s32.totalorder %s43, 1
      %p132 = por %p130, %p131
      %p134 = scmp.ne.s32.totalorder %s117, %s133
      %p135 = scmp.eq.s32.totalorder %s43, 0
      %p136 = por %p134, %p135
      %s137 = ssub.s32 %s44, %s56
      %s138 = ssub.s32 %s45, %s52
      %s139 = sor.u32 %s137, %s138
      %p140 = scmp.eq.s32.totalorder %s139, 0
      %s142 = sadd.s32 %s141, 1
      %s143 = scalar_select %p140, %s141, %s142
      %p146 = pneg %p140
      %p147 = scmp.eq.s32.totalorder %s37, 1
      %p148 = por %p146, %p147
      %p149 = scmp.ne.s32.totalorder %s141, %s144
      %p150 = scmp.eq.s32.totalorder %s37, 0
      %p151 = por %p149, %p150
      %p152 = scmp.ne.s32.totalorder %s141, %s144
      %p153 = scmp.eq.s32.totalorder %s42, 1
      %p154 = por %p152, %p153
      %p155 = scmp.ne.s32.totalorder %s144, %s145
      %p156 = scmp.eq.s32.totalorder %s42, 0
      %p157 = por %p155, %p156
      %p158 = scmp.ne.s32.totalorder %s144, %s145
      %p159 = scmp.eq.s32.totalorder %s43, 1
      %p160 = por %p158, %p159
      %p162 = scmp.ne.s32.totalorder %s145, %s161
      %p163 = scmp.eq.s32.totalorder %s43, 0
      %p164 = por %p162, %p163
      %s165 = ssub.s32 %s44, %s56
      %s166 = ssub.s32 %s45, %s52
      %s167 = sor.u32 %s165, %s166
      %p168 = scmp.eq.s32.totalorder %s167, 0
      %s170 = sadd.s32 %s169, 1
      %s171 = scalar_select %p168, %s169, %s170
      %p174 = pneg %p168
      %p175 = scmp.eq.s32.totalorder %s37, 1
      %p176 = por %p174, %p175
      %p177 = scmp.ne.s32.totalorder %s169, %s172
      %p178 = scmp.eq.s32.totalorder %s37, 0
      %p179 = por %p177, %p178
      %p180 = scmp.ne.s32.totalorder %s169, %s172
      %p181 = scmp.eq.s32.totalorder %s42, 1
      %p182 = por %p180, %p181
      %p183 = scmp.ne.s32.totalorder %s172, %s173
      %p184 = scmp.eq.s32.totalorder %s42, 0
      %p185 = por %p183, %p184
      %p186 = scmp.ne.s32.totalorder %s172, %s173
      %p187 = scmp.eq.s32.totalorder %s43, 1
      %p188 = por %p186, %p187
      %p190 = scmp.ne.s32.totalorder %s173, %s189
      %p191 = scmp.eq.s32.totalorder %s43, 0
      %p192 = por %p190, %p191
      %s194 = sadd.s32 %s193, 1
      %p197 = scmp.eq.s32.totalorder %s37, 1
      %p198 = scmp.ne.s32.totalorder %s193, %s195
      %p199 = scmp.eq.s32.totalorder %s37, 0
      %p200 = por %p198, %p199
      %p201 = scmp.ne.s32.totalorder %s193, %s195
      %p202 = scmp.eq.s32.totalorder %s42, 1
      %p203 = por %p201, %p202
      %p204 = scmp.ne.s32.totalorder %s195, %s196
      %p205 = scmp.eq.s32.totalorder %s42, 0
      %p206 = por %p204, %p205
      %p207 = scmp.ne.s32.totalorder %s195, %s196
      %p208 = scmp.eq.s32.totalorder %s43, 1
      %p209 = por %p207, %p208
      %p211 = scmp.ne.s32.totalorder %s196, %s210
      %p212 = scmp.eq.s32.totalorder %s43, 0
      %p213 = por %p211, %p212
      %s215 = sadd.s32 %s214, 1
      %p218 = scmp.eq.s32.totalorder %s37, 1
      %p219 = scmp.ne.s32.totalorder %s214, %s216
      %p220 = scmp.eq.s32.totalorder %s37, 0
      %p221 = por %p219, %p220
      %p222 = scmp.ne.s32.totalorder %s214, %s216
      %p223 = scmp.eq.s32.totalorder %s42, 1
      %p224 = por %p222, %p223
      %p225 = scmp.ne.s32.totalorder %s216, %s217
      %p226 = scmp.eq.s32.totalorder %s42, 0
      %p227 = por %p225, %p226
      %p228 = scmp.ne.s32.totalorder %s216, %s217
      %p229 = scmp.eq.s32.totalorder %s43, 1
      %p230 = por %p228, %p229
      %p232 = scmp.ne.s32.totalorder %s217, %s231
      %p233 = scmp.eq.s32.totalorder %s43, 0
      %p234 = por %p232, %p233
      %s236 = sadd.s32 %s235, 1
      %p239 = scmp.eq.s32.totalorder %s37, 1
      %p240 = scmp.ne.s32.totalorder %s235, %s237
      %p241 = scmp.eq.s32.totalorder %s37, 0
      %p242 = por %p240, %p241
      %p243 = scmp.ne.s32.totalorder %s235, %s237
      %p244 = scmp.eq.s32.totalorder %s42, 1
      %p245 = por %p243, %p244
      %p246 = scmp.ne.s32.totalorder %s237, %s238
      %p247 = scmp.eq.s32.totalorder %s42, 0
      %p248 = por %p246, %p247
      %p249 = scmp.ne.s32.totalorder %s237, %s238
      %p250 = scmp.eq.s32.totalorder %s43, 1
      %p251 = por %p249, %p250
      %p253 = scmp.ne.s32.totalorder %s238, %s252
      %p254 = scmp.eq.s32.totalorder %s43, 0
      %p255 = por %p253, %p254
      %s257 = sadd.s32 %s256, 1
      %p260 = scmp.eq.s32.totalorder %s37, 1
      %p261 = scmp.ne.s32.totalorder %s256, %s258
      %p262 = scmp.eq.s32.totalorder %s37, 0
      %p263 = por %p261, %p262
      %p264 = scmp.ne.s32.totalorder %s256, %s258
      %p265 = scmp.eq.s32.totalorder %s42, 1
      %p266 = por %p264, %p265
      %p267 = scmp.ne.s32.totalorder %s258, %s259
      %p268 = scmp.eq.s32.totalorder %s42, 0
      %p269 = por %p267, %p268
      %p270 = scmp.ne.s32.totalorder %s258, %s259
      %p271 = scmp.eq.s32.totalorder %s43, 1
      %p272 = por %p270, %p271
      %p274 = scmp.ne.s32.totalorder %s259, %s273
      %p275 = scmp.eq.s32.totalorder %s43, 0
      %p276 = por %p274, %p275
      %s278 = sadd.s32 %s277, 1
      %p281 = scmp.eq.s32.totalorder %s37, 1
      %p282 = scmp.ne.s32.totalorder %s277, %s279
      %p283 = scmp.eq.s32.totalorder %s37, 0
      %p284 = por %p282, %p283
      %p285 = scmp.ne.s32.totalorder %s277, %s279
      %p286 = scmp.eq.s32.totalorder %s42, 1
      %p287 = por %p285, %p286
      %p288 = scmp.ne.s32.totalorder %s279, %s280
      %p289 = scmp.eq.s32.totalorder %s42, 0
      %p290 = por %p288, %p289
      %p291 = scmp.ne.s32.totalorder %s279, %s280
      %p292 = scmp.eq.s32.totalorder %s43, 1
      %p293 = por %p291, %p292
      %p295 = scmp.ne.s32.totalorder %s280, %s294
      %p296 = scmp.eq.s32.totalorder %s43, 0
      %p297 = por %p295, %p296
      %s299 = sadd.s32 %s298, 1
      %p302 = scmp.eq.s32.totalorder %s37, 1
      %p303 = scmp.ne.s32.totalorder %s298, %s300
      %p304 = scmp.eq.s32.totalorder %s37, 0
      %p305 = por %p303, %p304
      %p306 = scmp.ne.s32.totalorder %s298, %s300
      %p307 = scmp.eq.s32.totalorder %s42, 1
      %p308 = por %p306, %p307
      %p309 = scmp.ne.s32.totalorder %s300, %s301
      %p310 = scmp.eq.s32.totalorder %s42, 0
      %p311 = por %p309, %p310
      %p312 = scmp.ne.s32.totalorder %s300, %s301
      %p313 = scmp.eq.s32.totalorder %s43, 1
      %p314 = por %p312, %p313
      %p316 = scmp.ne.s32.totalorder %s301, %s315
      %p317 = scmp.eq.s32.totalorder %s43, 0
      %p318 = por %p316, %p317
      %s320 = sadd.s32 %s319, 1
      %p323 = scmp.eq.s32.totalorder %s37, 1
      %p324 = scmp.ne.s32.totalorder %s319, %s321
      %p325 = scmp.eq.s32.totalorder %s37, 0
      %p326 = por %p324, %p325
      %p327 = scmp.ne.s32.totalorder %s319, %s321
      %p328 = scmp.eq.s32.totalorder %s42, 1
      %p329 = por %p327, %p328
      %p330 = scmp.ne.s32.totalorder %s321, %s322
      %p331 = scmp.eq.s32.totalorder %s42, 0
      %p332 = por %p330, %p331
      %p333 = scmp.ne.s32.totalorder %s321, %s322
      %p334 = scmp.eq.s32.totalorder %s43, 1
      %p335 = por %p333, %p334
      %p337 = scmp.ne.s32.totalorder %s322, %s336
      %p338 = scmp.eq.s32.totalorder %s43, 0
      %p339 = por %p337, %p338
      %s341 = sadd.s32 %s340, 1
      %p344 = scmp.eq.s32.totalorder %s37, 1
      %p345 = scmp.ne.s32.totalorder %s340, %s342
      %p346 = scmp.eq.s32.totalorder %s37, 0
      %p347 = por %p345, %p346
      %p348 = scmp.ne.s32.totalorder %s340, %s342
      %p349 = scmp.eq.s32.totalorder %s42, 1
      %p350 = por %p348, %p349
      %p351 = scmp.ne.s32.totalorder %s342, %s343
      %p352 = scmp.eq.s32.totalorder %s42, 0
      %p353 = por %p351, %p352
      %p354 = scmp.ne.s32.totalorder %s342, %s343
      %p355 = scmp.eq.s32.totalorder %s43, 1
      %p356 = por %p354, %p355
      %p358 = scmp.ne.s32.totalorder %s343, %s357
      %p359 = scmp.eq.s32.totalorder %s43, 0
      %p360 = por %p358, %p359
      %s362 = sadd.s32 %s361, 1
      %p365 = scmp.eq.s32.totalorder %s37, 1
      %p366 = scmp.ne.s32.totalorder %s361, %s363
      %p367 = scmp.eq.s32.totalorder %s37, 0
      %p368 = por %p366, %p367
      %p369 = scmp.ne.s32.totalorder %s361, %s363
      %p370 = scmp.eq.s32.totalorder %s42, 1
      %p371 = por %p369, %p370
      %p372 = scmp.ne.s32.totalorder %s363, %s364
      %p373 = scmp.eq.s32.totalorder %s42, 0
      %p374 = por %p372, %p373
      %p375 = scmp.ne.s32.totalorder %s363, %s364
      %p376 = scmp.eq.s32.totalorder %s43, 1
      %p377 = por %p375, %p376
      %p379 = scmp.ne.s32.totalorder %s364, %s378
      %p380 = scmp.eq.s32.totalorder %s43, 0
      %p381 = por %p379, %p380
      %s383 = sadd.s32 %s382, 1
      %p386 = scmp.eq.s32.totalorder %s37, 1
      %p387 = scmp.ne.s32.totalorder %s382, %s384
      %p388 = scmp.eq.s32.totalorder %s37, 0
      %p389 = por %p387, %p388
      %p390 = scmp.ne.s32.totalorder %s382, %s384
      %p391 = scmp.eq.s32.totalorder %s42, 1
      %p392 = por %p390, %p391
      %p393 = scmp.ne.s32.totalorder %s384, %s385
      %p394 = scmp.eq.s32.totalorder %s42, 0
      %p395 = por %p393, %p394
      %p396 = scmp.ne.s32.totalorder %s384, %s385
      %p397 = scmp.eq.s32.totalorder %s43, 1
      %p398 = por %p396, %p397
      %p400 = scmp.ne.s32.totalorder %s385, %s399
      %p401 = scmp.eq.s32.totalorder %s43, 0
      %p402 = por %p400, %p401
      %s404 = sadd.s32 %s403, 1
      %p407 = scmp.eq.s32.totalorder %s37, 1
      %p408 = scmp.ne.s32.totalorder %s403, %s405
      %p409 = scmp.eq.s32.totalorder %s37, 0
      %p410 = por %p408, %p409
      %p411 = scmp.ne.s32.totalorder %s403, %s405
      %p412 = scmp.eq.s32.totalorder %s42, 1
      %p413 = por %p411, %p412
      %p414 = scmp.ne.s32.totalorder %s405, %s406
      %p415 = scmp.eq.s32.totalorder %s42, 0
      %p416 = por %p414, %p415
      %p417 = scmp.ne.s32.totalorder %s405, %s406
      %p418 = scmp.eq.s32.totalorder %s43, 1
      %p419 = por %p417, %p418
      %p421 = scmp.ne.s32.totalorder %s406, %s420
      %p422 = scmp.eq.s32.totalorder %s43, 0
      %p423 = por %p421, %p422
      %s425 = sadd.s32 %s424, 1
      %p428 = scmp.eq.s32.totalorder %s37, 1
      %p429 = scmp.ne.s32.totalorder %s424, %s426
      %p430 = scmp.eq.s32.totalorder %s37, 0
      %p431 = por %p429, %p430
      %p432 = scmp.ne.s32.totalorder %s424, %s426
      %p433 = scmp.eq.s32.totalorder %s42, 1
      %p434 = por %p432, %p433
      %p435 = scmp.ne.s32.totalorder %s426, %s427
      %p436 = scmp.eq.s32.totalorder %s42, 0
      %p437 = por %p435, %p436
      %p438 = scmp.ne.s32.totalorder %s426, %s427
      %p439 = scmp.eq.s32.totalorder %s43, 1
      %p440 = por %p438, %p439
      %p442 = scmp.ne.s32.totalorder %s427, %s441
      %p443 = scmp.eq.s32.totalorder %s43, 0
      %p444 = por %p442, %p443
      %s445 = ssub.s32 %s44, %s56
      %s446 = ssub.s32 %s45, %s52
      %s447 = sor.u32 %s445, %s446
      %p448 = scmp.eq.s32.totalorder %s447, 0
      %s450 = sadd.s32 %s449, 1
      %s451 = scalar_select %p448, %s449, %s450
      %p454 = pneg %p448
      %p455 = scmp.eq.s32.totalorder %s37, 1
      %p456 = por %p454, %p455
      %p457 = scmp.ne.s32.totalorder %s449, %s452
      %p458 = scmp.eq.s32.totalorder %s37, 0
      %p459 = por %p457, %p458
      %p460 = scmp.ne.s32.totalorder %s449, %s452
      %p461 = scmp.eq.s32.totalorder %s42, 1
      %p462 = por %p460, %p461
      %p463 = scmp.ne.s32.totalorder %s452, %s453
      %p464 = scmp.eq.s32.totalorder %s42, 0
      %p465 = por %p463, %p464
      %p466 = scmp.ne.s32.totalorder %s452, %s453
      %p467 = scmp.eq.s32.totalorder %s43, 1
      %p468 = por %p466, %p467
      %p470 = scmp.ne.s32.totalorder %s453, %s469
      %p471 = scmp.eq.s32.totalorder %s43, 0
      %p472 = por %p470, %p471
      %s473 = ssub.s32 %s44, %s56
      %s474 = ssub.s32 %s45, %s52
      %s475 = sor.u32 %s473, %s474
      %p476 = scmp.eq.s32.totalorder %s475, 0
      %s478 = sadd.s32 %s477, 1
      %s479 = scalar_select %p476, %s477, %s478
      %p482 = pneg %p476
      %p483 = scmp.eq.s32.totalorder %s37, 1
      %p484 = por %p482, %p483
      %p485 = scmp.ne.s32.totalorder %s477, %s480
      %p486 = scmp.eq.s32.totalorder %s37, 0
      %p487 = por %p485, %p486
      %p488 = scmp.ne.s32.totalorder %s477, %s480
      %p489 = scmp.eq.s32.totalorder %s42, 1
      %p490 = por %p488, %p489
      %p491 = scmp.ne.s32.totalorder %s480, %s481
      %p492 = scmp.eq.s32.totalorder %s42, 0
      %p493 = por %p491, %p492
      %p494 = scmp.ne.s32.totalorder %s480, %s481
      %p495 = scmp.eq.s32.totalorder %s43, 1
      %p496 = por %p494, %p495
      %p498 = scmp.ne.s32.totalorder %s481, %s497
      %p499 = scmp.eq.s32.totalorder %s43, 0
      %p500 = por %p498, %p499
      %s501 = ssub.s32 %s44, %s56
      %s502 = ssub.s32 %s45, %s52
      %s503 = sor.u32 %s501, %s502
      %p504 = scmp.eq.s32.totalorder %s503, 0
      %s506 = sadd.s32 %s505, 1
      %s507 = scalar_select %p504, %s505, %s506
      %p510 = pneg %p504
      %p511 = scmp.eq.s32.totalorder %s37, 1
      %p512 = por %p510, %p511
      %p513 = scmp.ne.s32.totalorder %s505, %s508
      %p514 = scmp.eq.s32.totalorder %s37, 0
      %p515 = por %p513, %p514
      %p516 = scmp.ne.s32.totalorder %s505, %s508
      %p517 = scmp.eq.s32.totalorder %s42, 1
      %p518 = por %p516, %p517
      %p519 = scmp.ne.s32.totalorder %s508, %s509
      %p520 = scmp.eq.s32.totalorder %s42, 0
      %p521 = por %p519, %p520
      %p522 = scmp.ne.s32.totalorder %s508, %s509
      %p523 = scmp.eq.s32.totalorder %s43, 1
      %p524 = por %p522, %p523
      %p526 = scmp.ne.s32.totalorder %s509, %s525
      %p527 = scmp.eq.s32.totalorder %s43, 0
      %p528 = por %p526, %p527
      %s529 = ssub.s32 %s44, %s56
      %p530 = scmp.eq.s32.totalorder %s529, 0
      %s532 = sadd.s32 %s531, 1
      %s533 = scalar_select %p530, %s531, %s532
      %p536 = pneg %p530
      %p537 = scmp.eq.s32.totalorder %s37, 1
      %p538 = por %p536, %p537
      %p539 = scmp.ne.s32.totalorder %s531, %s534
      %p540 = scmp.eq.s32.totalorder %s37, 0
      %p541 = por %p539, %p540
      %p542 = scmp.ne.s32.totalorder %s531, %s534
      %p543 = scmp.eq.s32.totalorder %s42, 1
      %p544 = por %p542, %p543
      %p545 = scmp.ne.s32.totalorder %s534, %s535
      %p546 = scmp.eq.s32.totalorder %s42, 0
      %p547 = por %p545, %p546
      %p548 = scmp.ne.s32.totalorder %s534, %s535
      %p549 = scmp.eq.s32.totalorder %s43, 1
      %p550 = por %p548, %p549
      %p552 = scmp.ne.s32.totalorder %s535, %s551
      %p553 = scmp.eq.s32.totalorder %s43, 0
      %p554 = por %p552, %p553
      %p555 = scmp.le.s32.totalorder 1, %s37
      %p556 = scmp.lt.s32.totalorder %s37, 3
      %p557 = pnand %p555, %p556
      %p558 = pneg %p557
      // Predicated region
      $region9: #{stylespeech_forward.5} parent=5 // pred_check
        _
      $region10: #{stylespeech_forward.5} parent=5 // pred_check_branch
        %560 = sbr.rel (%p557) target = $region12
      $region11: #{stylespeech_forward.5} parent=5 // pred_region
        %s561 = ssub.s32 %s37, 1
        // Predicated region
        $region13: #{stylespeech_forward.5} parent=11 // pred_check
          %p562 = pneg %p206
        $region14: #{stylespeech_forward.5} parent=11 // pred_check_branch
          %564 = sbr.rel (%p562) target = $region16
        $region15: #{stylespeech_forward.5} parent=11 // pred_region
          _
        $region16: #{stylespeech_forward.5} parent=11 // pred_fallthru
          _
        // Predicated region
        $region17: #{stylespeech_forward.5} parent=11 // pred_check
          %p565 = pneg %p227
        $region18: #{stylespeech_forward.5} parent=11 // pred_check_branch
          %567 = sbr.rel (%p565) target = $region20
        $region19: #{stylespeech_forward.5} parent=11 // pred_region
          _
        $region20: #{stylespeech_forward.5} parent=11 // pred_fallthru
          _
        // Predicated region
        $region21: #{stylespeech_forward.5} parent=11 // pred_check
          %p568 = pneg %p248
        $region22: #{stylespeech_forward.5} parent=11 // pred_check_branch
          %570 = sbr.rel (%p568) target = $region24
        $region23: #{stylespeech_forward.5} parent=11 // pred_region
          _
        $region24: #{stylespeech_forward.5} parent=11 // pred_fallthru
          _
        // Predicated region
        $region25: #{stylespeech_forward.5} parent=11 // pred_check
          %p571 = pneg %p269
        $region26: #{stylespeech_forward.5} parent=11 // pred_check_branch
          %573 = sbr.rel (%p571) target = $region28
        $region27: #{stylespeech_forward.5} parent=11 // pred_region
          _
        $region28: #{stylespeech_forward.5} parent=11 // pred_fallthru
          _
        // Predicated region
        $region29: #{stylespeech_forward.5} parent=11 // pred_check
          %p574 = pneg %p290
        $region30: #{stylespeech_forward.5} parent=11 // pred_check_branch
          %576 = sbr.rel (%p574) target = $region32
        $region31: #{stylespeech_forward.5} parent=11 // pred_region
          _
        $region32: #{stylespeech_forward.5} parent=11 // pred_fallthru
          _
        // Predicated region
        $region33: #{stylespeech_forward.5} parent=11 // pred_check
          %p577 = pneg %p311
        $region34: #{stylespeech_forward.5} parent=11 // pred_check_branch
          %579 = sbr.rel (%p577) target = $region36
        $region35: #{stylespeech_forward.5} parent=11 // pred_region
          _
        $region36: #{stylespeech_forward.5} parent=11 // pred_fallthru
          _
        // Predicated region
        $region37: #{stylespeech_forward.5} parent=11 // pred_check
          %p580 = pneg %p332
        $region38: #{stylespeech_forward.5} parent=11 // pred_check_branch
          %582 = sbr.rel (%p580) target = $region40
        $region39: #{stylespeech_forward.5} parent=11 // pred_region
          _
        $region40: #{stylespeech_forward.5} parent=11 // pred_fallthru
          _
        // Predicated region
        $region41: #{stylespeech_forward.5} parent=11 // pred_check
          %p583 = pneg %p353
        $region42: #{stylespeech_forward.5} parent=11 // pred_check_branch
          %585 = sbr.rel (%p583) target = $region44
        $region43: #{stylespeech_forward.5} parent=11 // pred_region
          _
        $region44: #{stylespeech_forward.5} parent=11 // pred_fallthru
          _
        // Predicated region
        $region45: #{stylespeech_forward.5} parent=11 // pred_check
          %p586 = pneg %p374
        $region46: #{stylespeech_forward.5} parent=11 // pred_check_branch
          %588 = sbr.rel (%p586) target = $region48
        $region47: #{stylespeech_forward.5} parent=11 // pred_region
          _
        $region48: #{stylespeech_forward.5} parent=11 // pred_fallthru
          _
        // Predicated region
        $region49: #{stylespeech_forward.5} parent=11 // pred_check
          %p589 = pneg %p395
        $region50: #{stylespeech_forward.5} parent=11 // pred_check_branch
          %591 = sbr.rel (%p589) target = $region52
        $region51: #{stylespeech_forward.5} parent=11 // pred_region
          _
        $region52: #{stylespeech_forward.5} parent=11 // pred_fallthru
          _
        // Predicated region
        $region53: #{stylespeech_forward.5} parent=11 // pred_check
          %p592 = pneg %p416
        $region54: #{stylespeech_forward.5} parent=11 // pred_check_branch
          %594 = sbr.rel (%p592) target = $region56
        $region55: #{stylespeech_forward.5} parent=11 // pred_region
          _
        $region56: #{stylespeech_forward.5} parent=11 // pred_fallthru
          _
        // Predicated region
        $region57: #{stylespeech_forward.5} parent=11 // pred_check
          %p595 = pneg %p437
        $region58: #{stylespeech_forward.5} parent=11 // pred_check_branch
          %597 = sbr.rel (%p595) target = $region60
        $region59: #{stylespeech_forward.5} parent=11 // pred_region
          _
        $region60: #{stylespeech_forward.5} parent=11 // pred_fallthru
          _
      $region12: #{stylespeech_forward.5} parent=5 // pred_fallthru
        _
      %p598 = scmp.lt.s32.totalorder %s37, 2
      // Predicated region
      $region61: #{stylespeech_forward.5} parent=5 // pred_check
        %p599 = pneg %p598
      $region62: #{stylespeech_forward.5} parent=5 // pred_check_branch
        %601 = sbr.rel (%p599) target = $region64
      $region63: #{stylespeech_forward.5} parent=5 // pred_region
        // Predicated region
        $region65: #{stylespeech_forward.5} parent=63 // pred_check
          %p602 = pneg %p71
        $region66: #{stylespeech_forward.5} parent=63 // pred_check_branch
          %604 = sbr.rel (%p602) target = $region68
        $region67: #{stylespeech_forward.5} parent=63 // pred_region
          %s605 = smul.u32 2, %s45
          %p606 = scmp.lt.s32.totalorder %s44, 1
          %s607 = scalar_select %p606, %s44, 1
          %p608 = scmp.lt.s32.totalorder %s605, 1
          %s609 = scalar_select %p608, %s605, 1
          %s610 = smul.addr %s607, 2
          %s611 = sadd.s32 %s609, %s610
          %s612 = smul.addr %s611, 8
          %s613 = scalar_lea.vmem %s1, %s612
          %s614 = smul.u32 2, %s45
        $region68: #{stylespeech_forward.5} parent=63 // pred_fallthru
          _
        // Predicated region
        $region69: #{stylespeech_forward.5} parent=63 // pred_check
          %p615 = pneg %p97
        $region70: #{stylespeech_forward.5} parent=63 // pred_check_branch
          %617 = sbr.rel (%p615) target = $region72
        $region71: #{stylespeech_forward.5} parent=63 // pred_region
          %p618 = scmp.lt.s32.totalorder %s44, 1
          %s619 = scalar_select %p618, %s44, 1
          %s620 = scalar_lea.vmem %s2, %s619
        $region72: #{stylespeech_forward.5} parent=63 // pred_fallthru
          _
        // Predicated region
        $region73: #{stylespeech_forward.5} parent=63 // pred_check
          %p621 = pneg %p123
        $region74: #{stylespeech_forward.5} parent=63 // pred_check_branch
          %623 = sbr.rel (%p621) target = $region76
        $region75: #{stylespeech_forward.5} parent=63 // pred_region
          %p624 = scmp.lt.s32.totalorder %s44, 1
          %s625 = scalar_select %p624, %s44, 1
          %s626 = scalar_lea.vmem %s3, %s625
        $region76: #{stylespeech_forward.5} parent=63 // pred_fallthru
          _
        // Predicated region
        $region77: #{stylespeech_forward.5} parent=63 // pred_check
          %p627 = pneg %p151
        $region78: #{stylespeech_forward.5} parent=63 // pred_check_branch
          %629 = sbr.rel (%p627) target = $region80
        $region79: #{stylespeech_forward.5} parent=63 // pred_region
          %s630 = smul.u32 2, %s45
          %p631 = scmp.lt.s32.totalorder %s44, 1
          %s632 = scalar_select %p631, %s44, 1
          %p633 = scmp.lt.s32.totalorder %s630, 1
          %s634 = scalar_select %p633, %s630, 1
          %s635 = smul.addr %s632, 2
          %s636 = sadd.s32 %s634, %s635
          %s637 = smul.addr %s636, 8
          %s638 = scalar_lea.vmem %s4, %s637
          %s639 = smul.u32 2, %s45
        $region80: #{stylespeech_forward.5} parent=63 // pred_fallthru
          _
        // Predicated region
        $region81: #{stylespeech_forward.5} parent=63 // pred_check
          %p640 = pneg %p179
        $region82: #{stylespeech_forward.5} parent=63 // pred_check_branch
          %642 = sbr.rel (%p640) target = $region84
        $region83: #{stylespeech_forward.5} parent=63 // pred_region
          %s643 = smul.u32 2, %s45
          %p644 = scmp.lt.s32.totalorder %s44, 1
          %s645 = scalar_select %p644, %s44, 1
          %p646 = scmp.lt.s32.totalorder %s643, 1
          %s647 = scalar_select %p646, %s643, 1
          %s648 = smul.addr %s645, 2
          %s649 = sadd.s32 %s647, %s648
          %s650 = smul.addr %s649, 8
          %s651 = scalar_lea.vmem %s5, %s650
          %s652 = smul.u32 2, %s45
        $region84: #{stylespeech_forward.5} parent=63 // pred_fallthru
          _
      $region64: #{stylespeech_forward.5} parent=5 // pred_fallthru
        _
      %p653 = scmp.le.s32.totalorder 1, %s37
      %p654 = scmp.lt.s32.totalorder %s37, 3
      %p655 = pnand %p653, %p654
      %p656 = pneg %p655
      // Predicated region
      $region85: #{stylespeech_forward.5} parent=5 // pred_check
        _
      $region86: #{stylespeech_forward.5} parent=5 // pred_check_branch
        %658 = sbr.rel (%p655) target = $region88
      $region87: #{stylespeech_forward.5} parent=5 // pred_region
        %s659 = ssub.s32 %s37, 1
        %s660 = smul.u32 2, %s47
        %p661 = scmp.lt.s32.totalorder %s46, 1
        %s662 = scalar_select %p661, %s46, 1
        %p663 = scmp.lt.s32.totalorder %s660, 1
        %s664 = scalar_select %p663, %s660, 1
        %s665 = smul.addr %s662, 2
        %s666 = sadd.s32 %s664, %s665
        %s667 = smul.addr %s666, 8
        %s668 = scalar_lea.vmem %s1, %s667
        %p669 = pneg %p77
        %p670 = pneg %p74
        %p671 = scmp.lt.s32.totalorder %s46, 1
        %s672 = scalar_select %p671, %s46, 1
        %s673 = scalar_lea.vmem %s2, %s672
        %p674 = pneg %p103
        %p675 = pneg %p100
        %p676 = scmp.lt.s32.totalorder %s46, 1
        %s677 = scalar_select %p676, %s46, 1
        %s678 = scalar_lea.vmem %s3, %s677
        %p679 = pneg %p129
        %p680 = pneg %p126
        %s681 = smul.u32 2, %s47
        %p682 = scmp.lt.s32.totalorder %s46, 1
        %s683 = scalar_select %p682, %s46, 1
        %p684 = scmp.lt.s32.totalorder %s681, 1
        %s685 = scalar_select %p684, %s681, 1
        %s686 = smul.addr %s683, 2
        %s687 = sadd.s32 %s685, %s686
        %s688 = smul.addr %s687, 8
        %s689 = scalar_lea.vmem %s4, %s688
        %p690 = pneg %p157
        %p691 = pneg %p154
        %s692 = smul.u32 2, %s47
        %p693 = scmp.lt.s32.totalorder %s46, 1
        %s694 = scalar_select %p693, %s46, 1
        %p695 = scmp.lt.s32.totalorder %s692, 1
        %s696 = scalar_select %p695, %s692, 1
        %s697 = smul.addr %s694, 2
        %s698 = sadd.s32 %s696, %s697
        %s699 = smul.addr %s698, 8
        %s700 = scalar_lea.vmem %s5, %s699
        %p701 = pneg %p185
        %p702 = pneg %p182
        %p703 = pneg %p206
        %p704 = pneg %p203
        %p705 = pneg %p227
        %p706 = pneg %p224
        %p707 = pneg %p248
        %p708 = pneg %p245
        %p709 = pneg %p269
        %p710 = pneg %p266
        %p711 = pneg %p290
        %p712 = pneg %p287
        %p713 = pneg %p311
        %p714 = pneg %p308
        %p715 = pneg %p332
        %p716 = pneg %p329
        %p717 = pneg %p353
        %p718 = pneg %p350
        %p719 = pneg %p374
        %p720 = pneg %p371
        %p721 = pneg %p395
        %p722 = pneg %p392
        %p723 = pneg %p416
        %p724 = pneg %p413
        %p725 = pneg %p437
        %p726 = pneg %p434
        %p727 = pneg %p465
        %p728 = pneg %p462
        %s729 = sand.u32 %s452, 1
        %s730 = scalar_lea.sflag [#allocation5], %s729
        %s731 = sand.u32 %s452, 1
        %s732 = smul.addr %s731, 16
        %s733 = scalar_lea.vmem [#allocation4], %s732
        %p734 = pneg %p493
        %p735 = pneg %p490
        %s736 = smul.u32 2, %s47
        %p737 = scmp.lt.s32.totalorder %s46, 1
        %s738 = scalar_select %p737, %s46, 1
        %p739 = scmp.lt.s32.totalorder %s736, 1
        %s740 = scalar_select %p739, %s736, 1
        %s741 = smul.addr %s738, 2
        %s742 = sadd.s32 %s740, %s741
        %s743 = smul.addr %s742, 8
        %s744 = scalar_lea.vmem %s19, %s743
        %p745 = pneg %p521
        %p746 = pneg %p518
        %s747 = smul.u32 2, %s47
        %p748 = scmp.lt.s32.totalorder %s46, 1
        %s749 = scalar_select %p748, %s46, 1
        %p750 = scmp.lt.s32.totalorder %s747, 1
        %s751 = scalar_select %p750, %s747, 1
        %s752 = smul.addr %s749, 2
        %s753 = sadd.s32 %s751, %s752
        %s754 = smul.addr %s753, 8
        %s755 = scalar_lea.vmem %s20, %s754
        %p756 = pneg %p547
        %p757 = pneg %p544
        %p758 = scmp.lt.s32.totalorder %s46, 1
        %s759 = scalar_select %p758, %s46, 1
        %s760 = scalar_lea.vmem %s21, %s759
        %s761 = smul.u32 2, %s47
        %p762 = scmp.lt.s32.totalorder %s46, 1
        %s763 = scalar_select %p762, %s46, 1
        %p764 = scmp.lt.s32.totalorder %s761, 1
        %s765 = scalar_select %p764, %s761, 1
        %s766 = smul.addr %s763, 2
        %s767 = sadd.s32 %s765, %s766
        %s768 = smul.addr %s767, 8
        %s769 = scalar_lea.vmem %s1, %s768
        %s770 = smul.u32 2, %s47
        %p771 = scmp.lt.s32.totalorder %s46, 1
        %s772 = scalar_select %p771, %s46, 1
        %s773 = scalar_lea.vmem %s2, %s772
        %p774 = scmp.lt.s32.totalorder %s46, 1
        %s775 = scalar_select %p774, %s46, 1
        %s776 = scalar_lea.vmem %s3, %s775
        %s777 = smul.u32 2, %s47
        %p778 = scmp.lt.s32.totalorder %s46, 1
        %s779 = scalar_select %p778, %s46, 1
        %p780 = scmp.lt.s32.totalorder %s777, 1
        %s781 = scalar_select %p780, %s777, 1
        %s782 = smul.addr %s779, 2
        %s783 = sadd.s32 %s781, %s782
        %s784 = smul.addr %s783, 8
        %s785 = scalar_lea.vmem %s4, %s784
        %s786 = smul.u32 2, %s47
        %s787 = smul.u32 2, %s47
        %p788 = scmp.lt.s32.totalorder %s46, 1
        %s789 = scalar_select %p788, %s46, 1
        %p790 = scmp.lt.s32.totalorder %s787, 1
        %s791 = scalar_select %p790, %s787, 1
        %s792 = smul.addr %s789, 2
        %s793 = sadd.s32 %s791, %s792
        %s794 = smul.addr %s793, 8
        %s795 = scalar_lea.vmem %s5, %s794
        %s796 = smul.u32 2, %s47
        %s797 = smul.u32 2, %s47
        %s798 = smul.u32 2, %s47
        %p799 = scmp.lt.s32.totalorder %s46, 1
        %s800 = scalar_select %p799, %s46, 1
        %p801 = scmp.lt.s32.totalorder %s798, 1
        %s802 = scalar_select %p801, %s798, 1
        %s803 = smul.addr %s800, 2
        %s804 = sadd.s32 %s802, %s803
        %s805 = smul.addr %s804, 8
        %s806 = scalar_lea.vmem %s19, %s805
        %s807 = smul.u32 2, %s47
        %s808 = smul.u32 2, %s47
        %p809 = scmp.lt.s32.totalorder %s46, 1
        %s810 = scalar_select %p809, %s46, 1
        %p811 = scmp.lt.s32.totalorder %s808, 1
        %s812 = scalar_select %p811, %s808, 1
        %s813 = smul.addr %s810, 2
        %s814 = sadd.s32 %s812, %s813
        %s815 = smul.addr %s814, 8
        %s816 = scalar_lea.vmem %s20, %s815
        %s817 = smul.u32 2, %s47
        %p818 = scmp.lt.s32.totalorder %s46, 1
        %s819 = scalar_select %p818, %s46, 1
        %s820 = scalar_lea.vmem %s21, %s819
        %p821 = scmp.eq.s32.totalorder %s47, 0
        // Predicated region
        $region89: #{stylespeech_forward.5} parent=87 // pred_check
          %p822 = pneg %p821
        $region90: #{stylespeech_forward.5} parent=87 // pred_check_branch
          %824 = sbr.rel (%p822) target = $region92
        $region91: #{stylespeech_forward.5} parent=87 // pred_region
          %vm825 = vcmask 0
          %826 = vst.msk [vmem:[%s820] sm:$0x1] %vm825, 0.0
        $region92: #{stylespeech_forward.5} parent=87 // pred_fallthru
          _
        %v827 = vlaneseq
        %v828 = vshrl.u32 %v827, 7
        %v829 = vadd.s32 %v828, 8
        %s830 = smul.u32 %s47, 16
        %v831 = vstv %s830
        %v832 = vadd.s32 %v828, %v831
        %v833 = vadd.s32 %v829, %v831
        %s834 = sld [smem:[#allocation3 + %s46]]
        %v835 = vstv %s834
        %vm836 = vcmp.lt.s32.totalorder %v832, %v835
        %vm837 = vcmp.lt.s32.totalorder %v833, %v835
        %v838 = vsel %vm836, 1, 0
        %v839 = vsel %vm837, 1, 0
        %v840 = vcvt.s32.f32 %v838
        %v841 = vcvt.s32.f32 %v839
        %v842 = vld [vmem:[%s769] sm:$0xff]
        %v843 = vld [vmem:[%s769 + $0x8] sm:$0xff]
        %v844 = vmul.f32 %v842, %v840
        %v845 = vmul.f32 %v843, %v841
        %v846 = vld [vmem:[%s6] sm:$0xff]
        %v847 = vld [vmem:[%s6 + $0x8] sm:$0xff]
        %v848 = vld [vmem:[%s6 + $0x10] sm:$0xff]
        %v849 = vld [vmem:[%s6 + $0x18] sm:$0xff]
        %v850 = vld [vmem:[%s773] sm:$0x1]
        %v852 = vlaneseq
        %v853 = vshrl.u32 %v852, 7
        %v854 = vsub.s32 0, %v853
        %v855 = vrot.slane %v850, %v854
        %vm857 = vcmask 261120
        %v859 = vsel %vm857, %v844, 0
        %v862 = vsel %vm857, %v845, 0
        %864 = vmatprep.subr.mxu0 0.0
        %865 = vmatpush1.msra.mxu0 0.0
        %866 = vmatprep.subr.mxu0 0.0
        %867 = vmatpush1.msra.mxu0 0.0
        %868 = vmatprep.subr.mxu0 0.0
        %869 = vmatpush1.msra.mxu0 0.0
        %870 = vmatprep.subr.mxu0 0.0
        %871 = vmatpush1.msra.mxu0 0.0
        %872 = vmatprep.subr.mxu0 0.0
        %873 = vmatpush1.msra.mxu0 0.0
        %874 = vmatprep.subr.mxu0 0.0
        %875 = vmatpush1.msra.mxu0 0.0
        %876 = vmatprep.subr.mxu0 0.0
        %877 = vmatpush1.msra.mxu0 0.0
        %878 = vmatprep.subr.mxu0 0.0
        %879 = vmatpush1.msra.mxu0 0.0
        %880 = vmatprep.subr.mxu0 0.0
        %881 = vmatpush1.msra.mxu0 0.0
        %882 = vmatprep.subr.mxu0 0.0
        %883 = vmatpush1.msra.mxu0 0.0
        %884 = vmatprep.subr.mxu0 0.0
        %885 = vmatpush1.msra.mxu0 0.0
        %886 = vmatprep.subr.mxu0 0.0
        %887 = vmatpush1.msra.mxu0 0.0
        %888 = vmatprep.subr.mxu0 0.0
        %889 = vmatpush1.msra.mxu0 %v849
        %890 = vmatprep.subr.mxu0 0.0
        %891 = vmatpush1.msra.mxu0 %v848
        %892 = vmatprep.subr.mxu0 0.0
        %893 = vmatpush1.msra.mxu0 %v847
        %894 = vmatprep.subr.mxu0 0.0
        %895 = vmatpush1.msra.mxu0 %v846
        %896 = vmatprep.subr.mxu0 0.0
        %897 = vmatpush2.msra.mxu0 0.0
        %898 = vmatprep.subr.mxu0 0.0
        %899 = vmatpush2.msra.mxu0 0.0
        %900 = vmatprep.subr.mxu0 0.0
        %901 = vmatpush2.msra.mxu0 0.0
        %902 = vmatprep.subr.mxu0 0.0
        %903 = vmatpush2.msra.mxu0 0.0
        %904 = vmatprep.subr.mxu0 0.0
        %905 = vmatpush2.msra.mxu0 0.0
        %906 = vmatprep.subr.mxu0 0.0
        %907 = vmatpush2.msra.mxu0 0.0
        %908 = vmatprep.subr.mxu0 0.0
        %909 = vmatpush2.msra.mxu0 0.0
        %910 = vmatprep.subr.mxu0 0.0
        %911 = vmatpush2.msra.mxu0 0.0
        %912 = vmatprep.subr.mxu0 0.0
        %913 = vmatpush2.msra.mxu0 0.0
        %914 = vmatprep.subr.mxu0 0.0
        %915 = vmatpush2.msra.mxu0 0.0
        %916 = vmatprep.subr.mxu0 0.0
        %917 = vmatpush2.msra.mxu0 0.0
        %918 = vmatprep.subr.mxu0 0.0
        %919 = vmatpush2.msra.mxu0 0.0
        %920 = vmatprep.subr.mxu0 0.0
        %921 = vmatpush2.msra.mxu0 0.0
        %922 = vmatprep.subr.mxu0 0.0
        %923 = vmatpush2.msra.mxu0 0.0
        %924 = vmatprep.subr.mxu0 0.0
        %925 = vmatpush2.msra.mxu0 0.0
        %926 = vmatprep.subr.mxu0 0.0
        %927 = vmatpush2.msra.mxu0 0.0
        %928 = vmatprep.mubr.f32.mxu0 0.0
        %929 = vmatmul.mubr.f32.gmra.mxu0 %v859
        %v930 = vpop.f32.mrf.mxu0
        %v931 = vadd.f32 %v855, %v930
        %v932 = vpop.f32.mrf.mxu0
        %933 = vmatprep.mubr.f32.mxu0 0.0
        %934 = vmatmul.mubr.f32.gmra.mxu0 %v862
        %v935 = vpop.f32.mrf.mxu0
        %v936 = vadd.f32 %v855, %v935
        %v937 = vpop.f32.mrf.mxu0
        %938 = vdwg.mxu0
        %v939 = vmax.f32 %v931, 0.0
        %v940 = vmax.f32 %v936, 0.0
        %v941 = vld [vmem:[%s7] sm:$0xff]
        %v942 = vld [vmem:[%s7 + $0x8] sm:$0xff]
        %v943 = vld [vmem:[%s7 + $0x10] sm:$0xff]
        %v944 = vld [vmem:[%s7 + $0x18] sm:$0xff]
        %v945 = vld [vmem:[%s8] sm:$0xff]
        %v946 = vld [vmem:[%s8 + $0x8] sm:$0xff]
        %v947 = vld [vmem:[%s8 + $0x10] sm:$0xff]
        %v948 = vld [vmem:[%s8 + $0x18] sm:$0xff]
        %v950 = vsel %vm857, %v939, 0
        %v953 = vsel %vm857, %v940, 0
        %955 = vmatprep.subr.mxu0 0.0
        %956 = vmatpush1.msra.mxu0 0.0
        %957 = vmatprep.subr.mxu0 0.0
        %958 = vmatpush1.msra.mxu0 0.0
        %959 = vmatprep.subr.mxu0 0.0
        %960 = vmatpush1.msra.mxu0 0.0
        %961 = vmatprep.subr.mxu0 0.0
        %962 = vmatpush1.msra.mxu0 0.0
        %963 = vmatprep.subr.mxu0 0.0
        %964 = vmatpush1.msra.mxu0 0.0
        %965 = vmatprep.subr.mxu0 0.0
        %966 = vmatpush1.msra.mxu0 0.0
        %967 = vmatprep.subr.mxu0 0.0
        %968 = vmatpush1.msra.mxu0 0.0
        %969 = vmatprep.subr.mxu0 0.0
        %970 = vmatpush1.msra.mxu0 0.0
        %971 = vmatprep.subr.mxu0 0.0
        %972 = vmatpush1.msra.mxu0 0.0
        %973 = vmatprep.subr.mxu0 0.0
        %974 = vmatpush1.msra.mxu0 0.0
        %975 = vmatprep.subr.mxu0 0.0
        %976 = vmatpush1.msra.mxu0 0.0
        %977 = vmatprep.subr.mxu0 0.0
        %978 = vmatpush1.msra.mxu0 0.0
        %979 = vmatprep.subr.mxu0 0.0
        %980 = vmatpush1.msra.mxu0 %v948
        %981 = vmatprep.subr.mxu0 0.0
        %982 = vmatpush1.msra.mxu0 %v947
        %983 = vmatprep.subr.mxu0 0.0
        %984 = vmatpush1.msra.mxu0 %v946
        %985 = vmatprep.subr.mxu0 0.0
        %986 = vmatpush1.msra.mxu0 %v945
        %987 = vmatprep.subr.mxu0 0.0
        %988 = vmatpush2.msra.mxu0 0.0
        %989 = vmatprep.subr.mxu0 0.0
        %990 = vmatpush2.msra.mxu0 0.0
        %991 = vmatprep.subr.mxu0 0.0
        %992 = vmatpush2.msra.mxu0 0.0
        %993 = vmatprep.subr.mxu0 0.0
        %994 = vmatpush2.msra.mxu0 0.0
        %995 = vmatprep.subr.mxu0 0.0
        %996 = vmatpush2.msra.mxu0 0.0
        %997 = vmatprep.subr.mxu0 0.0
        %998 = vmatpush2.msra.mxu0 0.0
        %999 = vmatprep.subr.mxu0 0.0
        %1000 = vmatpush2.msra.mxu0 0.0
        %1001 = vmatprep.subr.mxu0 0.0
        %1002 = vmatpush2.msra.mxu0 0.0
        %1003 = vmatprep.subr.mxu0 0.0
        %1004 = vmatpush2.msra.mxu0 0.0
        %1005 = vmatprep.subr.mxu0 0.0
        %1006 = vmatpush2.msra.mxu0 0.0
        %1007 = vmatprep.subr.mxu0 0.0
        %1008 = vmatpush2.msra.mxu0 0.0
        %1009 = vmatprep.subr.mxu0 0.0
        %1010 = vmatpush2.msra.mxu0 0.0
        %1011 = vmatprep.subr.mxu0 0.0
        %1012 = vmatpush2.msra.mxu0 0.0
        %1013 = vmatprep.subr.mxu0 0.0
        %1014 = vmatpush2.msra.mxu0 0.0
        %1015 = vmatprep.subr.mxu0 0.0
        %1016 = vmatpush2.msra.mxu0 0.0
        %1017 = vmatprep.subr.mxu0 0.0
        %1018 = vmatpush2.msra.mxu0 0.0
        %1019 = vmatprep.mubr.f32.mxu0 0.0
        %1020 = vmatmul.mubr.f32.gmra.mxu0 %v950
        %v1021 = vpop.f32.mrf.mxu0
        %v1022 = vadd.f32 0.0, %v1021
        %v1023 = vpop.f32.mrf.mxu0
        %1024 = vmatprep.mubr.f32.mxu0 0.0
        %1025 = vmatmul.mubr.f32.gmra.mxu0 %v953
        %v1026 = vpop.f32.mrf.mxu0
        %v1027 = vadd.f32 0.0, %v1026
        %v1028 = vpop.f32.mrf.mxu0
        %1029 = vdwg.mxu0
        %1030 = vmatprep.subr.mxu0 0.0
        %1031 = vmatpush1.msra.mxu0 0.0
        %1032 = vmatprep.subr.mxu0 0.0
        %1033 = vmatpush1.msra.mxu0 0.0
        %1034 = vmatprep.subr.mxu0 0.0
        %1035 = vmatpush1.msra.mxu0 0.0
        %1036 = vmatprep.subr.mxu0 0.0
        %1037 = vmatpush1.msra.mxu0 0.0
        %1038 = vmatprep.subr.mxu0 0.0
        %1039 = vmatpush1.msra.mxu0 0.0
        %1040 = vmatprep.subr.mxu0 0.0
        %1041 = vmatpush1.msra.mxu0 0.0
        %1042 = vmatprep.subr.mxu0 0.0
        %1043 = vmatpush1.msra.mxu0 0.0
        %1044 = vmatprep.subr.mxu0 0.0
        %1045 = vmatpush1.msra.mxu0 0.0
        %1046 = vmatprep.subr.mxu0 0.0
        %1047 = vmatpush1.msra.mxu0 0.0
        %1048 = vmatprep.subr.mxu0 0.0
        %1049 = vmatpush1.msra.mxu0 0.0
        %1050 = vmatprep.subr.mxu0 0.0
        %1051 = vmatpush1.msra.mxu0 0.0
        %1052 = vmatprep.subr.mxu0 0.0
        %1053 = vmatpush1.msra.mxu0 0.0
        %1054 = vmatprep.subr.mxu0 0.0
        %1055 = vmatpush1.msra.mxu0 %v944
        %1056 = vmatprep.subr.mxu0 0.0
        %1057 = vmatpush1.msra.mxu0 %v943
        %1058 = vmatprep.subr.mxu0 0.0
        %1059 = vmatpush1.msra.mxu0 %v942
        %1060 = vmatprep.subr.mxu0 0.0
        %1061 = vmatpush1.msra.mxu0 %v941
        %1062 = vmatprep.subr.mxu0 0.0
        %1063 = vmatpush2.msra.mxu0 0.0
        %1064 = vmatprep.subr.mxu0 0.0
        %1065 = vmatpush2.msra.mxu0 0.0
        %1066 = vmatprep.subr.mxu0 0.0
        %1067 = vmatpush2.msra.mxu0 0.0
        %1068 = vmatprep.subr.mxu0 0.0
        %1069 = vmatpush2.msra.mxu0 0.0
        %1070 = vmatprep.subr.mxu0 0.0
        %1071 = vmatpush2.msra.mxu0 0.0
        %1072 = vmatprep.subr.mxu0 0.0
        %1073 = vmatpush2.msra.mxu0 0.0
        %1074 = vmatprep.subr.mxu0 0.0
        %1075 = vmatpush2.msra.mxu0 0.0
        %1076 = vmatprep.subr.mxu0 0.0
        %1077 = vmatpush2.msra.mxu0 0.0
        %1078 = vmatprep.subr.mxu0 0.0
        %1079 = vmatpush2.msra.mxu0 0.0
        %1080 = vmatprep.subr.mxu0 0.0
        %1081 = vmatpush2.msra.mxu0 0.0
        %1082 = vmatprep.subr.mxu0 0.0
        %1083 = vmatpush2.msra.mxu0 0.0
        %1084 = vmatprep.subr.mxu0 0.0
        %1085 = vmatpush2.msra.mxu0 0.0
        %1086 = vmatprep.subr.mxu0 0.0
        %1087 = vmatpush2.msra.mxu0 0.0
        %1088 = vmatprep.subr.mxu0 0.0
        %1089 = vmatpush2.msra.mxu0 0.0
        %1090 = vmatprep.subr.mxu0 0.0
        %1091 = vmatpush2.msra.mxu0 0.0
        %1092 = vmatprep.subr.mxu0 0.0
        %1093 = vmatpush2.msra.mxu0 0.0
        %1094 = vmatprep.mubr.f32.mxu0 0.0
        %1095 = vmatmul.mubr.f32.gmra.mxu0 %v859
        %v1096 = vpop.f32.mrf.mxu0
        %v1097 = vadd.f32 %v1022, %v1096
        %v1098 = vpop.f32.mrf.mxu0
        %1099 = vmatprep.mubr.f32.mxu0 0.0
        %1100 = vmatmul.mubr.f32.gmra.mxu0 %v862
        %v1101 = vpop.f32.mrf.mxu0
        %v1102 = vadd.f32 %v1027, %v1101
        %v1103 = vpop.f32.mrf.mxu0
        %1104 = vdwg.mxu0
        %v1105 = vld [vmem:[%s9] sm:$0x1]
        %v1107 = vlaneseq
        %v1108 = vshrl.u32 %v1107, 7
        %v1109 = vsub.s32 0, %v1108
        %v1110 = vrot.slane %v1105, %v1109
        %v1112 = vadd.f32 %v1097, %v1110
        %v1113 = vadd.f32 %v1102, %v1110
        %v1114 = vmul.f32 %v1112, %v840
        %v1115 = vmul.f32 %v1113, %v841
        %v1116 = vld [vmem:[%s10] sm:$0x1]
        %v1118 = vlaneseq
        %v1119 = vshrl.u32 %v1118, 7
        %v1120 = vsub.s32 0, %v1119
        %v1121 = vrot.slane %v1116, %v1120
        %v1123 = vadd.f32 %v1114, %v1121
        %v1124 = vadd.f32 %v1115, %v1121
        %vm1125 = vcmask 654336
        %1126 = vst.msk [vmem:[%s733] sm:$0xff] %vm1125, %v1123
        %1127 = vst.msk [vmem:[%s733 + $0x8] sm:$0xff] %vm1125, %v1124
        %v1128 = vld [vmem:[%s785] sm:$0xff]
        %v1129 = vld [vmem:[%s785 + $0x8] sm:$0xff]
        %v1130 = vld [vmem:[%s795] sm:$0xff]
        %v1131 = vld [vmem:[%s795 + $0x8] sm:$0xff]
        %v1132 = vld [vmem:[%s11] sm:$0xff]
        %v1133 = vld [vmem:[%s11 + $0x8] sm:$0xff]
        %v1134 = vld [vmem:[%s11 + $0x10] sm:$0xff]
        %v1135 = vld [vmem:[%s11 + $0x18] sm:$0xff]
        %v1136 = vld [vmem:[%s11 + $0x20] sm:$0xff]
        %v1137 = vld [vmem:[%s12] sm:$0xff]
        %v1138 = vld [vmem:[%s12 + $0x8] sm:$0xff]
        %v1139 = vld [vmem:[%s12 + $0x10] sm:$0xff]
        %v1140 = vld [vmem:[%s12 + $0x18] sm:$0xff]
        %v1141 = vld [vmem:[%s12 + $0x20] sm:$0xff]
        %v1142 = vld [vmem:[%s12 + $0x28] sm:$0xff]
        %v1143 = vld [vmem:[%s12 + $0x30] sm:$0xff]
        %v1144 = vld [vmem:[%s12 + $0x38] sm:$0xff]
        %v1145 = vld [vmem:[%s12 + $0x40] sm:$0xff]
        %v1146 = vld [vmem:[%s12 + $0x48] sm:$0xff]
        %v1148 = vsel %vm1125, %v1123, 0
        %v1151 = vsel %vm1125, %v1124, 0
        %1153 = vmatprep.subr.mxu0 0.0
        %1154 = vmatpush1.msra.mxu0 0.0
        %1155 = vmatprep.subr.mxu0 0.0
        %1156 = vmatpush1.msra.mxu0 0.0
        %1157 = vmatprep.subr.mxu0 0.0
        %1158 = vmatpush1.msra.mxu0 0.0
        %1159 = vmatprep.subr.mxu0 0.0
        %1160 = vmatpush1.msra.mxu0 0.0
        %1161 = vmatprep.subr.mxu0 0.0
        %1162 = vmatpush1.msra.mxu0 0.0
        %1163 = vmatprep.subr.mxu0 0.0
        %1164 = vmatpush1.msra.mxu0 0.0
        %1165 = vmatprep.subr.mxu0 0.0
        %1166 = vmatpush1.msra.mxu0 %v1146
        %1167 = vmatprep.subr.mxu0 0.0
        %1168 = vmatpush1.msra.mxu0 %v1145
        %1169 = vmatprep.subr.mxu0 0.0
        %1170 = vmatpush1.msra.mxu0 %v1144
        %1171 = vmatprep.subr.mxu0 0.0
        %1172 = vmatpush1.msra.mxu0 %v1143
        %1173 = vmatprep.subr.mxu0 0.0
        %1174 = vmatpush1.msra.mxu0 %v1142
        %1175 = vmatprep.subr.mxu0 0.0
        %1176 = vmatpush1.msra.mxu0 %v1141
        %1177 = vmatprep.subr.mxu0 0.0
        %1178 = vmatpush1.msra.mxu0 %v1140
        %1179 = vmatprep.subr.mxu0 0.0
        %1180 = vmatpush1.msra.mxu0 %v1139
        %1181 = vmatprep.subr.mxu0 0.0
        %1182 = vmatpush1.msra.mxu0 %v1138
        %1183 = vmatprep.subr.mxu0 0.0
        %1184 = vmatpush1.msra.mxu0 %v1137
        %1185 = vmatprep.subr.mxu0 0.0
        %1186 = vmatpush2.msra.mxu0 0.0
        %1187 = vmatprep.subr.mxu0 0.0
        %1188 = vmatpush2.msra.mxu0 0.0
        %1189 = vmatprep.subr.mxu0 0.0
        %1190 = vmatpush2.msra.mxu0 0.0
        %1191 = vmatprep.subr.mxu0 0.0
        %1192 = vmatpush2.msra.mxu0 0.0
        %1193 = vmatprep.subr.mxu0 0.0
        %1194 = vmatpush2.msra.mxu0 0.0
        %1195 = vmatprep.subr.mxu0 0.0
        %1196 = vmatpush2.msra.mxu0 0.0
        %1197 = vmatprep.subr.mxu0 0.0
        %1198 = vmatpush2.msra.mxu0 0.0
        %1199 = vmatprep.subr.mxu0 0.0
        %1200 = vmatpush2.msra.mxu0 0.0
        %1201 = vmatprep.subr.mxu0 0.0
        %1202 = vmatpush2.msra.mxu0 0.0
        %1203 = vmatprep.subr.mxu0 0.0
        %1204 = vmatpush2.msra.mxu0 0.0
        %1205 = vmatprep.subr.mxu0 0.0
        %1206 = vmatpush2.msra.mxu0 0.0
        %1207 = vmatprep.subr.mxu0 0.0
        %1208 = vmatpush2.msra.mxu0 0.0
        %1209 = vmatprep.subr.mxu0 0.0
        %1210 = vmatpush2.msra.mxu0 0.0
        %1211 = vmatprep.subr.mxu0 0.0
        %1212 = vmatpush2.msra.mxu0 0.0
        %1213 = vmatprep.subr.mxu0 0.0
        %1214 = vmatpush2.msra.mxu0 0.0
        %1215 = vmatprep.subr.mxu0 0.0
        %1216 = vmatpush2.msra.mxu0 0.0
        %1217 = vmatprep.mubr.f32.mxu0 0.0
        %1218 = vmatmul.mubr.f32.gmra.mxu0 %v1148
        %v1219 = vpop.f32.mrf.mxu0
        %v1220 = vadd.f32 0.0, %v1219
        %v1221 = vpop.f32.mrf.mxu0
        %1222 = vmatprep.mubr.f32.mxu0 0.0
        %1223 = vmatmul.mubr.f32.gmra.mxu0 %v1151
        %v1224 = vpop.f32.mrf.mxu0
        %v1225 = vadd.f32 0.0, %v1224
        %v1226 = vpop.f32.mrf.mxu0
        %1227 = vdwg.mxu0
        %vm1228 = vcmask 326656
        %v1230 = vsel %vm1228, %v1128, 0
        %v1233 = vsel %vm1228, %v1129, 0
        %1235 = vmatprep.subr.mxu0 0.0
        %1236 = vmatpush1.msra.mxu0 0.0
        %1237 = vmatprep.subr.mxu0 0.0
        %1238 = vmatpush1.msra.mxu0 0.0
        %1239 = vmatprep.subr.mxu0 0.0
        %1240 = vmatpush1.msra.mxu0 0.0
        %1241 = vmatprep.subr.mxu0 0.0
        %1242 = vmatpush1.msra.mxu0 0.0
        %1243 = vmatprep.subr.mxu0 0.0
        %1244 = vmatpush1.msra.mxu0 0.0
        %1245 = vmatprep.subr.mxu0 0.0
        %1246 = vmatpush1.msra.mxu0 0.0
        %1247 = vmatprep.subr.mxu0 0.0
        %1248 = vmatpush1.msra.mxu0 0.0
        %1249 = vmatprep.subr.mxu0 0.0
        %1250 = vmatpush1.msra.mxu0 0.0
        %1251 = vmatprep.subr.mxu0 0.0
        %1252 = vmatpush1.msra.mxu0 0.0
        %1253 = vmatprep.subr.mxu0 0.0
        %1254 = vmatpush1.msra.mxu0 0.0
        %1255 = vmatprep.subr.mxu0 0.0
        %1256 = vmatpush1.msra.mxu0 0.0
        %1257 = vmatprep.subr.mxu0 0.0
        %1258 = vmatpush1.msra.mxu0 %v1136
        %1259 = vmatprep.subr.mxu0 0.0
        %1260 = vmatpush1.msra.mxu0 %v1135
        %1261 = vmatprep.subr.mxu0 0.0
        %1262 = vmatpush1.msra.mxu0 %v1134
        %1263 = vmatprep.subr.mxu0 0.0
        %1264 = vmatpush1.msra.mxu0 %v1133
        %1265 = vmatprep.subr.mxu0 0.0
        %1266 = vmatpush1.msra.mxu0 %v1132
        %1267 = vmatprep.subr.mxu0 0.0
        %1268 = vmatpush2.msra.mxu0 0.0
        %1269 = vmatprep.subr.mxu0 0.0
        %1270 = vmatpush2.msra.mxu0 0.0
        %1271 = vmatprep.subr.mxu0 0.0
        %1272 = vmatpush2.msra.mxu0 0.0
        %1273 = vmatprep.subr.mxu0 0.0
        %1274 = vmatpush2.msra.mxu0 0.0
        %1275 = vmatprep.subr.mxu0 0.0
        %1276 = vmatpush2.msra.mxu0 0.0
        %1277 = vmatprep.subr.mxu0 0.0
        %1278 = vmatpush2.msra.mxu0 0.0
        %1279 = vmatprep.subr.mxu0 0.0
        %1280 = vmatpush2.msra.mxu0 0.0
        %1281 = vmatprep.subr.mxu0 0.0
        %1282 = vmatpush2.msra.mxu0 0.0
        %1283 = vmatprep.subr.mxu0 0.0
        %1284 = vmatpush2.msra.mxu0 0.0
        %1285 = vmatprep.subr.mxu0 0.0
        %1286 = vmatpush2.msra.mxu0 0.0
        %1287 = vmatprep.subr.mxu0 0.0
        %1288 = vmatpush2.msra.mxu0 0.0
        %1289 = vmatprep.subr.mxu0 0.0
        %1290 = vmatpush2.msra.mxu0 0.0
        %1291 = vmatprep.subr.mxu0 0.0
        %1292 = vmatpush2.msra.mxu0 0.0
        %1293 = vmatprep.subr.mxu0 0.0
        %1294 = vmatpush2.msra.mxu0 0.0
        %1295 = vmatprep.subr.mxu0 0.0
        %1296 = vmatpush2.msra.mxu0 0.0
        %1297 = vmatprep.subr.mxu0 0.0
        %1298 = vmatpush2.msra.mxu0 0.0
        %1299 = vmatprep.mubr.f32.mxu0 0.0
        %1300 = vmatmul.mubr.f32.gmra.mxu0 %v1230
        %v1301 = vpop.f32.mrf.mxu0
        %v1302 = vadd.f32 %v1220, %v1301
        %v1303 = vpop.f32.mrf.mxu0
        %1304 = vmatprep.mubr.f32.mxu0 0.0
        %1305 = vmatmul.mubr.f32.gmra.mxu0 %v1233
        %v1306 = vpop.f32.mrf.mxu0
        %v1307 = vadd.f32 %v1225, %v1306
        %v1308 = vpop.f32.mrf.mxu0
        %1309 = vdwg.mxu0
        %v1310 = vld [vmem:[%s13] sm:$0xff]
        %v1311 = vld [vmem:[%s13 + $0x8] sm:$0xff]
        %v1312 = vld [vmem:[%s13 + $0x10] sm:$0xff]
        %v1313 = vld [vmem:[%s13 + $0x18] sm:$0xff]
        %1314 = vmatprep.subr.mxu0 0.0
        %1315 = vmatpush1.msra.mxu0 0.0
        %1316 = vmatprep.subr.mxu0 0.0
        %1317 = vmatpush1.msra.mxu0 0.0
        %1318 = vmatprep.subr.mxu0 0.0
        %1319 = vmatpush1.msra.mxu0 0.0
        %1320 = vmatprep.subr.mxu0 0.0
        %1321 = vmatpush1.msra.mxu0 0.0
        %1322 = vmatprep.subr.mxu0 0.0
        %1323 = vmatpush1.msra.mxu0 0.0
        %1324 = vmatprep.subr.mxu0 0.0
        %1325 = vmatpush1.msra.mxu0 0.0
        %1326 = vmatprep.subr.mxu0 0.0
        %1327 = vmatpush1.msra.mxu0 0.0
        %1328 = vmatprep.subr.mxu0 0.0
        %1329 = vmatpush1.msra.mxu0 0.0
        %1330 = vmatprep.subr.mxu0 0.0
        %1331 = vmatpush1.msra.mxu0 0.0
        %1332 = vmatprep.subr.mxu0 0.0
        %1333 = vmatpush1.msra.mxu0 0.0
        %1334 = vmatprep.subr.mxu0 0.0
        %1335 = vmatpush1.msra.mxu0 0.0
        %1336 = vmatprep.subr.mxu0 0.0
        %1337 = vmatpush1.msra.mxu0 0.0
        %1338 = vmatprep.subr.mxu0 0.0
        %1339 = vmatpush1.msra.mxu0 %v1313
        %1340 = vmatprep.subr.mxu0 0.0
        %1341 = vmatpush1.msra.mxu0 %v1312
        %1342 = vmatprep.subr.mxu0 0.0
        %1343 = vmatpush1.msra.mxu0 %v1311
        %1344 = vmatprep.subr.mxu0 0.0
        %1345 = vmatpush1.msra.mxu0 %v1310
        %1346 = vmatprep.subr.mxu0 0.0
        %1347 = vmatpush2.msra.mxu0 0.0
        %1348 = vmatprep.subr.mxu0 0.0
        %1349 = vmatpush2.msra.mxu0 0.0
        %1350 = vmatprep.subr.mxu0 0.0
        %1351 = vmatpush2.msra.mxu0 0.0
        %1352 = vmatprep.subr.mxu0 0.0
        %1353 = vmatpush2.msra.mxu0 0.0
        %1354 = vmatprep.subr.mxu0 0.0
        %1355 = vmatpush2.msra.mxu0 0.0
        %1356 = vmatprep.subr.mxu0 0.0
        %1357 = vmatpush2.msra.mxu0 0.0
        %1358 = vmatprep.subr.mxu0 0.0
        %1359 = vmatpush2.msra.mxu0 0.0
        %1360 = vmatprep.subr.mxu0 0.0
        %1361 = vmatpush2.msra.mxu0 0.0
        %1362 = vmatprep.subr.mxu0 0.0
        %1363 = vmatpush2.msra.mxu0 0.0
        %1364 = vmatprep.subr.mxu0 0.0
        %1365 = vmatpush2.msra.mxu0 0.0
        %1366 = vmatprep.subr.mxu0 0.0
        %1367 = vmatpush2.msra.mxu0 0.0
        %1368 = vmatprep.subr.mxu0 0.0
        %1369 = vmatpush2.msra.mxu0 0.0
        %1370 = vmatprep.subr.mxu0 0.0
        %1371 = vmatpush2.msra.mxu0 0.0
        %1372 = vmatprep.subr.mxu0 0.0
        %1373 = vmatpush2.msra.mxu0 0.0
        %1374 = vmatprep.subr.mxu0 0.0
        %1375 = vmatpush2.msra.mxu0 0.0
        %1376 = vmatprep.subr.mxu0 0.0
        %1377 = vmatpush2.msra.mxu0 0.0
        %1378 = vmatprep.mubr.f32.mxu0 0.0
        %1379 = vmatmul.mubr.f32.gmra.mxu0 %v859
        %v1380 = vpop.f32.mrf.mxu0
        %v1381 = vadd.f32 0.0, %v1380
        %v1382 = vpop.f32.mrf.mxu0
        %1383 = vmatprep.mubr.f32.mxu0 0.0
        %1384 = vmatmul.mubr.f32.gmra.mxu0 %v862
        %v1385 = vpop.f32.mrf.mxu0
        %v1386 = vadd.f32 0.0, %v1385
        %v1387 = vpop.f32.mrf.mxu0
        %1388 = vdwg.mxu0
        %v1389 = vadd.f32 %v1302, %v1381
        %v1390 = vadd.f32 %v1307, %v1386
        %v1391 = vld [vmem:[%s776] sm:$0x1]
        %v1393 = vlaneseq
        %v1394 = vshrl.u32 %v1393, 7
        %v1395 = vsub.s32 0, %v1394
        %v1396 = vrot.slane %v1391, %v1395
        %v1398 = vadd.f32 %v1389, %v1396
        %v1399 = vadd.f32 %v1390, %v1396
        %v1400 = vtanh.pop %v1398
        %v1401 = vtanh.pop %v1399
        %v1402 = vld [vmem:[%s14] sm:$0xff]
        %v1403 = vld [vmem:[%s14 + $0x8] sm:$0xff]
        %v1404 = vld [vmem:[%s14 + $0x10] sm:$0xff]
        %v1405 = vld [vmem:[%s14 + $0x18] sm:$0xff]
        %v1406 = vld [vmem:[%s14 + $0x20] sm:$0xff]
        %v1407 = vld [vmem:[%s14 + $0x28] sm:$0xff]
        %v1408 = vld [vmem:[%s14 + $0x30] sm:$0xff]
        %v1409 = vld [vmem:[%s14 + $0x38] sm:$0xff]
        %v1410 = vld [vmem:[%s15] sm:$0x1]
        %v1412 = vlaneseq
        %v1413 = vshrl.u32 %v1412, 7
        %v1414 = vsub.s32 0, %v1413
        %v1415 = vrot.slane %v1410, %v1414
        %vm1417 = vcmask 523264
        %v1419 = vsel %vm1417, %v1400, 0
        %v1422 = vsel %vm1417, %v1401, 0
        %1424 = vmatprep.subr.mxu0 0.0
        %1425 = vmatpush1.msra.mxu0 0.0
        %1426 = vmatprep.subr.mxu0 0.0
        %1427 = vmatpush1.msra.mxu0 0.0
        %1428 = vmatprep.subr.mxu0 0.0
        %1429 = vmatpush1.msra.mxu0 0.0
        %1430 = vmatprep.subr.mxu0 0.0
        %1431 = vmatpush1.msra.mxu0 0.0
        %1432 = vmatprep.subr.mxu0 0.0
        %1433 = vmatpush1.msra.mxu0 0.0
        %1434 = vmatprep.subr.mxu0 0.0
        %1435 = vmatpush1.msra.mxu0 0.0
        %1436 = vmatprep.subr.mxu0 0.0
        %1437 = vmatpush1.msra.mxu0 0.0
        %1438 = vmatprep.subr.mxu0 0.0
        %1439 = vmatpush1.msra.mxu0 0.0
        %1440 = vmatprep.subr.mxu0 0.0
        %1441 = vmatpush1.msra.mxu0 %v1409
        %1442 = vmatprep.subr.mxu0 0.0
        %1443 = vmatpush1.msra.mxu0 %v1408
        %1444 = vmatprep.subr.mxu0 0.0
        %1445 = vmatpush1.msra.mxu0 %v1407
        %1446 = vmatprep.subr.mxu0 0.0
        %1447 = vmatpush1.msra.mxu0 %v1406
        %1448 = vmatprep.subr.mxu0 0.0
        %1449 = vmatpush1.msra.mxu0 %v1405
        %1450 = vmatprep.subr.mxu0 0.0
        %1451 = vmatpush1.msra.mxu0 %v1404
        %1452 = vmatprep.subr.mxu0 0.0
        %1453 = vmatpush1.msra.mxu0 %v1403
        %1454 = vmatprep.subr.mxu0 0.0
        %1455 = vmatpush1.msra.mxu0 %v1402
        %1456 = vmatprep.subr.mxu0 0.0
        %1457 = vmatpush2.msra.mxu0 0.0
        %1458 = vmatprep.subr.mxu0 0.0
        %1459 = vmatpush2.msra.mxu0 0.0
        %1460 = vmatprep.subr.mxu0 0.0
        %1461 = vmatpush2.msra.mxu0 0.0
        %1462 = vmatprep.subr.mxu0 0.0
        %1463 = vmatpush2.msra.mxu0 0.0
        %1464 = vmatprep.subr.mxu0 0.0
        %1465 = vmatpush2.msra.mxu0 0.0
        %1466 = vmatprep.subr.mxu0 0.0
        %1467 = vmatpush2.msra.mxu0 0.0
        %1468 = vmatprep.subr.mxu0 0.0
        %1469 = vmatpush2.msra.mxu0 0.0
        %1470 = vmatprep.subr.mxu0 0.0
        %1471 = vmatpush2.msra.mxu0 0.0
        %1472 = vmatprep.subr.mxu0 0.0
        %1473 = vmatpush2.msra.mxu0 0.0
        %1474 = vmatprep.subr.mxu0 0.0
        %1475 = vmatpush2.msra.mxu0 0.0
        %1476 = vmatprep.subr.mxu0 0.0
        %1477 = vmatpush2.msra.mxu0 0.0
        %1478 = vmatprep.subr.mxu0 0.0
        %1479 = vmatpush2.msra.mxu0 0.0
        %1480 = vmatprep.subr.mxu0 0.0
        %1481 = vmatpush2.msra.mxu0 0.0
        %1482 = vmatprep.subr.mxu0 0.0
        %1483 = vmatpush2.msra.mxu0 0.0
        %1484 = vmatprep.subr.mxu0 0.0
        %1485 = vmatpush2.msra.mxu0 0.0
        %1486 = vmatprep.subr.mxu0 0.0
        %1487 = vmatpush2.msra.mxu0 0.0
        %1488 = vmatprep.mubr.f32.mxu0 0.0
        %1489 = vmatmul.mubr.f32.gmra.mxu0 %v1419
        %v1490 = vpop.f32.mrf.mxu0
        %v1491 = vadd.f32 %v1415, %v1490
        %v1492 = vpop.f32.mrf.mxu0
        %1493 = vmatprep.mubr.f32.mxu0 0.0
        %1494 = vmatmul.mubr.f32.gmra.mxu0 %v1422
        %v1495 = vpop.f32.mrf.mxu0
        %v1496 = vadd.f32 %v1415, %v1495
        %v1497 = vpop.f32.mrf.mxu0
        %1498 = vdwg.mxu0
        %v1499 = vld [vmem:[%s16] sm:$0xff]
        %v1500 = vld [vmem:[%s16 + $0x8] sm:$0xff]
        %v1501 = vld [vmem:[%s16 + $0x10] sm:$0xff]
        %v1502 = vld [vmem:[%s16 + $0x18] sm:$0xff]
        %v1503 = vld [vmem:[%s16 + $0x20] sm:$0xff]
        %v1504 = vld [vmem:[%s16 + $0x28] sm:$0xff]
        %v1505 = vld [vmem:[%s16 + $0x30] sm:$0xff]
        %v1506 = vld [vmem:[%s16 + $0x38] sm:$0xff]
        %v1507 = vld [vmem:[%s17] sm:$0x1]
        %v1509 = vlaneseq
        %v1510 = vshrl.u32 %v1509, 7
        %v1511 = vsub.s32 0, %v1510
        %v1512 = vrot.slane %v1507, %v1511
        %1514 = vmatprep.subr.mxu0 0.0
        %1515 = vmatpush1.msra.mxu0 0.0
        %1516 = vmatprep.subr.mxu0 0.0
        %1517 = vmatpush1.msra.mxu0 0.0
        %1518 = vmatprep.subr.mxu0 0.0
        %1519 = vmatpush1.msra.mxu0 0.0
        %1520 = vmatprep.subr.mxu0 0.0
        %1521 = vmatpush1.msra.mxu0 0.0
        %1522 = vmatprep.subr.mxu0 0.0
        %1523 = vmatpush1.msra.mxu0 0.0
        %1524 = vmatprep.subr.mxu0 0.0
        %1525 = vmatpush1.msra.mxu0 0.0
        %1526 = vmatprep.subr.mxu0 0.0
        %1527 = vmatpush1.msra.mxu0 0.0
        %1528 = vmatprep.subr.mxu0 0.0
        %1529 = vmatpush1.msra.mxu0 0.0
        %1530 = vmatprep.subr.mxu0 0.0
        %1531 = vmatpush1.msra.mxu0 %v1506
        %1532 = vmatprep.subr.mxu0 0.0
        %1533 = vmatpush1.msra.mxu0 %v1505
        %1534 = vmatprep.subr.mxu0 0.0
        %1535 = vmatpush1.msra.mxu0 %v1504
        %1536 = vmatprep.subr.mxu0 0.0
        %1537 = vmatpush1.msra.mxu0 %v1503
        %1538 = vmatprep.subr.mxu0 0.0
        %1539 = vmatpush1.msra.mxu0 %v1502
        %1540 = vmatprep.subr.mxu0 0.0
        %1541 = vmatpush1.msra.mxu0 %v1501
        %1542 = vmatprep.subr.mxu0 0.0
        %1543 = vmatpush1.msra.mxu0 %v1500
        %1544 = vmatprep.subr.mxu0 0.0
        %1545 = vmatpush1.msra.mxu0 %v1499
        %1546 = vmatprep.subr.mxu0 0.0
        %1547 = vmatpush2.msra.mxu0 0.0
        %1548 = vmatprep.subr.mxu0 0.0
        %1549 = vmatpush2.msra.mxu0 0.0
        %1550 = vmatprep.subr.mxu0 0.0
        %1551 = vmatpush2.msra.mxu0 0.0
        %1552 = vmatprep.subr.mxu0 0.0
        %1553 = vmatpush2.msra.mxu0 0.0
        %1554 = vmatprep.subr.mxu0 0.0
        %1555 = vmatpush2.msra.mxu0 0.0
        %1556 = vmatprep.subr.mxu0 0.0
        %1557 = vmatpush2.msra.mxu0 0.0
        %1558 = vmatprep.subr.mxu0 0.0
        %1559 = vmatpush2.msra.mxu0 0.0
        %1560 = vmatprep.subr.mxu0 0.0
        %1561 = vmatpush2.msra.mxu0 0.0
        %1562 = vmatprep.subr.mxu0 0.0
        %1563 = vmatpush2.msra.mxu0 0.0
        %1564 = vmatprep.subr.mxu0 0.0
        %1565 = vmatpush2.msra.mxu0 0.0
        %1566 = vmatprep.subr.mxu0 0.0
        %1567 = vmatpush2.msra.mxu0 0.0
        %1568 = vmatprep.subr.mxu0 0.0
        %1569 = vmatpush2.msra.mxu0 0.0
        %1570 = vmatprep.subr.mxu0 0.0
        %1571 = vmatpush2.msra.mxu0 0.0
        %1572 = vmatprep.subr.mxu0 0.0
        %1573 = vmatpush2.msra.mxu0 0.0
        %1574 = vmatprep.subr.mxu0 0.0
        %1575 = vmatpush2.msra.mxu0 0.0
        %1576 = vmatprep.subr.mxu0 0.0
        %1577 = vmatpush2.msra.mxu0 0.0
        %1578 = vmatprep.mubr.f32.mxu0 0.0
        %1579 = vmatmul.mubr.f32.gmra.mxu0 %v1419
        %v1580 = vpop.f32.mrf.mxu0
        %v1581 = vadd.f32 %v1512, %v1580
        %v1582 = vpop.f32.mrf.mxu0
        %1583 = vmatprep.mubr.f32.mxu0 0.0
        %1584 = vmatmul.mubr.f32.gmra.mxu0 %v1422
        %v1585 = vpop.f32.mrf.mxu0
        %v1586 = vadd.f32 %v1512, %v1585
        %v1587 = vpop.f32.mrf.mxu0
        %1588 = vdwg.mxu0
        %v1589 = vmul.f32 %v1128, %v840
        %v1590 = vmul.f32 %v1129, %v841
        %1591 = vst.msk [vmem:[%s806] sm:$0xff] %vm1228, %v1589
        %1592 = vst.msk [vmem:[%s806 + $0x8] sm:$0xff] %vm1228, %v1590
        %v1593 = vmul.f32 %v1491, 1.442695
        %v1594 = vpow.pop %v1593
        %v1595 = vmul.f32 %v1496, 1.442695
        %v1596 = vpow.pop %v1595
        %v1597 = vmul.f32 %v1130, %v1594
        %v1598 = vmul.f32 %v1131, %v1596
        %v1599 = vadd.f32 %v1597, %v1581
        %v1600 = vadd.f32 %v1598, %v1586
        %v1601 = vmul.f32 %v1599, %v840
        %v1602 = vmul.f32 %v1600, %v841
        %1603 = vst.msk [vmem:[%s816] sm:$0xff] %vm1228, %v1601
        %1604 = vst.msk [vmem:[%s816 + $0x8] sm:$0xff] %vm1228, %v1602
        %v1605 = vld [vmem:[%s820] sm:$0x1]
        %v1606 = vmul.f32 %v1491, %v840
        %v1607 = vmul.f32 %v1496, %v841
        %v1608 = vsel %vm1228, %v1606, 0.0
        %v1609 = vsel %vm1228, %v1607, 0.0
        %v1610 = vadd.f32 %v1608, %v1609
        %1611 = vadd.xlane.f32.xlu0 %v1610
        %v1612 = vpop.xlane.xlu0 %1611
        %v1613 = vrot.slane %v1612, 4
        %v1614 = vadd.f32 %v1612, %v1613
        %v1615 = vrot.slane %v1614, 2
        %v1616 = vadd.f32 %v1614, %v1615
        %v1617 = vrot.slane %v1616, 1
        %v1618 = vadd.f32 %v1616, %v1617
        %s1619 = vtos %v1618
        %v1620 = vstv %s1619
        %v1621 = vadd.f32 %v1605, %v1620
        %vm1622 = vcmask 0
        %1623 = vst.msk [vmem:[%s820] sm:$0x1] %vm1622, %v1621
        %s1624 = sand.u32 %s452, 1
        %s1625 = scalar_lea.sflag [#allocation5], %s1624
        %s1626 = sand.u32 %s452, 1
        %s1627 = smul.addr %s1626, 16
        %s1628 = scalar_lea.vmem [#allocation4], %s1627
        %s1629 = smul.u32 2, %s47
        %p1630 = scmp.lt.s32.totalorder %s46, 1
        %s1631 = scalar_select %p1630, %s46, 1
        %p1632 = scmp.lt.s32.totalorder %s1629, 1
        %s1633 = scalar_select %p1632, %s1629, 1
        %s1634 = smul.addr %s1631, 2
        %s1635 = sadd.s32 %s1633, %s1634
        %s1636 = smul.addr %s1635, 8
        %s1637 = scalar_lea.vmem %s19, %s1636
        %s1638 = smul.u32 2, %s47
        %p1639 = scmp.lt.s32.totalorder %s46, 1
        %s1640 = scalar_select %p1639, %s46, 1
        %p1641 = scmp.lt.s32.totalorder %s1638, 1
        %s1642 = scalar_select %p1641, %s1638, 1
        %s1643 = smul.addr %s1640, 2
        %s1644 = sadd.s32 %s1642, %s1643
        %s1645 = smul.addr %s1644, 8
        %s1646 = scalar_lea.vmem %s20, %s1645
        %p1647 = scmp.lt.s32.totalorder %s46, 1
        %s1648 = scalar_select %p1647, %s46, 1
        %s1649 = scalar_lea.vmem %s21, %s1648
        // Predicated region
        $region93: #{stylespeech_forward.5} parent=87 // pred_check
          %p1650 = pneg %p462
        $region94: #{stylespeech_forward.5} parent=87 // pred_check_branch
          %1652 = sbr.rel (%p1650) target = $region96
        $region95: #{stylespeech_forward.5} parent=87 // pred_region
          %s1653 = smul.u32 2, %s47
          %s1655 = ssub.s32 256, 256
          %1656 = vsyncadd %s1625, %s1655
          %s1657 = smul.addr %s46, 2
          %s1658 = sadd.s32 %s1653, %s1657
          %s1659 = smul.addr %s1658, 128
          %s1660 = scalar_lea.hbm %s18, %s1659
          %s1661 = sshll.u32 %s1628, 4
          %s1662 = int_to_ptr.vmem [resolvable:$true] %s1661
          %1667 = dma.vmem_to_hbm [thread:$0]  %s1662, 256, %s1660, %s1625, 128, 128, 8
        $region96: #{stylespeech_forward.5} parent=87 // pred_fallthru
          _
        // Predicated region
        $region97: #{stylespeech_forward.5} parent=87 // pred_check
          %p1668 = pneg %p490
        $region98: #{stylespeech_forward.5} parent=87 // pred_check_branch
          %1670 = sbr.rel (%p1668) target = $region100
        $region99: #{stylespeech_forward.5} parent=87 // pred_region
          %s1671 = smul.u32 2, %s47
        $region100: #{stylespeech_forward.5} parent=87 // pred_fallthru
          _
        // Predicated region
        $region101: #{stylespeech_forward.5} parent=87 // pred_check
          %p1672 = pneg %p518
        $region102: #{stylespeech_forward.5} parent=87 // pred_check_branch
          %1674 = sbr.rel (%p1672) target = $region104
        $region103: #{stylespeech_forward.5} parent=87 // pred_region
          %s1675 = smul.u32 2, %s47
        $region104: #{stylespeech_forward.5} parent=87 // pred_fallthru
          _
        // Predicated region
        $region105: #{stylespeech_forward.5} parent=87 // pred_check
          %p1676 = pneg %p544
        $region106: #{stylespeech_forward.5} parent=87 // pred_check_branch
          %1678 = sbr.rel (%p1676) target = $region108
        $region107: #{stylespeech_forward.5} parent=87 // pred_region
          _
        $region108: #{stylespeech_forward.5} parent=87 // pred_fallthru
          _
      $region88: #{stylespeech_forward.5} parent=5 // pred_fallthru
        _
      %p1679 = scmp.le.s32.totalorder 2, %s37
      // Predicated region
      $region109: #{stylespeech_forward.5} parent=5 // pred_check
        %p1680 = pneg %p1679
      $region110: #{stylespeech_forward.5} parent=5 // pred_check_branch
        %1682 = sbr.rel (%p1680) target = $region112
      $region111: #{stylespeech_forward.5} parent=5 // pred_region
        %s1683 = ssub.s32 %s37, 2
        // Predicated region
        $region113: #{stylespeech_forward.5} parent=111 // pred_check
          %p1684 = pneg %p468
        $region114: #{stylespeech_forward.5} parent=111 // pred_check_branch
          %1686 = sbr.rel (%p1684) target = $region116
        $region115: #{stylespeech_forward.5} parent=111 // pred_region
          %s1687 = sand.u32 %s453, 1
          %s1688 = scalar_lea.sflag [#allocation5], %s1687
          %s1689 = sand.u32 %s453, 1
          %s1690 = smul.addr %s1689, 16
          %s1691 = scalar_lea.vmem [#allocation4], %s1690
          %1692 = dma.done %s1688, 256
        $region116: #{stylespeech_forward.5} parent=111 // pred_fallthru
          _
        // Predicated region
        $region117: #{stylespeech_forward.5} parent=111 // pred_check
          %p1693 = pneg %p496
        $region118: #{stylespeech_forward.5} parent=111 // pred_check_branch
          %1695 = sbr.rel (%p1693) target = $region120
        $region119: #{stylespeech_forward.5} parent=111 // pred_region
          %s1696 = smul.u32 2, %s49
          %p1697 = scmp.lt.s32.totalorder %s48, 1
          %s1698 = scalar_select %p1697, %s48, 1
          %p1699 = scmp.lt.s32.totalorder %s1696, 1
          %s1700 = scalar_select %p1699, %s1696, 1
          %s1701 = smul.addr %s1698, 2
          %s1702 = sadd.s32 %s1700, %s1701
          %s1703 = smul.addr %s1702, 8
          %s1704 = scalar_lea.vmem %s19, %s1703
        $region120: #{stylespeech_forward.5} parent=111 // pred_fallthru
          _
        // Predicated region
        $region121: #{stylespeech_forward.5} parent=111 // pred_check
          %p1705 = pneg %p524
        $region122: #{stylespeech_forward.5} parent=111 // pred_check_branch
          %1707 = sbr.rel (%p1705) target = $region124
        $region123: #{stylespeech_forward.5} parent=111 // pred_region
          %s1708 = smul.u32 2, %s49
          %p1709 = scmp.lt.s32.totalorder %s48, 1
          %s1710 = scalar_select %p1709, %s48, 1
          %p1711 = scmp.lt.s32.totalorder %s1708, 1
          %s1712 = scalar_select %p1711, %s1708, 1
          %s1713 = smul.addr %s1710, 2
          %s1714 = sadd.s32 %s1712, %s1713
          %s1715 = smul.addr %s1714, 8
          %s1716 = scalar_lea.vmem %s20, %s1715
        $region124: #{stylespeech_forward.5} parent=111 // pred_fallthru
          _
        // Predicated region
        $region125: #{stylespeech_forward.5} parent=111 // pred_check
          %p1717 = pneg %p550
        $region126: #{stylespeech_forward.5} parent=111 // pred_check_branch
          %1719 = sbr.rel (%p1717) target = $region128
        $region127: #{stylespeech_forward.5} parent=111 // pred_region
          %p1720 = scmp.lt.s32.totalorder %s48, 1
          %s1721 = scalar_select %p1720, %s48, 1
          %s1722 = scalar_lea.vmem %s21, %s1721
        $region128: #{stylespeech_forward.5} parent=111 // pred_fallthru
          _
      $region112: #{stylespeech_forward.5} parent=5 // pred_fallthru
        _
    $region6: #{stylespeech_forward.5} parent=1 // loop_footer
      %s41 = sadd.s32 1, %s37
    $region7: #{stylespeech_forward.5} parent=1 // loop_footer_branch
      %36 = sbr.rel target = $region3
    $region8: #{stylespeech_forward.5} parent=1 // loop_exit
      _
    %1723 = vsyncpa [#allocation5], 1
    %s1724 = scalar_lea.sflag [#allocation5], 1
    %1725 = vsyncpa %s1724, 1

</llo_original>
